<compile_context>
chip_gen: v5e
topology: v5e:2x2
jax: 0.10.0
libtpu: 0.0.40
codegen_flags: <defaults>
</compile_context>

<pallas_src>
import functools

import jax
import jax.numpy as jnp
import numpy as np
from jax.experimental import pallas as pl
from jax.experimental.pallas import tpu as pltpu


def _rup(x, m):
    return ((x + m - 1) // m) * m


def _pad_last(a, target):
    pad = target - a.shape[-1]
    if pad == 0:
        return a
    cfg = [(0, 0)] * (a.ndim - 1) + [(0, pad)]
    return jnp.pad(a, cfg)


# ----------------------------------------------------------------------------
# Kernel 1: generic tiled matmul  o = act(x @ w + b), bf16 operands, f32 acc.
# Used for the input projection of the whole sequence, the attention input
# projection, the linear_out+tanh mix, and the (N-tiled) vocab projection.
# ----------------------------------------------------------------------------
def _matmul_act_kernel(x_ref, w_ref, b_ref, o_ref, *, act):
    acc = jnp.dot(x_ref[...], w_ref[...], preferred_element_type=jnp.float32)
    acc = acc + b_ref[...]
    if act == "tanh":
        acc = jnp.tanh(acc)
    o_ref[...] = acc.astype(o_ref.dtype)


def matmul_act(x, w, b, act="none", tm=256, tn=512):
    M, K = x.shape
    Kw, N = w.shape
    assert K == Kw
    tm = min(tm, M)
    tn = min(tn, N)
    if M % tm:      # fall back to full-dim blocks when tiles do not divide
        tm = M
    if N % tn:
        tn = N
    grid = (M // tm, N // tn)
    kernel = functools.partial(_matmul_act_kernel, act=act)
    return pl.pallas_call(
        kernel,
        out_shape=jax.ShapeDtypeStruct((M, N), jnp.float32),
        grid_spec=pltpu.PrefetchScalarGridSpec(
            num_scalar_prefetch=0,
            grid=grid,
            in_specs=[
                pl.BlockSpec((tm, K), lambda i, j: (i, 0)),
                pl.BlockSpec((K, tn), lambda i, j: (0, j)),
                pl.BlockSpec((1, tn), lambda i, j: (0, j)),
            ],
            out_specs=pl.BlockSpec((tm, tn), lambda i, j: (i, j)),
        ),
        compiler_params=pltpu.CompilerParams(
            dimension_semantics=("parallel", "parallel")),
    )(x, w, b)


# ----------------------------------------------------------------------------
# Kernel 2: single-layer LSTM recurrence, ONE grid step, in-kernel fori_loop.
# gates_x (the x @ W_ih + bias part) is precomputed by the big matmul above.
# ----------------------------------------------------------------------------
def _lstm_kernel(gx_ref, whh_ref, h0_ref, c0_ref, y_ref, h1_ref, c1_ref):
    T = gx_ref.shape[0]
    Hp = h0_ref.shape[-1]
    whh = whh_ref[...]                       # (Hp, 4*Hp) bf16, resident

    def step(t, carry):
        h, c = carry
        gates = gx_ref[t] + jnp.dot(h.astype(whh.dtype), whh,
                                    preferred_element_type=jnp.float32)
        i = jax.nn.sigmoid(gates[:, 0 * Hp:1 * Hp])
        f = jax.nn.sigmoid(gates[:, 1 * Hp:2 * Hp])
        g = jnp.tanh(gates[:, 2 * Hp:3 * Hp])
        o = jax.nn.sigmoid(gates[:, 3 * Hp:4 * Hp])
        c = f * c + i * g
        h = o * jnp.tanh(c)
        y_ref[t] = h
        return (h, c)

    h1, c1 = jax.lax.fori_loop(0, T, step, (h0_ref[...], c0_ref[...]),
                               unroll=(T <= 16))
    h1_ref[...] = h1                          # written once, at the end
    c1_ref[...] = c1


def lstm_forward(gx_tbg, w_hh_t, h0, c0):
    T, B, G = gx_tbg.shape
    Hp = h0.shape[-1]
    return pl.pallas_call(
        _lstm_kernel,
        out_shape=(jax.ShapeDtypeStruct((T, B, Hp), jnp.float32),
                   jax.ShapeDtypeStruct((B, Hp), jnp.float32),
                   jax.ShapeDtypeStruct((B, Hp), jnp.float32)),
        grid_spec=pltpu.PrefetchScalarGridSpec(
            num_scalar_prefetch=0,
            grid=(1,),
            in_specs=[
                pl.BlockSpec((T, B, G), lambda i: (0, 0, 0)),
                pl.BlockSpec((Hp, G), lambda i: (0, 0)),
                pl.BlockSpec((B, Hp), lambda i: (0, 0)),
                pl.BlockSpec((B, Hp), lambda i: (0, 0)),
            ],
            out_specs=(
                pl.BlockSpec((T, B, Hp), lambda i: (0, 0, 0)),
                pl.BlockSpec((B, Hp), lambda i: (0, 0)),
                pl.BlockSpec((B, Hp), lambda i: (0, 0)),
            ),
        ),
        compiler_params=pltpu.CompilerParams(
            dimension_semantics=("arbitrary",)),
    )(gx_tbg, w_hh_t, h0, c0)


# ----------------------------------------------------------------------------
# Kernel 3: SoftDot attention core (ctx-dependent part only): masked scores,
# softmax, and weighted context sum.  One grid step per batch element.
# ----------------------------------------------------------------------------
def _attn_kernel(tgt_ref, ctx_ref, mb_ref, o_ref):
    tgt = tgt_ref[0]                                      # (T, Hp) bf16
    ctx = ctx_ref[0]                                      # (S, Hp) bf16
    scores = jax.lax.dot_general(
        tgt, ctx, (((1,), (1,)), ((), ())),
        preferred_element_type=jnp.float32)               # (T, S)
    scores = scores + mb_ref[0]                           # additive 0/-1e30 mask
    m = jnp.max(scores, axis=-1, keepdims=True)
    e = jnp.exp(scores - m)
    denom = jnp.sum(e, axis=-1, keepdims=True)
    attn = e * pl.reciprocal(denom, approx=True)
    o_ref[0] = jnp.dot(attn.astype(ctx.dtype), ctx,
                       preferred_element_type=jnp.float32)  # (T, Hp)


def attn_forward(tgt_bth, ctx_bsh, maskbias_b1s):
    B, T, Hp = tgt_bth.shape
    S = ctx_bsh.shape[1]
    return pl.pallas_call(
        _attn_kernel,
        out_shape=jax.ShapeDtypeStruct((B, T, Hp), jnp.float32),
        grid_spec=pltpu.PrefetchScalarGridSpec(
            num_scalar_prefetch=0,
            grid=(B,),
            in_specs=[
                pl.BlockSpec((1, T, Hp), lambda b: (b, 0, 0)),
                pl.BlockSpec((1, S, Hp), lambda b: (b, 0, 0)),
                pl.BlockSpec((1, 1, S), lambda b: (b, 0, 0)),
            ],
            out_specs=pl.BlockSpec((1, T, Hp), lambda b: (b, 0, 0)),
        ),
        compiler_params=pltpu.CompilerParams(
            dimension_semantics=("parallel",)),
    )(tgt_bth, ctx_bsh, maskbias_b1s)


# ----------------------------------------------------------------------------
# Parameter init: raw f32 params (for the reference) + transposed / zero-padded
# (lane-dense) bf16 copies for the kernels.
# ----------------------------------------------------------------------------
def init_params(key, vocab_size, embedding_size, hidden_size, padding_idx):
    ks = jax.random.split(key, 9)
    s = 0.1
    V, E, H = vocab_size, embedding_size, hidden_size
    Ep, Hp, Vp = _rup(E, 128), _rup(H, 128), _rup(V, 128)

    emb = jax.random.normal(ks[0], (V, E), jnp.float32) * s
    emb = emb.at[padding_idx].set(0.0)                    # padding_idx row = 0
    w_ih = jax.random.normal(ks[1], (4 * H, E), jnp.float32) * s
    w_hh = jax.random.normal(ks[2], (4 * H, H), jnp.float32) * s
    b_ih = jax.random.normal(ks[3], (4 * H,), jnp.float32) * s
    b_hh = jax.random.normal(ks[4], (4 * H,), jnp.float32) * s
    w_in = jax.random.normal(ks[5], (H, H), jnp.float32) * s          # linear_in.weight
    w_out = jax.random.normal(ks[6], (H, 2 * H), jnp.float32) * s     # linear_out.weight
    w_proj = jax.random.normal(ks[7], (V, H), jnp.float32) * s        # projection.weight
    b_proj = jax.random.normal(ks[8], (V,), jnp.float32) * s
    # TODO(synk): summarizer / baseline_projection params exist in __init__ but are
    # unused by forward(), so they are not materialized here.

    def pad_gate_cols(mat, rows_p):
        # mat: (rows, 4H), gate-major [i|f|g|o]; place each H-block at g*Hp.
        rows = mat.shape[0]
        out = jnp.zeros((rows_p, 4 * Hp), jnp.float32)
        for g in range(4):
            out = out.at[:rows, g * Hp:g * Hp + H].set(mat[:, g * H:(g + 1) * H])
        return out

    params = dict(
        embedding=jnp.zeros((V, Ep), jnp.float32).at[:, :E].set(emb),
        w_ih_t=pad_gate_cols(w_ih.T, Ep).astype(jnp.bfloat16),          # (Ep, 4Hp)
        w_hh_t=pad_gate_cols(w_hh.T, Hp).astype(jnp.bfloat16),          # (Hp, 4Hp)
        b_lstm=pad_gate_cols((b_ih + b_hh)[None, :], 1),                # (1, 4Hp) f32
        w_in_t=jnp.zeros((Hp, Hp), jnp.float32)
               .at[:H, :H].set(w_in.T).astype(jnp.bfloat16),
        w_out_t=jnp.zeros((2 * Hp, Hp), jnp.float32)
                .at[:H, :H].set(w_out[:, :H].T)
                .at[Hp:Hp + H, :H].set(w_out[:, H:].T).astype(jnp.bfloat16),
        w_proj_t=jnp.zeros((Hp, Vp), jnp.float32)
                 .at[:H, :V].set(w_proj.T).astype(jnp.bfloat16),
        b_proj=jnp.zeros((1, Vp), jnp.float32).at[0, :V].set(b_proj),
    )
    ref = dict(embedding=emb, w_ih=w_ih, w_hh=w_hh, b_ih=b_ih, b_hh=b_hh,
               w_in=w_in, w_out=w_out, w_proj=w_proj, b_proj=b_proj)
    return params, ref


# ----------------------------------------------------------------------------
# Full forward (train=False path of PanoSpeakerDecoder.forward).
# ----------------------------------------------------------------------------
@jax.jit
def pano_speaker_decoder_forward(params, words, ctx, ctx_mask, h0, c0):
    """train=False path of PanoSpeakerDecoder.forward -> (logit, h1, c1)."""
    B, T = words.shape
    Bc, L, views, H = ctx.shape
    # TODO(synk): the torch 'multiplier' broadcast path (ctx batch < words batch)
    # is not supported; this implementation requires ctx.shape[0] == words.shape[0].
    assert Bc == B
    Hp = params["w_hh_t"].shape[0]
    G = params["w_ih_t"].shape[1]                 # 4 * Hp
    Vp = params["w_proj_t"].shape[1]
    V = params["embedding"].shape[0]

    # 1) embedding lookup (+ dropout: identity in eval); gather is plain-JAX glue.
    embeds = params["embedding"][words]                            # (B, T, Ep) f32
    embeds_tbe = jnp.transpose(embeds, (1, 0, 2))                  # (T, B, Ep)
    Ep = embeds_tbe.shape[-1]

    # 2) input projection of the whole sequence in one lane-dense MXU matmul.
    gx = matmul_act(embeds_tbe.reshape(T * B, Ep).astype(jnp.bfloat16),
                    params["w_ih_t"], params["b_lstm"])            # (T*B, 4Hp) f32
    gx = gx.reshape(T, B, G)

    # 3) LSTM recurrence: one pallas_call, in-kernel fori_loop, h1/c1 written once.
    h0p = _pad_last(h0[0], Hp)
    c0p = _pad_last(c0[0], Hp)
    y_tbh, h1p, c1p = lstm_forward(gx, params["w_hh_t"], h0p, c0p)
    x_bth = jnp.transpose(y_tbh, (1, 0, 2))                        # (B, T, Hp) f32
    x_flat = x_bth.reshape(B * T, Hp)
    x_bf = x_flat.astype(jnp.bfloat16)

    zero_h = jnp.zeros((1, Hp), jnp.float32)

    # 4) attention input projection (x @ W_in) over all B*T rows.
    target = matmul_act(x_bf, params["w_in_t"], zero_h)            # (B*T, Hp) f32
    target_bth = target.reshape(B, T, Hp).astype(jnp.bfloat16)

    # 5) per-batch masked softmax attention over the flattened pano ctx.
    S = L * views
    ctx_flat = _pad_last(ctx.reshape(B, S, H), Hp).astype(jnp.bfloat16)
    maskbias = jnp.where(ctx_mask, jnp.float32(-1e30), jnp.float32(0.0))
    maskbias = jnp.broadcast_to(maskbias[:, :, None], (B, L, views)).reshape(B, 1, S)
    weighted = attn_forward(target_bth, ctx_flat, maskbias)        # (B, T, Hp) f32

    # 6) linear_out + tanh over all B*T rows: tanh([weighted | x] @ W_out^T).
    cat2 = jnp.concatenate(
        [weighted.reshape(B * T, Hp).astype(jnp.bfloat16), x_bf], axis=1)
    h_tilde = matmul_act(cat2, params["w_out_t"], zero_h, act="tanh")

    # 7) vocab projection over all B*T rows (N-tiled when V is large).
    logit_p = matmul_act(h_tilde.astype(jnp.bfloat16),
                         params["w_proj_t"], params["b_proj"])     # (B*T, Vp)
    logit = logit_p.reshape(B, T, Vp)[:, :, :V]

    h1 = h1p[:, :H][None]
    c1 = c1p[:, :H][None]
    return logit, h1, c1


# ----------------------------------------------------------------------------
# Pure-JAX f32 reference (mirrors the PyTorch semantics) for verification.
# ----------------------------------------------------------------------------
def reference_forward(ref, words, ctx, ctx_mask, h0, c0):
    B, T = words.shape
    H = h0.shape[-1]
    embeds = ref["embedding"][words]
    w_ih_t = ref["w_ih"].T
    w_hh_t = ref["w_hh"].T
    b = ref["b_ih"] + ref["b_hh"]

    def step(carry, x_t):
        h, c = carry
        gates = x_t @ w_ih_t + h @ w_hh_t + b
        i, f, g, o = jnp.split(gates, 4, axis=-1)
        i = jax.nn.sigmoid(i); f = jax.nn.sigmoid(f)
        g = jnp.tanh(g); o = jax.nn.sigmoid(o)
        c = f * c + i * g
        h = o * jnp.tanh(c)
        return (h, c), h

    (h1, c1), ys = jax.lax.scan(step, (h0[0], c0[0]),
                                jnp.transpose(embeds, (1, 0, 2)))
    x = jnp.transpose(ys, (1, 0, 2)).reshape(B * T, H)

    Bc, L, views, _ = ctx.shape
    S = L * views
    ctx_flat = jnp.broadcast_to(ctx.reshape(B, 1, S, H), (B, T, S, H)).reshape(B * T, S, H)
    mask = jnp.repeat(ctx_mask[:, :, None], views, axis=2).reshape(B, 1, S)
    mask = jnp.broadcast_to(mask, (B, T, S)).reshape(B * T, S)

    target = x @ ref["w_in"].T
    logits = jnp.einsum("nh,nsh->ns", target, ctx_flat)
    logits = jnp.where(mask, jnp.float32(-1e30), logits)
    attn = jax.nn.softmax(logits, axis=-1)
    weighted = jnp.einsum("ns,nsh->nh", attn, ctx_flat)
    h_tilde = jnp.tanh(weighted @ ref["w_out"][:, :H].T + x @ ref["w_out"][:, H:].T)
    logit = (h_tilde @ ref["w_proj"].T + ref["b_proj"]).reshape(B, T, -1)
    return logit, h1[None], c1[None]


if __name__ == "__main__":
    V, E, H = 64, 32, 32           # vocab, embedding, hidden
    B, T, L, VIEWS = 2, 8, 4, 36   # batch, seq len, ctx length, pano views
    PAD = 0

    key = jax.random.PRNGKey(0)
    kp, kw, kc, kh, kc0 = jax.random.split(key, 5)
    params, ref = init_params(kp, V, E, H, PAD)

    words = jax.random.randint(kw, (B, T), 1, V, dtype=jnp.int32)
    ctx = jax.random.normal(kc, (B, L, VIEWS, H), jnp.float32)
    lens = jnp.array([4, 3])
    ctx_mask = jnp.arange(L)[None, :] >= lens[:, None]       # True = padded
    h0 = jax.random.normal(kh, (1, B, H), jnp.float32) * 0.1
    c0 = jax.random.normal(kc0, (1, B, H), jnp.float32) * 0.1

    logit, h1, c1 = pano_speaker_decoder_forward(params, words, ctx, ctx_mask, h0, c0)
    jax.block_until_ready((logit, h1, c1))

    ref_logit, ref_h1, ref_c1 = reference_forward(ref, words, ctx, ctx_mask, h0, c0)
    # bf16 MXU operands vs pure-f32 reference -> slightly loosened tolerance.
    np.testing.assert_allclose(np.asarray(logit), np.asarray(ref_logit), rtol=2e-2, atol=2e-2)
    np.testing.assert_allclose(np.asarray(h1), np.asarray(ref_h1), rtol=2e-2, atol=2e-2)
    np.testing.assert_allclose(np.asarray(c1), np.asarray(ref_c1), rtol=2e-2, atol=2e-2)

    print("KERNEL_OK")
</pallas_src>

<mosaic_0001>
module attributes {stable_mosaic.version = 11 : i64} {
  func.func @_matmul_act_kernel(%arg0: i32, %arg1: i32, %arg2: memref<16x128xbf16, #tpu.memory_space<vmem>>, %arg3: memref<128x128xbf16, #tpu.memory_space<vmem>>, %arg4: memref<1x128xf32, #tpu.memory_space<vmem>>, %arg5: memref<16x128xf32, #tpu.memory_space<vmem>>) attributes {dimension_semantics = [#tpu.dimension_semantics<parallel>, #tpu.dimension_semantics<parallel>], iteration_bounds = array<i64: 1, 1>, scalar_prefetch = 0 : i64, scratch_operands = 0 : i64, tpu.core_type = #tpu.core_type<tc>, window_params = [{transform_indices = @transform_0, window_bounds = array<i64: 16, 128>}, {transform_indices = @transform_1, window_bounds = array<i64: 128, 128>}, {transform_indices = @transform_2, window_bounds = array<i64: 1, 128>}, {transform_indices = @transform_3, window_bounds = array<i64: 16, 128>}]} {
    %c0 = arith.constant 0 : index
    %c0_0 = arith.constant 0 : index
    %0 = vector.load %arg2[%c0, %c0_0] : memref<16x128xbf16, #tpu.memory_space<vmem>>, vector<16x128xbf16>
    %c0_1 = arith.constant 0 : index
    %c0_2 = arith.constant 0 : index
    %1 = vector.load %arg3[%c0_1, %c0_2] : memref<128x128xbf16, #tpu.memory_space<vmem>>, vector<128x128xbf16>
    %cst = arith.constant dense<0.000000e+00> : vector<16x128xf32>
    %2 = tpu.matmul %0, %1, %cst {dimension_numbers = #tpu.dot_dimension_numbers<[1], [0], [0], [1], [0, 0, 1, 1], [], []>} : vector<16x128xbf16>, vector<128x128xbf16>, vector<16x128xf32> -> vector<16x128xf32>
    %c0_3 = arith.constant 0 : index
    %c0_4 = arith.constant 0 : index
    %3 = vector.load %arg4[%c0_3, %c0_4] : memref<1x128xf32, #tpu.memory_space<vmem>>, vector<1x128xf32>
    %4 = vector.broadcast %3 : vector<1x128xf32> to vector<16x128xf32>
    %5 = arith.addf %2, %4 : vector<16x128xf32>
    %c0_5 = arith.constant 0 : index
    %c0_6 = arith.constant 0 : index
    %6 = vector.load %arg5[%c0_5, %c0_6] : memref<16x128xf32, #tpu.memory_space<vmem>>, vector<16x128xf32>
    tpu.vector_store %arg5[%c0_5, %c0_6], %5 {strides = array<i32>} : memref<16x128xf32, #tpu.memory_space<vmem>>, vector<16x128xf32>,
    return
  }
  func.func @transform_0(%arg0: i32, %arg1: i32) -> (i32, i32) {
    %c0_i32 = arith.constant 0 : i32
    %c0_i32_0 = arith.constant 0 : i32
    return %arg0, %c0_i32 : i32, i32
  }
  func.func @transform_1(%arg0: i32, %arg1: i32) -> (i32, i32) {
    %c0_i32 = arith.constant 0 : i32
    %c0_i32_0 = arith.constant 0 : i32
    return %c0_i32, %arg1 : i32, i32
  }
  func.func @transform_2(%arg0: i32, %arg1: i32) -> (i32, i32) {
    %c0_i32 = arith.constant 0 : i32
    %c0_i32_0 = arith.constant 0 : i32
    return %c0_i32, %arg1 : i32, i32
  }
  func.func @transform_3(%arg0: i32, %arg1: i32) -> (i32, i32) {
    %c0_i32 = arith.constant 0 : i32
    return %arg0, %arg1 : i32, i32
  }
}

module attributes {stable_mosaic.version = 11 : i64} {
  func.func @_matmul_act_kernel(%arg0: i32, %arg1: i32, %arg2: memref<16x128xbf16, #tpu.memory_space<vmem>>, %arg3: memref<128x512xbf16, #tpu.memory_space<vmem>>, %arg4: memref<1x512xf32, #tpu.memory_space<vmem>>, %arg5: memref<16x512xf32, #tpu.memory_space<vmem>>) attributes {dimension_semantics = [#tpu.dimension_semantics<parallel>, #tpu.dimension_semantics<parallel>], iteration_bounds = array<i64: 1, 1>, scalar_prefetch = 0 : i64, scratch_operands = 0 : i64, tpu.core_type = #tpu.core_type<tc>, window_params = [{transform_indices = @transform_0, window_bounds = array<i64: 16, 128>}, {transform_indices = @transform_1, window_bounds = array<i64: 128, 512>}, {transform_indices = @transform_2, window_bounds = array<i64: 1, 512>}, {transform_indices = @transform_3, window_bounds = array<i64: 16, 512>}]} {
    %c0 = arith.constant 0 : index
    %c0_0 = arith.constant 0 : index
    %0 = vector.load %arg2[%c0, %c0_0] : memref<16x128xbf16, #tpu.memory_space<vmem>>, vector<16x128xbf16>
    %c0_1 = arith.constant 0 : index
    %c0_2 = arith.constant 0 : index
    %1 = vector.load %arg3[%c0_1, %c0_2] : memref<128x512xbf16, #tpu.memory_space<vmem>>, vector<128x512xbf16>
    %cst = arith.constant dense<0.000000e+00> : vector<16x512xf32>
    %2 = tpu.matmul %0, %1, %cst {dimension_numbers = #tpu.dot_dimension_numbers<[1], [0], [0], [1], [0, 0, 1, 1], [], []>} : vector<16x128xbf16>, vector<128x512xbf16>, vector<16x512xf32> -> vector<16x512xf32>
    %c0_3 = arith.constant 0 : index
    %c0_4 = arith.constant 0 : index
    %3 = vector.load %arg4[%c0_3, %c0_4] : memref<1x512xf32, #tpu.memory_space<vmem>>, vector<1x512xf32>
    %4 = vector.broadcast %3 : vector<1x512xf32> to vector<16x512xf32>
    %5 = arith.addf %2, %4 : vector<16x512xf32>
    %c0_5 = arith.constant 0 : index
    %c0_6 = arith.constant 0 : index
    %6 = vector.load %arg5[%c0_5, %c0_6] : memref<16x512xf32, #tpu.memory_space<vmem>>, vector<16x512xf32>
    tpu.vector_store %arg5[%c0_5, %c0_6], %5 {strides = array<i32>} : memref<16x512xf32, #tpu.memory_space<vmem>>, vector<16x512xf32>,
    return
  }
  func.func @transform_0(%arg0: i32, %arg1: i32) -> (i32, i32) {
    %c0_i32 = arith.constant 0 : i32
    %c0_i32_0 = arith.constant 0 : i32
    return %arg0, %c0_i32 : i32, i32
  }
  func.func @transform_1(%arg0: i32, %arg1: i32) -> (i32, i32) {
    %c0_i32 = arith.constant 0 : i32
    %c0_i32_0 = arith.constant 0 : i32
    return %c0_i32, %arg1 : i32, i32
  }
  func.func @transform_2(%arg0: i32, %arg1: i32) -> (i32, i32) {
    %c0_i32 = arith.constant 0 : i32
    %c0_i32_0 = arith.constant 0 : i32
    return %c0_i32, %arg1 : i32, i32
  }
  func.func @transform_3(%arg0: i32, %arg1: i32) -> (i32, i32) {
    %c0_i32 = arith.constant 0 : i32
    return %arg0, %arg1 : i32, i32
  }
}

module attributes {stable_mosaic.version = 11 : i64} {
  func.func @_lstm_kernel(%arg0: i32, %arg1: memref<8x2x512xf32, #tpu.memory_space<vmem>>, %arg2: memref<128x512xbf16, #tpu.memory_space<vmem>>, %arg3: memref<2x128xf32, #tpu.memory_space<vmem>>, %arg4: memref<2x128xf32, #tpu.memory_space<vmem>>, %arg5: memref<8x2x128xf32, #tpu.memory_space<vmem>>, %arg6: memref<2x128xf32, #tpu.memory_space<vmem>>, %arg7: memref<2x128xf32, #tpu.memory_space<vmem>>) attributes {dimension_semantics = [#tpu.dimension_semantics<arbitrary>], iteration_bounds = array<i64: 1>, scalar_prefetch = 0 : i64, scratch_operands = 0 : i64, tpu.core_type = #tpu.core_type<tc>, window_params = [{pipeline_mode = #tpu.pipeline_mode<synchronous>, transform_indices = @transform_0, window_bounds = array<i64: 8, 2, 512>}, {pipeline_mode = #tpu.pipeline_mode<synchronous>, transform_indices = @transform_1, window_bounds = array<i64: 128, 512>}, {pipeline_mode = #tpu.pipeline_mode<synchronous>, transform_indices = @transform_2, window_bounds = array<i64: 2, 128>}, {pipeline_mode = #tpu.pipeline_mode<synchronous>, transform_indices = @transform_3, window_bounds = array<i64: 2, 128>}, {pipeline_mode = #tpu.pipeline_mode<synchronous>, transform_indices = @transform_4, window_bounds = array<i64: 8, 2, 128>}, {pipeline_mode = #tpu.pipeline_mode<synchronous>, transform_indices = @transform_5, window_bounds = array<i64: 2, 128>}, {pipeline_mode = #tpu.pipeline_mode<synchronous>, transform_indices = @transform_6, window_bounds = array<i64: 2, 128>}]} {
    %c0 = arith.constant 0 : index
    %c0_0 = arith.constant 0 : index
    %0 = vector.load %arg2[%c0, %c0_0] : memref<128x512xbf16, #tpu.memory_space<vmem>>, vector<128x512xbf16>
    %c0_1 = arith.constant 0 : index
    %c0_2 = arith.constant 0 : index
    %1 = vector.load %arg3[%c0_1, %c0_2] : memref<2x128xf32, #tpu.memory_space<vmem>>, vector<2x128xf32>
    %c0_3 = arith.constant 0 : index
    %c0_4 = arith.constant 0 : index
    %2 = vector.load %arg4[%c0_3, %c0_4] : memref<2x128xf32, #tpu.memory_space<vmem>>, vector<2x128xf32>
    %c0_i32 = arith.constant 0 : i32
    %3 = arith.index_cast %c0_i32 : i32 to index
    %c0_5 = arith.constant 0 : index
    %c0_6 = arith.constant 0 : index
    %4 = vector.load %arg1[%3, %c0_5, %c0_6] : memref<8x2x512xf32, #tpu.memory_space<vmem>>, vector<1x2x512xf32>
    %5 = vector.shape_cast %4 : vector<1x2x512xf32> to vector<2x512xf32>
    %6 = arith.truncf %1 : vector<2x128xf32> to vector<2x128xbf16>
    %cst = arith.constant dense<0.000000e+00> : vector<2x512xf32>
    %7 = tpu.matmul %6, %0, %cst {dimension_numbers = #tpu.dot_dimension_numbers<[1], [0], [0], [1], [0, 0, 1, 1], [], []>} : vector<2x128xbf16>, vector<128x512xbf16>, vector<2x512xf32> -> vector<2x512xf32>
    %8 = arith.addf %5, %7 : vector<2x512xf32>
    %9 = vector.extract_strided_slice %8 {offsets = [0, 0], sizes = [2, 128], strides = [1, 1]} : vector<2x512xf32> to vector<2x128xf32>
    %10 = arith.negf %9 : vector<2x128xf32>
    %11 = math.exp %10 : vector<2x128xf32>
    %cst_7 = arith.constant 1.000000e+00 : f32
    %12 = vector.broadcast %cst_7 : f32 to vector<2x128xf32>
    %13 = arith.addf %12, %11 : vector<2x128xf32>
    %14 = arith.divf %12, %13 : vector<2x128xf32>
    %15 = vector.extract_strided_slice %8 {offsets = [0, 128], sizes = [2, 128], strides = [1, 1]} : vector<2x512xf32> to vector<2x128xf32>
    %16 = arith.negf %15 : vector<2x128xf32>
    %17 = math.exp %16 : vector<2x128xf32>
    %cst_8 = arith.constant 1.000000e+00 : f32
    %18 = vector.broadcast %cst_8 : f32 to vector<2x128xf32>
    %19 = arith.addf %18, %17 : vector<2x128xf32>
    %20 = arith.divf %18, %19 : vector<2x128xf32>
    %21 = vector.extract_strided_slice %8 {offsets = [0, 256], sizes = [2, 128], strides = [1, 1]} : vector<2x512xf32> to vector<2x128xf32>
    %22 = math.tanh %21 : vector<2x128xf32>
    %23 = vector.extract_strided_slice %8 {offsets = [0, 384], sizes = [2, 128], strides = [1, 1]} : vector<2x512xf32> to vector<2x128xf32>
    %24 = arith.negf %23 : vector<2x128xf32>
    %25 = math.exp %24 : vector<2x128xf32>
    %cst_9 = arith.constant 1.000000e+00 : f32
    %26 = vector.broadcast %cst_9 : f32 to vector<2x128xf32>
    %27 = arith.addf %26, %25 : vector<2x128xf32>
    %28 = arith.divf %26, %27 : vector<2x128xf32>
    %29 = arith.mulf %20, %2 : vector<2x128xf32>
    %30 = arith.mulf %14, %22 : vector<2x128xf32>
    %31 = arith.addf %29, %30 : vector<2x128xf32>
    %32 = math.tanh %31 : vector<2x128xf32>
    %33 = arith.mulf %28, %32 : vector<2x128xf32>
    %34 = arith.index_cast %c0_i32 : i32 to index
    %c0_10 = arith.constant 0 : index
    %c0_11 = arith.constant 0 : index
    %35 = vector.load %arg5[%34, %c0_10, %c0_11] : memref<8x2x128xf32, #tpu.memory_space<vmem>>, vector<1x2x128xf32>
    %36 = vector.shape_cast %35 : vector<1x2x128xf32> to vector<2x128xf32>
    %37 = vector.shape_cast %33 : vector<2x128xf32> to vector<1x2x128xf32>
    tpu.vector_store %arg5[%34, %c0_10, %c0_11], %37 {strides = array<i32>} : memref<8x2x128xf32, #tpu.memory_space<vmem>>, vector<1x2x128xf32>,
    %c1_i32 = arith.constant 1 : i32
    %38 = arith.index_cast %c1_i32 : i32 to index
    %c0_12 = arith.constant 0 : index
    %c0_13 = arith.constant 0 : index
    %39 = vector.load %arg1[%38, %c0_12, %c0_13] : memref<8x2x512xf32, #tpu.memory_space<vmem>>, vector<1x2x512xf32>
    %40 = vector.shape_cast %39 : vector<1x2x512xf32> to vector<2x512xf32>
    %41 = arith.truncf %33 : vector<2x128xf32> to vector<2x128xbf16>
    %cst_14 = arith.constant dense<0.000000e+00> : vector<2x512xf32>
    %42 = tpu.matmul %41, %0, %cst_14 {dimension_numbers = #tpu.dot_dimension_numbers<[1], [0], [0], [1], [0, 0, 1, 1], [], []>} : vector<2x128xbf16>, vector<128x512xbf16>, vector<2x512xf32> -> vector<2x512xf32>
    %43 = arith.addf %40, %42 : vector<2x512xf32>
    %44 = vector.extract_strided_slice %43 {offsets = [0, 0], sizes = [2, 128], strides = [1, 1]} : vector<2x512xf32> to vector<2x128xf32>
    %45 = arith.negf %44 : vector<2x128xf32>
    %46 = math.exp %45 : vector<2x128xf32>
    %cst_15 = arith.constant 1.000000e+00 : f32
    %47 = vector.broadcast %cst_15 : f32 to vector<2x128xf32>
    %48 = arith.addf %47, %46 : vector<2x128xf32>
    %49 = arith.divf %47, %48 : vector<2x128xf32>
    %50 = vector.extract_strided_slice %43 {offsets = [0, 128], sizes = [2, 128], strides = [1, 1]} : vector<2x512xf32> to vector<2x128xf32>
    %51 = arith.negf %50 : vector<2x128xf32>
    %52 = math.exp %51 : vector<2x128xf32>
    %cst_16 = arith.constant 1.000000e+00 : f32
    %53 = vector.broadcast %cst_16 : f32 to vector<2x128xf32>
    %54 = arith.addf %53, %52 : vector<2x128xf32>
    %55 = arith.divf %53, %54 : vector<2x128xf32>
    %56 = vector.extract_strided_slice %43 {offsets = [0, 256], sizes = [2, 128], strides = [1, 1]} : vector<2x512xf32> to vector<2x128xf32>
    %57 = math.tanh %56 : vector<2x128xf32>
    %58 = vector.extract_strided_slice %43 {offsets = [0, 384], sizes = [2, 128], strides = [1, 1]} : vector<2x512xf32> to vector<2x128xf32>
    %59 = arith.negf %58 : vector<2x128xf32>
    %60 = math.exp %59 : vector<2x128xf32>
    %cst_17 = arith.constant 1.000000e+00 : f32
    %61 = vector.broadcast %cst_17 : f32 to vector<2x128xf32>
    %62 = arith.addf %61, %60 : vector<2x128xf32>
    %63 = arith.divf %61, %62 : vector<2x128xf32>
    %64 = arith.mulf %55, %31 : vector<2x128xf32>
    %65 = arith.mulf %49, %57 : vector<2x128xf32>
    %66 = arith.addf %64, %65 : vector<2x128xf32>
    %67 = math.tanh %66 : vector<2x128xf32>
    %68 = arith.mulf %63, %67 : vector<2x128xf32>
    %69 = arith.index_cast %c1_i32 : i32 to index
    %c0_18 = arith.constant 0 : index
    %c0_19 = arith.constant 0 : index
    %70 = vector.load %arg5[%69, %c0_18, %c0_19] : memref<8x2x128xf32, #tpu.memory_space<vmem>>, vector<1x2x128xf32>
    %71 = vector.shape_cast %70 : vector<1x2x128xf32> to vector<2x128xf32>
    %72 = vector.shape_cast %68 : vector<2x128xf32> to vector<1x2x128xf32>
    tpu.vector_store %arg5[%69, %c0_18, %c0_19], %72 {strides = array<i32>} : memref<8x2x128xf32, #tpu.memory_space<vmem>>, vector<1x2x128xf32>,
    %c2_i32 = arith.constant 2 : i32
    %73 = arith.index_cast %c2_i32 : i32 to index
    %c0_20 = arith.constant 0 : index
    %c0_21 = arith.constant 0 : index
    %74 = vector.load %arg1[%73, %c0_20, %c0_21] : memref<8x2x512xf32, #tpu.memory_space<vmem>>, vector<1x2x512xf32>
    %75 = vector.shape_cast %74 : vector<1x2x512xf32> to vector<2x512xf32>
    %76 = arith.truncf %68 : vector<2x128xf32> to vector<2x128xbf16>
    %cst_22 = arith.constant dense<0.000000e+00> : vector<2x512xf32>
    %77 = tpu.matmul %76, %0, %cst_22 {dimension_numbers = #tpu.dot_dimension_numbers<[1], [0], [0], [1], [0, 0, 1, 1], [], []>} : vector<2x128xbf16>, vector<128x512xbf16>, vector<2x512xf32> -> vector<2x512xf32>
    %78 = arith.addf %75, %77 : vector<2x512xf32>
    %79 = vector.extract_strided_slice %78 {offsets = [0, 0], sizes = [2, 128], strides = [1, 1]} : vector<2x512xf32> to vector<2x128xf32>
    %80 = arith.negf %79 : vector<2x128xf32>
    %81 = math.exp %80 : vector<2x128xf32>
    %cst_23 = arith.constant 1.000000e+00 : f32
    %82 = vector.broadcast %cst_23 : f32 to vector<2x128xf32>
    %83 = arith.addf %82, %81 : vector<2x128xf32>
    %84 = arith.divf %82, %83 : vector<2x128xf32>
    %85 = vector.extract_strided_slice %78 {offsets = [0, 128], sizes = [2, 128], strides = [1, 1]} : vector<2x512xf32> to vector<2x128xf32>
    %86 = arith.negf %85 : vector<2x128xf32>
    %87 = math.exp %86 : vector<2x128xf32>
    %cst_24 = arith.constant 1.000000e+00 : f32
    %88 = vector.broadcast %cst_24 : f32 to vector<2x128xf32>
    %89 = arith.addf %88, %87 : vector<2x128xf32>
    %90 = arith.divf %88, %89 : vector<2x128xf32>
    %91 = vector.extract_strided_slice %78 {offsets = [0, 256], sizes = [2, 128], strides = [1, 1]} : vector<2x512xf32> to vector<2x128xf32>
    %92 = math.tanh %91 : vector<2x128xf32>
    %93 = vector.extract_strided_slice %78 {offsets = [0, 384], sizes = [2, 128], strides = [1, 1]} : vector<2x512xf32> to vector<2x128xf32>
    %94 = arith.negf %93 : vector<2x128xf32>
    %95 = math.exp %94 : vector<2x128xf32>
    %cst_25 = arith.constant 1.000000e+00 : f32
    %96 = vector.broadcast %cst_25 : f32 to vector<2x128xf32>
    %97 = arith.addf %96, %95 : vector<2x128xf32>
    %98 = arith.divf %96, %97 : vector<2x128xf32>
    %99 = arith.mulf %90, %66 : vector<2x128xf32>
    %100 = arith.mulf %84, %92 : vector<2x128xf32>
    %101 = arith.addf %99, %100 : vector<2x128xf32>
    %102 = math.tanh %101 : vector<2x128xf32>
    %103 = arith.mulf %98, %102 : vector<2x128xf32>
    %104 = arith.index_cast %c2_i32 : i32 to index
    %c0_26 = arith.constant 0 : index
    %c0_27 = arith.constant 0 : index
    %105 = vector.load %arg5[%104, %c0_26, %c0_27] : memref<8x2x128xf32, #tpu.memory_space<vmem>>, vector<1x2x128xf32>
    %106 = vector.shape_cast %105 : vector<1x2x128xf32> to vector<2x128xf32>
    %107 = vector.shape_cast %103 : vector<2x128xf32> to vector<1x2x128xf32>
    tpu.vector_store %arg5[%104, %c0_26, %c0_27], %107 {strides = array<i32>} : memref<8x2x128xf32, #tpu.memory_space<vmem>>, vector<1x2x128xf32>,
    %c3_i32 = arith.constant 3 : i32
    %108 = arith.index_cast %c3_i32 : i32 to index
    %c0_28 = arith.constant 0 : index
    %c0_29 = arith.constant 0 : index
    %109 = vector.load %arg1[%108, %c0_28, %c0_29] : memref<8x2x512xf32, #tpu.memory_space<vmem>>, vector<1x2x512xf32>
    %110 = vector.shape_cast %109 : vector<1x2x512xf32> to vector<2x512xf32>
    %111 = arith.truncf %103 : vector<2x128xf32> to vector<2x128xbf16>
    %cst_30 = arith.constant dense<0.000000e+00> : vector<2x512xf32>
    %112 = tpu.matmul %111, %0, %cst_30 {dimension_numbers = #tpu.dot_dimension_numbers<[1], [0], [0], [1], [0, 0, 1, 1], [], []>} : vector<2x128xbf16>, vector<128x512xbf16>, vector<2x512xf32> -> vector<2x512xf32>
    %113 = arith.addf %110, %112 : vector<2x512xf32>
    %114 = vector.extract_strided_slice %113 {offsets = [0, 0], sizes = [2, 128], strides = [1, 1]} : vector<2x512xf32> to vector<2x128xf32>
    %115 = arith.negf %114 : vector<2x128xf32>
    %116 = math.exp %115 : vector<2x128xf32>
    %cst_31 = arith.constant 1.000000e+00 : f32
    %117 = vector.broadcast %cst_31 : f32 to vector<2x128xf32>
    %118 = arith.addf %117, %116 : vector<2x128xf32>
    %119 = arith.divf %117, %118 : vector<2x128xf32>
    %120 = vector.extract_strided_slice %113 {offsets = [0, 128], sizes = [2, 128], strides = [1, 1]} : vector<2x512xf32> to vector<2x128xf32>
    %121 = arith.negf %120 : vector<2x128xf32>
    %122 = math.exp %121 : vector<2x128xf32>
    %cst_32 = arith.constant 1.000000e+00 : f32
    %123 = vector.broadcast %cst_32 : f32 to vector<2x128xf32>
    %124 = arith.addf %123, %122 : vector<2x128xf32>
    %125 = arith.divf %123, %124 : vector<2x128xf32>
    %126 = vector.extract_strided_slice %113 {offsets = [0, 256], sizes = [2, 128], strides = [1, 1]} : vector<2x512xf32> to vector<2x128xf32>
    %127 = math.tanh %126 : vector<2x128xf32>
    %128 = vector.extract_strided_slice %113 {offsets = [0, 384], sizes = [2, 128], strides = [1, 1]} : vector<2x512xf32> to vector<2x128xf32>
    %129 = arith.negf %128 : vector<2x128xf32>
    %130 = math.exp %129 : vector<2x128xf32>
    %cst_33 = arith.constant 1.000000e+00 : f32
    %131 = vector.broadcast %cst_33 : f32 to vector<2x128xf32>
    %132 = arith.addf %131, %130 : vector<2x128xf32>
    %133 = arith.divf %131, %132 : vector<2x128xf32>
    %134 = arith.mulf %125, %101 : vector<2x128xf32>
    %135 = arith.mulf %119, %127 : vector<2x128xf32>
    %136 = arith.addf %134, %135 : vector<2x128xf32>
    %137 = math.tanh %136 : vector<2x128xf32>
    %138 = arith.mulf %133, %137 : vector<2x128xf32>
    %139 = arith.index_cast %c3_i32 : i32 to index
    %c0_34 = arith.constant 0 : index
    %c0_35 = arith.constant 0 : index
    %140 = vector.load %arg5[%139, %c0_34, %c0_35] : memref<8x2x128xf32, #tpu.memory_space<vmem>>, vector<1x2x128xf32>
    %141 = vector.shape_cast %140 : vector<1x2x128xf32> to vector<2x128xf32>
    %142 = vector.shape_cast %138 : vector<2x128xf32> to vector<1x2x128xf32>
    tpu.vector_store %arg5[%139, %c0_34, %c0_35], %142 {strides = array<i32>} : memref<8x2x128xf32, #tpu.memory_space<vmem>>, vector<1x2x128xf32>,
    %c4_i32 = arith.constant 4 : i32
    %143 = arith.index_cast %c4_i32 : i32 to index
    %c0_36 = arith.constant 0 : index
    %c0_37 = arith.constant 0 : index
    %144 = vector.load %arg1[%143, %c0_36, %c0_37] : memref<8x2x512xf32, #tpu.memory_space<vmem>>, vector<1x2x512xf32>
    %145 = vector.shape_cast %144 : vector<1x2x512xf32> to vector<2x512xf32>
    %146 = arith.truncf %138 : vector<2x128xf32> to vector<2x128xbf16>
    %cst_38 = arith.constant dense<0.000000e+00> : vector<2x512xf32>
    %147 = tpu.matmul %146, %0, %cst_38 {dimension_numbers = #tpu.dot_dimension_numbers<[1], [0], [0], [1], [0, 0, 1, 1], [], []>} : vector<2x128xbf16>, vector<128x512xbf16>, vector<2x512xf32> -> vector<2x512xf32>
    %148 = arith.addf %145, %147 : vector<2x512xf32>
    %149 = vector.extract_strided_slice %148 {offsets = [0, 0], sizes = [2, 128], strides = [1, 1]} : vector<2x512xf32> to vector<2x128xf32>
    %150 = arith.negf %149 : vector<2x128xf32>
    %151 = math.exp %150 : vector<2x128xf32>
    %cst_39 = arith.constant 1.000000e+00 : f32
    %152 = vector.broadcast %cst_39 : f32 to vector<2x128xf32>
    %153 = arith.addf %152, %151 : vector<2x128xf32>
    %154 = arith.divf %152, %153 : vector<2x128xf32>
    %155 = vector.extract_strided_slice %148 {offsets = [0, 128], sizes = [2, 128], strides = [1, 1]} : vector<2x512xf32> to vector<2x128xf32>
    %156 = arith.negf %155 : vector<2x128xf32>
    %157 = math.exp %156 : vector<2x128xf32>
    %cst_40 = arith.constant 1.000000e+00 : f32
    %158 = vector.broadcast %cst_40 : f32 to vector<2x128xf32>
    %159 = arith.addf %158, %157 : vector<2x128xf32>
    %160 = arith.divf %158, %159 : vector<2x128xf32>
    %161 = vector.extract_strided_slice %148 {offsets = [0, 256], sizes = [2, 128], strides = [1, 1]} : vector<2x512xf32> to vector<2x128xf32>
    %162 = math.tanh %161 : vector<2x128xf32>
    %163 = vector.extract_strided_slice %148 {offsets = [0, 384], sizes = [2, 128], strides = [1, 1]} : vector<2x512xf32> to vector<2x128xf32>
    %164 = arith.negf %163 : vector<2x128xf32>
    %165 = math.exp %164 : vector<2x128xf32>
    %cst_41 = arith.constant 1.000000e+00 : f32
    %166 = vector.broadcast %cst_41 : f32 to vector<2x128xf32>
    %167 = arith.addf %166, %165 : vector<2x128xf32>
    %168 = arith.divf %166, %167 : vector<2x128xf32>
    %169 = arith.mulf %160, %136 : vector<2x128xf32>
    %170 = arith.mulf %154, %162 : vector<2x128xf32>
    %171 = arith.addf %169, %170 : vector<2x128xf32>
    %172 = math.tanh %171 : vector<2x128xf32>
    %173 = arith.mulf %168, %172 : vector<2x128xf32>
    %174 = arith.index_cast %c4_i32 : i32 to index
    %c0_42 = arith.constant 0 : index
    %c0_43 = arith.constant 0 : index
    %175 = vector.load %arg5[%174, %c0_42, %c0_43] : memref<8x2x128xf32, #tpu.memory_space<vmem>>, vector<1x2x128xf32>
    %176 = vector.shape_cast %175 : vector<1x2x128xf32> to vector<2x128xf32>
    %177 = vector.shape_cast %173 : vector<2x128xf32> to vector<1x2x128xf32>
    tpu.vector_store %arg5[%174, %c0_42, %c0_43], %177 {strides = array<i32>} : memref<8x2x128xf32, #tpu.memory_space<vmem>>, vector<1x2x128xf32>,
    %c5_i32 = arith.constant 5 : i32
    %178 = arith.index_cast %c5_i32 : i32 to index
    %c0_44 = arith.constant 0 : index
    %c0_45 = arith.constant 0 : index
    %179 = vector.load %arg1[%178, %c0_44, %c0_45] : memref<8x2x512xf32, #tpu.memory_space<vmem>>, vector<1x2x512xf32>
    %180 = vector.shape_cast %179 : vector<1x2x512xf32> to vector<2x512xf32>
    %181 = arith.truncf %173 : vector<2x128xf32> to vector<2x128xbf16>
    %cst_46 = arith.constant dense<0.000000e+00> : vector<2x512xf32>
    %182 = tpu.matmul %181, %0, %cst_46 {dimension_numbers = #tpu.dot_dimension_numbers<[1], [0], [0], [1], [0, 0, 1, 1], [], []>} : vector<2x128xbf16>, vector<128x512xbf16>, vector<2x512xf32> -> vector<2x512xf32>
    %183 = arith.addf %180, %182 : vector<2x512xf32>
    %184 = vector.extract_strided_slice %183 {offsets = [0, 0], sizes = [2, 128], strides = [1, 1]} : vector<2x512xf32> to vector<2x128xf32>
    %185 = arith.negf %184 : vector<2x128xf32>
    %186 = math.exp %185 : vector<2x128xf32>
    %cst_47 = arith.constant 1.000000e+00 : f32
    %187 = vector.broadcast %cst_47 : f32 to vector<2x128xf32>
    %188 = arith.addf %187, %186 : vector<2x128xf32>
    %189 = arith.divf %187, %188 : vector<2x128xf32>
    %190 = vector.extract_strided_slice %183 {offsets = [0, 128], sizes = [2, 128], strides = [1, 1]} : vector<2x512xf32> to vector<2x128xf32>
    %191 = arith.negf %190 : vector<2x128xf32>
    %192 = math.exp %191 : vector<2x128xf32>
    %cst_48 = arith.constant 1.000000e+00 : f32
    %193 = vector.broadcast %cst_48 : f32 to vector<2x128xf32>
    %194 = arith.addf %193, %192 : vector<2x128xf32>
    %195 = arith.divf %193, %194 : vector<2x128xf32>
    %196 = vector.extract_strided_slice %183 {offsets = [0, 256], sizes = [2, 128], strides = [1, 1]} : vector<2x512xf32> to vector<2x128xf32>
    %197 = math.tanh %196 : vector<2x128xf32>
    %198 = vector.extract_strided_slice %183 {offsets = [0, 384], sizes = [2, 128], strides = [1, 1]} : vector<2x512xf32> to vector<2x128xf32>
    %199 = arith.negf %198 : vector<2x128xf32>
    %200 = math.exp %199 : vector<2x128xf32>
    %cst_49 = arith.constant 1.000000e+00 : f32
    %201 = vector.broadcast %cst_49 : f32 to vector<2x128xf32>
    %202 = arith.addf %201, %200 : vector<2x128xf32>
    %203 = arith.divf %201, %202 : vector<2x128xf32>
    %204 = arith.mulf %195, %171 : vector<2x128xf32>
    %205 = arith.mulf %189, %197 : vector<2x128xf32>
    %206 = arith.addf %204, %205 : vector<2x128xf32>
    %207 = math.tanh %206 : vector<2x128xf32>
    %208 = arith.mulf %203, %207 : vector<2x128xf32>
    %209 = arith.index_cast %c5_i32 : i32 to index
    %c0_50 = arith.constant 0 : index
    %c0_51 = arith.constant 0 : index
    %210 = vector.load %arg5[%209, %c0_50, %c0_51] : memref<8x2x128xf32, #tpu.memory_space<vmem>>, vector<1x2x128xf32>
    %211 = vector.shape_cast %210 : vector<1x2x128xf32> to vector<2x128xf32>
    %212 = vector.shape_cast %208 : vector<2x128xf32> to vector<1x2x128xf32>
    tpu.vector_store %arg5[%209, %c0_50, %c0_51], %212 {strides = array<i32>} : memref<8x2x128xf32, #tpu.memory_space<vmem>>, vector<1x2x128xf32>,
    %c6_i32 = arith.constant 6 : i32
    %213 = arith.index_cast %c6_i32 : i32 to index
    %c0_52 = arith.constant 0 : index
    %c0_53 = arith.constant 0 : index
    %214 = vector.load %arg1[%213, %c0_52, %c0_53] : memref<8x2x512xf32, #tpu.memory_space<vmem>>, vector<1x2x512xf32>
    %215 = vector.shape_cast %214 : vector<1x2x512xf32> to vector<2x512xf32>
    %216 = arith.truncf %208 : vector<2x128xf32> to vector<2x128xbf16>
    %cst_54 = arith.constant dense<0.000000e+00> : vector<2x512xf32>
    %217 = tpu.matmul %216, %0, %cst_54 {dimension_numbers = #tpu.dot_dimension_numbers<[1], [0], [0], [1], [0, 0, 1, 1], [], []>} : vector<2x128xbf16>, vector<128x512xbf16>, vector<2x512xf32> -> vector<2x512xf32>
    %218 = arith.addf %215, %217 : vector<2x512xf32>
    %219 = vector.extract_strided_slice %218 {offsets = [0, 0], sizes = [2, 128], strides = [1, 1]} : vector<2x512xf32> to vector<2x128xf32>
    %220 = arith.negf %219 : vector<2x128xf32>
    %221 = math.exp %220 : vector<2x128xf32>
    %cst_55 = arith.constant 1.000000e+00 : f32
    %222 = vector.broadcast %cst_55 : f32 to vector<2x128xf32>
    %223 = arith.addf %222, %221 : vector<2x128xf32>
    %224 = arith.divf %222, %223 : vector<2x128xf32>
    %225 = vector.extract_strided_slice %218 {offsets = [0, 128], sizes = [2, 128], strides = [1, 1]} : vector<2x512xf32> to vector<2x128xf32>
    %226 = arith.negf %225 : vector<2x128xf32>
    %227 = math.exp %226 : vector<2x128xf32>
    %cst_56 = arith.constant 1.000000e+00 : f32
    %228 = vector.broadcast %cst_56 : f32 to vector<2x128xf32>
    %229 = arith.addf %228, %227 : vector<2x128xf32>
    %230 = arith.divf %228, %229 : vector<2x128xf32>
    %231 = vector.extract_strided_slice %218 {offsets = [0, 256], sizes = [2, 128], strides = [1, 1]} : vector<2x512xf32> to vector<2x128xf32>
    %232 = math.tanh %231 : vector<2x128xf32>
    %233 = vector.extract_strided_slice %218 {offsets = [0, 384], sizes = [2, 128], strides = [1, 1]} : vector<2x512xf32> to vector<2x128xf32>
    %234 = arith.negf %233 : vector<2x128xf32>
    %235 = math.exp %234 : vector<2x128xf32>
    %cst_57 = arith.constant 1.000000e+00 : f32
    %236 = vector.broadcast %cst_57 : f32 to vector<2x128xf32>
    %237 = arith.addf %236, %235 : vector<2x128xf32>
    %238 = arith.divf %236, %237 : vector<2x128xf32>
    %239 = arith.mulf %230, %206 : vector<2x128xf32>
    %240 = arith.mulf %224, %232 : vector<2x128xf32>
    %241 = arith.addf %239, %240 : vector<2x128xf32>
    %242 = math.tanh %241 : vector<2x128xf32>
    %243 = arith.mulf %238, %242 : vector<2x128xf32>
    %244 = arith.index_cast %c6_i32 : i32 to index
    %c0_58 = arith.constant 0 : index
    %c0_59 = arith.constant 0 : index
    %245 = vector.load %arg5[%244, %c0_58, %c0_59] : memref<8x2x128xf32, #tpu.memory_space<vmem>>, vector<1x2x128xf32>
    %246 = vector.shape_cast %245 : vector<1x2x128xf32> to vector<2x128xf32>
    %247 = vector.shape_cast %243 : vector<2x128xf32> to vector<1x2x128xf32>
    tpu.vector_store %arg5[%244, %c0_58, %c0_59], %247 {strides = array<i32>} : memref<8x2x128xf32, #tpu.memory_space<vmem>>, vector<1x2x128xf32>,
    %c7_i32 = arith.constant 7 : i32
    %248 = arith.index_cast %c7_i32 : i32 to index
    %c0_60 = arith.constant 0 : index
    %c0_61 = arith.constant 0 : index
    %249 = vector.load %arg1[%248, %c0_60, %c0_61] : memref<8x2x512xf32, #tpu.memory_space<vmem>>, vector<1x2x512xf32>
    %250 = vector.shape_cast %249 : vector<1x2x512xf32> to vector<2x512xf32>
    %251 = arith.truncf %243 : vector<2x128xf32> to vector<2x128xbf16>
    %cst_62 = arith.constant dense<0.000000e+00> : vector<2x512xf32>
    %252 = tpu.matmul %251, %0, %cst_62 {dimension_numbers = #tpu.dot_dimension_numbers<[1], [0], [0], [1], [0, 0, 1, 1], [], []>} : vector<2x128xbf16>, vector<128x512xbf16>, vector<2x512xf32> -> vector<2x512xf32>
    %253 = arith.addf %250, %252 : vector<2x512xf32>
    %254 = vector.extract_strided_slice %253 {offsets = [0, 0], sizes = [2, 128], strides = [1, 1]} : vector<2x512xf32> to vector<2x128xf32>
    %255 = arith.negf %254 : vector<2x128xf32>
    %256 = math.exp %255 : vector<2x128xf32>
    %cst_63 = arith.constant 1.000000e+00 : f32
    %257 = vector.broadcast %cst_63 : f32 to vector<2x128xf32>
    %258 = arith.addf %257, %256 : vector<2x128xf32>
    %259 = arith.divf %257, %258 : vector<2x128xf32>
    %260 = vector.extract_strided_slice %253 {offsets = [0, 128], sizes = [2, 128], strides = [1, 1]} : vector<2x512xf32> to vector<2x128xf32>
    %261 = arith.negf %260 : vector<2x128xf32>
    %262 = math.exp %261 : vector<2x128xf32>
    %cst_64 = arith.constant 1.000000e+00 : f32
    %263 = vector.broadcast %cst_64 : f32 to vector<2x128xf32>
    %264 = arith.addf %263, %262 : vector<2x128xf32>
    %265 = arith.divf %263, %264 : vector<2x128xf32>
    %266 = vector.extract_strided_slice %253 {offsets = [0, 256], sizes = [2, 128], strides = [1, 1]} : vector<2x512xf32> to vector<2x128xf32>
    %267 = math.tanh %266 : vector<2x128xf32>
    %268 = vector.extract_strided_slice %253 {offsets = [0, 384], sizes = [2, 128], strides = [1, 1]} : vector<2x512xf32> to vector<2x128xf32>
    %269 = arith.negf %268 : vector<2x128xf32>
    %270 = math.exp %269 : vector<2x128xf32>
    %cst_65 = arith.constant 1.000000e+00 : f32
    %271 = vector.broadcast %cst_65 : f32 to vector<2x128xf32>
    %272 = arith.addf %271, %270 : vector<2x128xf32>
    %273 = arith.divf %271, %272 : vector<2x128xf32>
    %274 = arith.mulf %265, %241 : vector<2x128xf32>
    %275 = arith.mulf %259, %267 : vector<2x128xf32>
    %276 = arith.addf %274, %275 : vector<2x128xf32>
    %277 = math.tanh %276 : vector<2x128xf32>
    %278 = arith.mulf %273, %277 : vector<2x128xf32>
    %279 = arith.index_cast %c7_i32 : i32 to index
    %c0_66 = arith.constant 0 : index
    %c0_67 = arith.constant 0 : index
    %280 = vector.load %arg5[%279, %c0_66, %c0_67] : memref<8x2x128xf32, #tpu.memory_space<vmem>>, vector<1x2x128xf32>
    %281 = vector.shape_cast %280 : vector<1x2x128xf32> to vector<2x128xf32>
    %282 = vector.shape_cast %278 : vector<2x128xf32> to vector<1x2x128xf32>
    tpu.vector_store %arg5[%279, %c0_66, %c0_67], %282 {strides = array<i32>} : memref<8x2x128xf32, #tpu.memory_space<vmem>>, vector<1x2x128xf32>,
    %c8_i32 = arith.constant 8 : i32
    %c0_68 = arith.constant 0 : index
    %c0_69 = arith.constant 0 : index
    %283 = vector.load %arg6[%c0_68, %c0_69] : memref<2x128xf32, #tpu.memory_space<vmem>>, vector<2x128xf32>
    tpu.vector_store %arg6[%c0_68, %c0_69], %278 {strides = array<i32>} : memref<2x128xf32, #tpu.memory_space<vmem>>, vector<2x128xf32>,
    %c0_70 = arith.constant 0 : index
    %c0_71 = arith.constant 0 : index
    %284 = vector.load %arg7[%c0_70, %c0_71] : memref<2x128xf32, #tpu.memory_space<vmem>>, vector<2x128xf32>
    tpu.vector_store %arg7[%c0_70, %c0_71], %276 {strides = array<i32>} : memref<2x128xf32, #tpu.memory_space<vmem>>, vector<2x128xf32>,
    return
  }
  func.func @transform_0(%arg0: i32) -> (i32, i32, i32) {
    %c0_i32 = arith.constant 0 : i32
    %c0_i32_0 = arith.constant 0 : i32
    %c0_i32_1 = arith.constant 0 : i32
    %c0_i32_2 = arith.constant 0 : i32
    return %c0_i32, %c0_i32_0, %c0_i32_1 : i32, i32, i32
  }
  func.func @transform_1(%arg0: i32) -> (i32, i32) {
    %c0_i32 = arith.constant 0 : i32
    %c0_i32_0 = arith.constant 0 : i32
    %c0_i32_1 = arith.constant 0 : i32
    return %c0_i32, %c0_i32_0 : i32, i32
  }
  func.func @transform_2(%arg0: i32) -> (i32, i32) {
    %c0_i32 = arith.constant 0 : i32
    %c0_i32_0 = arith.constant 0 : i32
    %c0_i32_1 = arith.constant 0 : i32
    return %c0_i32, %c0_i32_0 : i32, i32
  }
  func.func @transform_3(%arg0: i32) -> (i32, i32) {
    %c0_i32 = arith.constant 0 : i32
    %c0_i32_0 = arith.constant 0 : i32
    %c0_i32_1 = arith.constant 0 : i32
    return %c0_i32, %c0_i32_0 : i32, i32
  }
  func.func @transform_4(%arg0: i32) -> (i32, i32, i32) {
    %c0_i32 = arith.constant 0 : i32
    %c0_i32_0 = arith.constant 0 : i32
    %c0_i32_1 = arith.constant 0 : i32
    %c0_i32_2 = arith.constant 0 : i32
    return %c0_i32, %c0_i32_0, %c0_i32_1 : i32, i32, i32
  }
  func.func @transform_5(%arg0: i32) -> (i32, i32) {
    %c0_i32 = arith.constant 0 : i32
    %c0_i32_0 = arith.constant 0 : i32
    %c0_i32_1 = arith.constant 0 : i32
    return %c0_i32, %c0_i32_0 : i32, i32
  }
  func.func @transform_6(%arg0: i32) -> (i32, i32) {
    %c0_i32 = arith.constant 0 : i32
    %c0_i32_0 = arith.constant 0 : i32
    %c0_i32_1 = arith.constant 0 : i32
    return %c0_i32, %c0_i32_0 : i32, i32
  }
}

module attributes {stable_mosaic.version = 11 : i64} {
  func.func @_attn_kernel(%arg0: i32, %arg1: memref<1x8x128xbf16, #tpu.memory_space<vmem>>, %arg2: memref<1x144x128xbf16, #tpu.memory_space<vmem>>, %arg3: memref<1x1x144xf32, #tpu.memory_space<vmem>>, %arg4: memref<1x8x128xf32, #tpu.memory_space<vmem>>) attributes {dimension_semantics = [#tpu.dimension_semantics<parallel>], iteration_bounds = array<i64: 2>, scalar_prefetch = 0 : i64, scratch_operands = 0 : i64, tpu.core_type = #tpu.core_type<tc>, window_params = [{transform_indices = @transform_0, window_bounds = array<i64: 1, 8, 128>}, {transform_indices = @transform_1, window_bounds = array<i64: 1, 144, 128>}, {transform_indices = @transform_2, window_bounds = array<i64: 1, 1, 144>}, {transform_indices = @transform_3, window_bounds = array<i64: 1, 8, 128>}]} {
    %c0 = arith.constant 0 : index
    %c0_0 = arith.constant 0 : index
    %c0_1 = arith.constant 0 : index
    %0 = vector.load %arg1[%c0, %c0_0, %c0_1] : memref<1x8x128xbf16, #tpu.memory_space<vmem>>, vector<1x8x128xbf16>
    %1 = vector.shape_cast %0 : vector<1x8x128xbf16> to vector<8x128xbf16>
    %c0_2 = arith.constant 0 : index
    %c0_3 = arith.constant 0 : index
    %c0_4 = arith.constant 0 : index
    %2 = vector.load %arg2[%c0_2, %c0_3, %c0_4] : memref<1x144x128xbf16, #tpu.memory_space<vmem>>, vector<1x144x128xbf16>
    %3 = vector.shape_cast %2 : vector<1x144x128xbf16> to vector<144x128xbf16>
    %cst = arith.constant dense<0.000000e+00> : vector<8x144xf32>
    %4 = tpu.matmul %1, %3, %cst {dimension_numbers = #tpu.dot_dimension_numbers<[1], [1], [0], [0], [0, 0, 1, 0], [], []>} : vector<8x128xbf16>, vector<144x128xbf16>, vector<8x144xf32> -> vector<8x144xf32>
    %c0_5 = arith.constant 0 : index
    %c0_6 = arith.constant 0 : index
    %c0_7 = arith.constant 0 : index
    %5 = vector.load %arg3[%c0_5, %c0_6, %c0_7] : memref<1x1x144xf32, #tpu.memory_space<vmem>>, vector<1x1x144xf32>
    %6 = vector.shape_cast %5 : vector<1x1x144xf32> to vector<1x144xf32>
    %7 = vector.broadcast %6 : vector<1x144xf32> to vector<8x144xf32>
    %8 = arith.addf %4, %7 : vector<8x144xf32>
    %cst_8 = arith.constant dense<0xFF800000> : vector<8xf32>
    %9 = vector.multi_reduction <maximumf>, %8, %cst_8 [1] : vector<8x144xf32> to vector<8xf32>
    %10 = vector.shape_cast %9 : vector<8xf32> to vector<8x1xf32>
    %11 = vector.broadcast %10 : vector<8x1xf32> to vector<8x144xf32>
    %12 = arith.subf %8, %11 : vector<8x144xf32>
    %13 = math.exp %12 : vector<8x144xf32>
    %cst_9 = arith.constant dense<0.000000e+00> : vector<8xf32>
    %14 = vector.multi_reduction <add>, %13, %cst_9 [1] : vector<8x144xf32> to vector<8xf32>
    %15 = vector.shape_cast %14 : vector<8xf32> to vector<8x1xf32>
    %16 = tpu.reciprocal %15 {approx = true} : vector<8x1xf32> -> vector<8x1xf32>
    %17 = vector.broadcast %16 : vector<8x1xf32> to vector<8x144xf32>
    %18 = arith.mulf %13, %17 : vector<8x144xf32>
    %19 = arith.truncf %18 : vector<8x144xf32> to vector<8x144xbf16>
    %cst_10 = arith.constant dense<0.000000e+00> : vector<8x128xf32>
    %20 = tpu.matmul %19, %3, %cst_10 {dimension_numbers = #tpu.dot_dimension_numbers<[1], [0], [0], [1], [0, 0, 1, 1], [], []>} : vector<8x144xbf16>, vector<144x128xbf16>, vector<8x128xf32> -> vector<8x128xf32>
    %c0_11 = arith.constant 0 : index
    %c0_12 = arith.constant 0 : index
    %c0_13 = arith.constant 0 : index
    %21 = vector.load %arg4[%c0_11, %c0_12, %c0_13] : memref<1x8x128xf32, #tpu.memory_space<vmem>>, vector<1x8x128xf32>
    %22 = vector.shape_cast %21 : vector<1x8x128xf32> to vector<8x128xf32>
    %23 = vector.shape_cast %20 : vector<8x128xf32> to vector<1x8x128xf32>
    tpu.vector_store %arg4[%c0_11, %c0_12, %c0_13], %23 {strides = array<i32>} : memref<1x8x128xf32, #tpu.memory_space<vmem>>, vector<1x8x128xf32>,
    return
  }
  func.func @transform_0(%arg0: i32) -> (i32, i32, i32) {
    %c0_i32 = arith.constant 0 : i32
    %c0_i32_0 = arith.constant 0 : i32
    %c0_i32_1 = arith.constant 0 : i32
    return %arg0, %c0_i32, %c0_i32_0 : i32, i32, i32
  }
  func.func @transform_1(%arg0: i32) -> (i32, i32, i32) {
    %c0_i32 = arith.constant 0 : i32
    %c0_i32_0 = arith.constant 0 : i32
    %c0_i32_1 = arith.constant 0 : i32
    return %arg0, %c0_i32, %c0_i32_0 : i32, i32, i32
  }
  func.func @transform_2(%arg0: i32) -> (i32, i32, i32) {
    %c0_i32 = arith.constant 0 : i32
    %c0_i32_0 = arith.constant 0 : i32
    %c0_i32_1 = arith.constant 0 : i32
    return %arg0, %c0_i32, %c0_i32_0 : i32, i32, i32
  }
  func.func @transform_3(%arg0: i32) -> (i32, i32, i32) {
    %c0_i32 = arith.constant 0 : i32
    %c0_i32_0 = arith.constant 0 : i32
    %c0_i32_1 = arith.constant 0 : i32
    return %arg0, %c0_i32, %c0_i32_0 : i32, i32, i32
  }
}

module attributes {stable_mosaic.version = 11 : i64} {
  func.func @_matmul_act_kernel(%arg0: i32, %arg1: i32, %arg2: memref<16x128xbf16, #tpu.memory_space<vmem>>, %arg3: memref<128x128xbf16, #tpu.memory_space<vmem>>, %arg4: memref<1x128xf32, #tpu.memory_space<vmem>>, %arg5: memref<16x128xf32, #tpu.memory_space<vmem>>) attributes {dimension_semantics = [#tpu.dimension_semantics<parallel>, #tpu.dimension_semantics<parallel>], iteration_bounds = array<i64: 1, 1>, scalar_prefetch = 0 : i64, scratch_operands = 0 : i64, tpu.core_type = #tpu.core_type<tc>, window_params = [{transform_indices = @transform_0, window_bounds = array<i64: 16, 128>}, {transform_indices = @transform_1, window_bounds = array<i64: 128, 128>}, {transform_indices = @transform_2, window_bounds = array<i64: 1, 128>}, {transform_indices = @transform_3, window_bounds = array<i64: 16, 128>}]} {
    %c0 = arith.constant 0 : index
    %c0_0 = arith.constant 0 : index
    %0 = vector.load %arg2[%c0, %c0_0] : memref<16x128xbf16, #tpu.memory_space<vmem>>, vector<16x128xbf16>
    %c0_1 = arith.constant 0 : index
    %c0_2 = arith.constant 0 : index
    %1 = vector.load %arg3[%c0_1, %c0_2] : memref<128x128xbf16, #tpu.memory_space<vmem>>, vector<128x128xbf16>
    %cst = arith.constant dense<0.000000e+00> : vector<16x128xf32>
    %2 = tpu.matmul %0, %1, %cst {dimension_numbers = #tpu.dot_dimension_numbers<[1], [0], [0], [1], [0, 0, 1, 1], [], []>} : vector<16x128xbf16>, vector<128x128xbf16>, vector<16x128xf32> -> vector<16x128xf32>
    %c0_3 = arith.constant 0 : index
    %c0_4 = arith.constant 0 : index
    %3 = vector.load %arg4[%c0_3, %c0_4] : memref<1x128xf32, #tpu.memory_space<vmem>>, vector<1x128xf32>
    %4 = vector.broadcast %3 : vector<1x128xf32> to vector<16x128xf32>
    %5 = arith.addf %2, %4 : vector<16x128xf32>
    %c0_5 = arith.constant 0 : index
    %c0_6 = arith.constant 0 : index
    %6 = vector.load %arg5[%c0_5, %c0_6] : memref<16x128xf32, #tpu.memory_space<vmem>>, vector<16x128xf32>
    tpu.vector_store %arg5[%c0_5, %c0_6], %5 {strides = array<i32>} : memref<16x128xf32, #tpu.memory_space<vmem>>, vector<16x128xf32>,
    return
  }
  func.func @transform_0(%arg0: i32, %arg1: i32) -> (i32, i32) {
    %c0_i32 = arith.constant 0 : i32
    %c0_i32_0 = arith.constant 0 : i32
    return %arg0, %c0_i32 : i32, i32
  }
  func.func @transform_1(%arg0: i32, %arg1: i32) -> (i32, i32) {
    %c0_i32 = arith.constant 0 : i32
    %c0_i32_0 = arith.constant 0 : i32
    return %c0_i32, %arg1 : i32, i32
  }
  func.func @transform_2(%arg0: i32, %arg1: i32) -> (i32, i32) {
    %c0_i32 = arith.constant 0 : i32
    %c0_i32_0 = arith.constant 0 : i32
    return %c0_i32, %arg1 : i32, i32
  }
  func.func @transform_3(%arg0: i32, %arg1: i32) -> (i32, i32) {
    %c0_i32 = arith.constant 0 : i32
    return %arg0, %arg1 : i32, i32
  }
}

module attributes {stable_mosaic.version = 11 : i64} {
  func.func @_matmul_act_kernel(%arg0: i32, %arg1: i32, %arg2: memref<16x256xbf16, #tpu.memory_space<vmem>>, %arg3: memref<256x128xbf16, #tpu.memory_space<vmem>>, %arg4: memref<1x128xf32, #tpu.memory_space<vmem>>, %arg5: memref<16x128xf32, #tpu.memory_space<vmem>>) attributes {dimension_semantics = [#tpu.dimension_semantics<parallel>, #tpu.dimension_semantics<parallel>], iteration_bounds = array<i64: 1, 1>, scalar_prefetch = 0 : i64, scratch_operands = 0 : i64, tpu.core_type = #tpu.core_type<tc>, window_params = [{transform_indices = @transform_0, window_bounds = array<i64: 16, 256>}, {transform_indices = @transform_1, window_bounds = array<i64: 256, 128>}, {transform_indices = @transform_2, window_bounds = array<i64: 1, 128>}, {transform_indices = @transform_3, window_bounds = array<i64: 16, 128>}]} {
    %c0 = arith.constant 0 : index
    %c0_0 = arith.constant 0 : index
    %0 = vector.load %arg2[%c0, %c0_0] : memref<16x256xbf16, #tpu.memory_space<vmem>>, vector<16x256xbf16>
    %c0_1 = arith.constant 0 : index
    %c0_2 = arith.constant 0 : index
    %1 = vector.load %arg3[%c0_1, %c0_2] : memref<256x128xbf16, #tpu.memory_space<vmem>>, vector<256x128xbf16>
    %cst = arith.constant dense<0.000000e+00> : vector<16x128xf32>
    %2 = tpu.matmul %0, %1, %cst {dimension_numbers = #tpu.dot_dimension_numbers<[1], [0], [0], [1], [0, 0, 1, 1], [], []>} : vector<16x256xbf16>, vector<256x128xbf16>, vector<16x128xf32> -> vector<16x128xf32>
    %c0_3 = arith.constant 0 : index
    %c0_4 = arith.constant 0 : index
    %3 = vector.load %arg4[%c0_3, %c0_4] : memref<1x128xf32, #tpu.memory_space<vmem>>, vector<1x128xf32>
    %4 = vector.broadcast %3 : vector<1x128xf32> to vector<16x128xf32>
    %5 = arith.addf %2, %4 : vector<16x128xf32>
    %6 = math.tanh %5 : vector<16x128xf32>
    %c0_5 = arith.constant 0 : index
    %c0_6 = arith.constant 0 : index
    %7 = vector.load %arg5[%c0_5, %c0_6] : memref<16x128xf32, #tpu.memory_space<vmem>>, vector<16x128xf32>
    tpu.vector_store %arg5[%c0_5, %c0_6], %6 {strides = array<i32>} : memref<16x128xf32, #tpu.memory_space<vmem>>, vector<16x128xf32>,
    return
  }
  func.func @transform_0(%arg0: i32, %arg1: i32) -> (i32, i32) {
    %c0_i32 = arith.constant 0 : i32
    %c0_i32_0 = arith.constant 0 : i32
    return %arg0, %c0_i32 : i32, i32
  }
  func.func @transform_1(%arg0: i32, %arg1: i32) -> (i32, i32) {
    %c0_i32 = arith.constant 0 : i32
    %c0_i32_0 = arith.constant 0 : i32
    return %c0_i32, %arg1 : i32, i32
  }
  func.func @transform_2(%arg0: i32, %arg1: i32) -> (i32, i32) {
    %c0_i32 = arith.constant 0 : i32
    %c0_i32_0 = arith.constant 0 : i32
    return %c0_i32, %arg1 : i32, i32
  }
  func.func @transform_3(%arg0: i32, %arg1: i32) -> (i32, i32) {
    %c0_i32 = arith.constant 0 : i32
    return %arg0, %arg1 : i32, i32
  }
}

</mosaic_0001>

<llo_original>
// kernel: pano_speaker_decoder_forward.8
$region0: #{pano_speaker_decoder_forward.8}
  #allocation0 [shape = 'u32[]', space=smem, size = 0x4, offset = 0x4, fixed_abs, tag = 'smem constant byte address 0x4 - core index']
  #allocation1 [shape = 'u32[72,128]{1,0:T(1,128)}', space=vmem, size = 0x9000, scoped, tag = 'internal scratch']
  %s0 = inlined_call_operand.vmem [shape: bf16[16,128], index: 0, kind: input, shape index: {}]
  %s1 = inlined_call_operand.hbm [shape: bf16[128,128], index: 1, kind: input, shape index: {}]
  %s2 = inlined_call_operand.vmem [shape: f32[1,128], index: 2, kind: input, shape index: {}]
  %s3 = inlined_call_operand.vmem [shape: f32[16,128], index: 3, kind: output, shape index: {}]
  %s4 = sld [smem:[#allocation0]]
  $region26: #{pano_speaker_decoder_forward.8} parent=0
    _
  %s6 = ssub.s32 1, %s4
  %s7 = scalar_select 0, %s6, %s4
  $region1: #{pano_speaker_decoder_forward.8} parent=0
    #allocation2 [shape = 'u8[32768]{0}', space=vmem, size = 0x8000, scoped, tag = 'input window, operand 1, single buffered']
    #allocation3 [shape = 's32[1]{0}', space=sflag, size = 0x4, scoped, tag = 'scoped memory for pano_speaker_decoder_forward.8']
    %8 = vsyncpa [#allocation3], 0
    // Predicated region
    $region2: #{pano_speaker_decoder_forward.8} parent=1 // pred_check
      _
    $region3: #{pano_speaker_decoder_forward.8} parent=1 // pred_check_branch
      %10 = sbr.rel (0) target = $region5
    $region4: #{pano_speaker_decoder_forward.8} parent=1 // pred_region
      _
    $region5: #{pano_speaker_decoder_forward.8} parent=1 // pred_fallthru
      _
    // Predicated region
    $region6: #{pano_speaker_decoder_forward.8} parent=1 // pred_check
      _
    $region7: #{pano_speaker_decoder_forward.8} parent=1 // pred_check_branch
      %12 = sbr.rel (0) target = $region9
    $region8: #{pano_speaker_decoder_forward.8} parent=1 // pred_region
      %14 = vsyncadd [#allocation3], 0
      %s15 = sshll.u32 %s1, 4
      %s16 = int_to_ptr.hbm [resolvable:$true] %s15
      %s17 = sshll.u32 [#allocation2], 4
      %s18 = int_to_ptr.vmem [resolvable:$true] %s17
      %23 = dma.hbm_to_vmem [thread:$0]  %s16, 1024, %s18, [#allocation3], 64, 64, 4
    $region9: #{pano_speaker_decoder_forward.8} parent=1 // pred_fallthru
      _
    // Predicated region
    $region10: #{pano_speaker_decoder_forward.8} parent=1 // pred_check
      _
    $region11: #{pano_speaker_decoder_forward.8} parent=1 // pred_check_branch
      %25 = sbr.rel (0) target = $region13
    $region12: #{pano_speaker_decoder_forward.8} parent=1 // pred_region
      _
    $region13: #{pano_speaker_decoder_forward.8} parent=1 // pred_fallthru
      _
    // Predicated region
    $region14: #{pano_speaker_decoder_forward.8} parent=1 // pred_check
      _
    $region15: #{pano_speaker_decoder_forward.8} parent=1 // pred_check_branch
      %27 = sbr.rel (0) target = $region17
    $region16: #{pano_speaker_decoder_forward.8} parent=1 // pred_region
      %29 = dma.done [#allocation3], 1024
    $region17: #{pano_speaker_decoder_forward.8} parent=1 // pred_fallthru
      _
    %v30 = vld [vmem:[%s0] sm:$0xf]
    %v31 = vld [vmem:[%s0 + $0x4] sm:$0xf]
    %v32 = vld [vmem:[#allocation2] sm:$0xf]
    %v33 = vld [vmem:[#allocation2 + $0x4] sm:$0xf]
    %v34 = vld [vmem:[#allocation2 + $0x8] sm:$0xf]
    %v35 = vld [vmem:[#allocation2 + $0xc] sm:$0xf]
    %v36 = vld [vmem:[#allocation2 + $0x10] sm:$0xf]
    %v37 = vld [vmem:[#allocation2 + $0x14] sm:$0xf]
    %v38 = vld [vmem:[#allocation2 + $0x18] sm:$0xf]
    %v39 = vld [vmem:[#allocation2 + $0x1c] sm:$0xf]
    %v40 = vld [vmem:[#allocation2 + $0x20] sm:$0xf]
    %v41 = vld [vmem:[#allocation2 + $0x24] sm:$0xf]
    %v42 = vld [vmem:[#allocation2 + $0x28] sm:$0xf]
    %v43 = vld [vmem:[#allocation2 + $0x2c] sm:$0xf]
    %v44 = vld [vmem:[#allocation2 + $0x30] sm:$0xf]
    %v45 = vld [vmem:[#allocation2 + $0x34] sm:$0xf]
    %v46 = vld [vmem:[#allocation2 + $0x38] sm:$0xf]
    %v47 = vld [vmem:[#allocation2 + $0x3c] sm:$0xf]
    %v48 = vld [vmem:[%s2] sm:$0x1]
    %v50 = vperm.slane %v48, 0
    %v54 = vunpack.c.l.b16 %v30
    %v55 = vunpack.c.l.b16 %v31
    %v56 = vpack.c.b16 %v55, %v54
    %v74 = vunpack.c.l.b16 %v32
    %v75 = vunpack.c.l.b16 %v33
    %v76 = vunpack.c.l.b16 %v34
    %v77 = vunpack.c.l.b16 %v35
    %v78 = vunpack.c.l.b16 %v36
    %v79 = vunpack.c.l.b16 %v37
    %v80 = vunpack.c.l.b16 %v38
    %v81 = vunpack.c.l.b16 %v39
    %v82 = vunpack.c.l.b16 %v40
    %v83 = vunpack.c.l.b16 %v41
    %v84 = vunpack.c.l.b16 %v42
    %v85 = vunpack.c.l.b16 %v43
    %v86 = vunpack.c.l.b16 %v44
    %v87 = vunpack.c.l.b16 %v45
    %v88 = vunpack.c.l.b16 %v46
    %v89 = vunpack.c.l.b16 %v47
    %v90 = vpack.c.b16 %v75, %v74
    %v91 = vpack.c.b16 %v77, %v76
    %v92 = vpack.c.b16 %v79, %v78
    %v93 = vpack.c.b16 %v81, %v80
    %v94 = vpack.c.b16 %v83, %v82
    %v95 = vpack.c.b16 %v85, %v84
    %v96 = vpack.c.b16 %v87, %v86
    %v97 = vpack.c.b16 %v89, %v88
    %106 = vmatpush.bf16.msra.mxu0 %v97
    %107 = vmatpush.bf16.msra.mxu0 %v96
    %108 = vmatpush.bf16.msra.mxu0 %v95
    %109 = vmatpush.bf16.msra.mxu0 %v94
    %110 = vmatpush.bf16.msra.mxu0 %v93
    %111 = vmatpush.bf16.msra.mxu0 %v92
    %112 = vmatpush.bf16.msra.mxu0 %v91
    %113 = vmatpush.bf16.msra.mxu0 %v90
    %114 = vmatmul.bf16.gmra.mxu0 %v56
    %v115 = vpop.f32.mrf.mxu0
    %v116 = vadd.f32 %v50, %v115
    %v117 = vpop.f32.mrf.mxu0
    %v118 = vadd.f32 %v50, %v117
    %119 = vdwg.mxu0
    %120 = vst [vmem:[%s3] sm:$0xff] %v116
    %121 = vst [vmem:[%s3 + $0x8] sm:$0xff] %v118
    // Predicated region
    $region18: #{pano_speaker_decoder_forward.8} parent=1 // pred_check
      _
    $region19: #{pano_speaker_decoder_forward.8} parent=1 // pred_check_branch
      %123 = sbr.rel (0) target = $region21
    $region20: #{pano_speaker_decoder_forward.8} parent=1 // pred_region
      _
    $region21: #{pano_speaker_decoder_forward.8} parent=1 // pred_fallthru
      _
    // Predicated region
    $region22: #{pano_speaker_decoder_forward.8} parent=1 // pred_check
      _
    $region23: #{pano_speaker_decoder_forward.8} parent=1 // pred_check_branch
      %125 = sbr.rel (0) target = $region25
    $region24: #{pano_speaker_decoder_forward.8} parent=1 // pred_region
      _
    $region25: #{pano_speaker_decoder_forward.8} parent=1 // pred_fallthru
      _
    %126 = vsyncpa [#allocation3], 1

// kernel: pano_speaker_decoder_forward.6
$region0: #{pano_speaker_decoder_forward.6}
  #allocation0 [shape = 'u32[]', space=smem, size = 0x4, offset = 0x4, fixed_abs, tag = 'smem constant byte address 0x4 - core index']
  #allocation1 [shape = 'u32[72,128]{1,0:T(1,128)}', space=vmem, size = 0x9000, scoped, tag = 'internal scratch']
  %s0 = inlined_call_operand.vmem [shape: bf16[16,128], index: 0, kind: input, shape index: {}]
  %s1 = inlined_call_operand.hbm [shape: bf16[128,512], index: 1, kind: input, shape index: {}]
  %s2 = inlined_call_operand.vmem [shape: f32[1,512], index: 2, kind: input, shape index: {}]
  %s3 = inlined_call_operand.vmem [shape: f32[16,512], index: 3, kind: output, shape index: {}]
  %s4 = sld [smem:[#allocation0]]
  $region26: #{pano_speaker_decoder_forward.6} parent=0
    _
  %s6 = ssub.s32 1, %s4
  %s7 = scalar_select 0, %s6, %s4
  $region1: #{pano_speaker_decoder_forward.6} parent=0
    #allocation2 [shape = 'u8[131072]{0}', space=vmem, size = 0x20000, scoped, tag = 'input window, operand 1, single buffered']
    #allocation3 [shape = 's32[1]{0}', space=sflag, size = 0x4, scoped, tag = 'scoped memory for pano_speaker_decoder_forward.6']
    %8 = vsyncpa [#allocation3], 0
    // Predicated region
    $region2: #{pano_speaker_decoder_forward.6} parent=1 // pred_check
      _
    $region3: #{pano_speaker_decoder_forward.6} parent=1 // pred_check_branch
      %10 = sbr.rel (0) target = $region5
    $region4: #{pano_speaker_decoder_forward.6} parent=1 // pred_region
      _
    $region5: #{pano_speaker_decoder_forward.6} parent=1 // pred_fallthru
      _
    // Predicated region
    $region6: #{pano_speaker_decoder_forward.6} parent=1 // pred_check
      _
    $region7: #{pano_speaker_decoder_forward.6} parent=1 // pred_check_branch
      %12 = sbr.rel (0) target = $region9
    $region8: #{pano_speaker_decoder_forward.6} parent=1 // pred_region
      %14 = vsyncadd [#allocation3], 0
      %s15 = sshll.u32 %s1, 4
      %s16 = int_to_ptr.hbm [resolvable:$true] %s15
      %s17 = sshll.u32 [#allocation2], 4
      %s18 = int_to_ptr.vmem [resolvable:$true] %s17
      %23 = dma.hbm_to_vmem [thread:$0]  %s16, 4096, %s18, [#allocation3], 256, 256, 16
    $region9: #{pano_speaker_decoder_forward.6} parent=1 // pred_fallthru
      _
    // Predicated region
    $region10: #{pano_speaker_decoder_forward.6} parent=1 // pred_check
      _
    $region11: #{pano_speaker_decoder_forward.6} parent=1 // pred_check_branch
      %25 = sbr.rel (0) target = $region13
    $region12: #{pano_speaker_decoder_forward.6} parent=1 // pred_region
      _
    $region13: #{pano_speaker_decoder_forward.6} parent=1 // pred_fallthru
      _
    // Predicated region
    $region14: #{pano_speaker_decoder_forward.6} parent=1 // pred_check
      _
    $region15: #{pano_speaker_decoder_forward.6} parent=1 // pred_check_branch
      %27 = sbr.rel (0) target = $region17
    $region16: #{pano_speaker_decoder_forward.6} parent=1 // pred_region
      %29 = dma.done [#allocation3], 4096
    $region17: #{pano_speaker_decoder_forward.6} parent=1 // pred_fallthru
      _
    %v30 = vld [vmem:[%s0] sm:$0xf]
    %v31 = vld [vmem:[%s0 + $0x4] sm:$0xf]
    %v32 = vld [vmem:[#allocation2] sm:$0xff]
    %v33 = vld [vmem:[#allocation2 + $0x8] sm:$0xff]
    %v34 = vld [vmem:[#allocation2 + $0x10] sm:$0xff]
    %v35 = vld [vmem:[#allocation2 + $0x18] sm:$0xff]
    %v36 = vld [vmem:[#allocation2 + $0x20] sm:$0xff]
    %v37 = vld [vmem:[#allocation2 + $0x28] sm:$0xff]
    %v38 = vld [vmem:[#allocation2 + $0x30] sm:$0xff]
    %v39 = vld [vmem:[#allocation2 + $0x38] sm:$0xff]
    %v40 = vld [vmem:[#allocation2 + $0x40] sm:$0xff]
    %v41 = vld [vmem:[#allocation2 + $0x48] sm:$0xff]
    %v42 = vld [vmem:[#allocation2 + $0x50] sm:$0xff]
    %v43 = vld [vmem:[#allocation2 + $0x58] sm:$0xff]
    %v44 = vld [vmem:[#allocation2 + $0x60] sm:$0xff]
    %v45 = vld [vmem:[#allocation2 + $0x68] sm:$0xff]
    %v46 = vld [vmem:[#allocation2 + $0x70] sm:$0xff]
    %v47 = vld [vmem:[#allocation2 + $0x78] sm:$0xff]
    %v48 = vld [vmem:[#allocation2 + $0x80] sm:$0xff]
    %v49 = vld [vmem:[#allocation2 + $0x88] sm:$0xff]
    %v50 = vld [vmem:[#allocation2 + $0x90] sm:$0xff]
    %v51 = vld [vmem:[#allocation2 + $0x98] sm:$0xff]
    %v52 = vld [vmem:[#allocation2 + $0xa0] sm:$0xff]
    %v53 = vld [vmem:[#allocation2 + $0xa8] sm:$0xff]
    %v54 = vld [vmem:[#allocation2 + $0xb0] sm:$0xff]
    %v55 = vld [vmem:[#allocation2 + $0xb8] sm:$0xff]
    %v56 = vld [vmem:[#allocation2 + $0xc0] sm:$0xff]
    %v57 = vld [vmem:[#allocation2 + $0xc8] sm:$0xff]
    %v58 = vld [vmem:[#allocation2 + $0xd0] sm:$0xff]
    %v59 = vld [vmem:[#allocation2 + $0xd8] sm:$0xff]
    %v60 = vld [vmem:[#allocation2 + $0xe0] sm:$0xff]
    %v61 = vld [vmem:[#allocation2 + $0xe8] sm:$0xff]
    %v62 = vld [vmem:[#allocation2 + $0xf0] sm:$0xff]
    %v63 = vld [vmem:[#allocation2 + $0xf8] sm:$0xff]
    %v64 = vld [vmem:[%s2] sm:$0xf]
    %v66 = vperm.slane %v64, 0
    %v67 = vperm.slane %v64, 1
    %v68 = vperm.slane %v64, 2
    %v69 = vperm.slane %v64, 3
    %v76 = vunpack.c.l.b16 %v30
    %v77 = vunpack.c.l.b16 %v31
    %v78 = vpack.c.b16 %v77, %v76
    %v112 = vunpack.c.l.b16 %v32
    %v113 = vunpack.c.h.b16 %v32
    %v114 = vunpack.c.l.b16 %v33
    %v115 = vunpack.c.h.b16 %v33
    %v116 = vunpack.c.l.b16 %v34
    %v117 = vunpack.c.h.b16 %v34
    %v118 = vunpack.c.l.b16 %v35
    %v119 = vunpack.c.h.b16 %v35
    %v120 = vunpack.c.l.b16 %v36
    %v121 = vunpack.c.h.b16 %v36
    %v122 = vunpack.c.l.b16 %v37
    %v123 = vunpack.c.h.b16 %v37
    %v124 = vunpack.c.l.b16 %v38
    %v125 = vunpack.c.h.b16 %v38
    %v126 = vunpack.c.l.b16 %v39
    %v127 = vunpack.c.h.b16 %v39
    %v128 = vunpack.c.l.b16 %v40
    %v129 = vunpack.c.h.b16 %v40
    %v130 = vunpack.c.l.b16 %v41
    %v131 = vunpack.c.h.b16 %v41
    %v132 = vunpack.c.l.b16 %v42
    %v133 = vunpack.c.h.b16 %v42
    %v134 = vunpack.c.l.b16 %v43
    %v135 = vunpack.c.h.b16 %v43
    %v136 = vunpack.c.l.b16 %v44
    %v137 = vunpack.c.h.b16 %v44
    %v138 = vunpack.c.l.b16 %v45
    %v139 = vunpack.c.h.b16 %v45
    %v140 = vunpack.c.l.b16 %v46
    %v141 = vunpack.c.h.b16 %v46
    %v142 = vunpack.c.l.b16 %v47
    %v143 = vunpack.c.h.b16 %v47
    %v144 = vunpack.c.l.b16 %v48
    %v145 = vunpack.c.h.b16 %v48
    %v146 = vunpack.c.l.b16 %v49
    %v147 = vunpack.c.h.b16 %v49
    %v148 = vunpack.c.l.b16 %v50
    %v149 = vunpack.c.h.b16 %v50
    %v150 = vunpack.c.l.b16 %v51
    %v151 = vunpack.c.h.b16 %v51
    %v152 = vunpack.c.l.b16 %v52
    %v153 = vunpack.c.h.b16 %v52
    %v154 = vunpack.c.l.b16 %v53
    %v155 = vunpack.c.h.b16 %v53
    %v156 = vunpack.c.l.b16 %v54
    %v157 = vunpack.c.h.b16 %v54
    %v158 = vunpack.c.l.b16 %v55
    %v159 = vunpack.c.h.b16 %v55
    %v160 = vunpack.c.l.b16 %v56
    %v161 = vunpack.c.h.b16 %v56
    %v162 = vunpack.c.l.b16 %v57
    %v163 = vunpack.c.h.b16 %v57
    %v164 = vunpack.c.l.b16 %v58
    %v165 = vunpack.c.h.b16 %v58
    %v166 = vunpack.c.l.b16 %v59
    %v167 = vunpack.c.h.b16 %v59
    %v168 = vunpack.c.l.b16 %v60
    %v169 = vunpack.c.h.b16 %v60
    %v170 = vunpack.c.l.b16 %v61
    %v171 = vunpack.c.h.b16 %v61
    %v172 = vunpack.c.l.b16 %v62
    %v173 = vunpack.c.h.b16 %v62
    %v174 = vunpack.c.l.b16 %v63
    %v175 = vunpack.c.h.b16 %v63
    %v176 = vpack.c.b16 %v116, %v112
    %v177 = vpack.c.b16 %v117, %v113
    %v178 = vpack.c.b16 %v118, %v114
    %v179 = vpack.c.b16 %v119, %v115
    %v180 = vpack.c.b16 %v124, %v120
    %v181 = vpack.c.b16 %v125, %v121
    %v182 = vpack.c.b16 %v126, %v122
    %v183 = vpack.c.b16 %v127, %v123
    %v184 = vpack.c.b16 %v132, %v128
    %v185 = vpack.c.b16 %v133, %v129
    %v186 = vpack.c.b16 %v134, %v130
    %v187 = vpack.c.b16 %v135, %v131
    %v188 = vpack.c.b16 %v140, %v136
    %v189 = vpack.c.b16 %v141, %v137
    %v190 = vpack.c.b16 %v142, %v138
    %v191 = vpack.c.b16 %v143, %v139
    %v192 = vpack.c.b16 %v148, %v144
    %v193 = vpack.c.b16 %v149, %v145
    %v194 = vpack.c.b16 %v150, %v146
    %v195 = vpack.c.b16 %v151, %v147
    %v196 = vpack.c.b16 %v156, %v152
    %v197 = vpack.c.b16 %v157, %v153
    %v198 = vpack.c.b16 %v158, %v154
    %v199 = vpack.c.b16 %v159, %v155
    %v200 = vpack.c.b16 %v164, %v160
    %v201 = vpack.c.b16 %v165, %v161
    %v202 = vpack.c.b16 %v166, %v162
    %v203 = vpack.c.b16 %v167, %v163
    %v204 = vpack.c.b16 %v172, %v168
    %v205 = vpack.c.b16 %v173, %v169
    %v206 = vpack.c.b16 %v174, %v170
    %v207 = vpack.c.b16 %v175, %v171
    %240 = vmatpush.bf16.msra.mxu0 %v204
    %241 = vmatpush.bf16.msra.mxu0 %v200
    %242 = vmatpush.bf16.msra.mxu0 %v196
    %243 = vmatpush.bf16.msra.mxu0 %v192
    %244 = vmatpush.bf16.msra.mxu0 %v188
    %245 = vmatpush.bf16.msra.mxu0 %v184
    %246 = vmatpush.bf16.msra.mxu0 %v180
    %247 = vmatpush.bf16.msra.mxu0 %v176
    %248 = vmatmul.bf16.gmra.mxu0 %v78
    %v249 = vpop.f32.mrf.mxu0
    %v250 = vadd.f32 %v66, %v249
    %v251 = vpop.f32.mrf.mxu0
    %v252 = vadd.f32 %v66, %v251
    %253 = vdwg.mxu0
    %254 = vmatpush.bf16.msra.mxu0 %v205
    %255 = vmatpush.bf16.msra.mxu0 %v201
    %256 = vmatpush.bf16.msra.mxu0 %v197
    %257 = vmatpush.bf16.msra.mxu0 %v193
    %258 = vmatpush.bf16.msra.mxu0 %v189
    %259 = vmatpush.bf16.msra.mxu0 %v185
    %260 = vmatpush.bf16.msra.mxu0 %v181
    %261 = vmatpush.bf16.msra.mxu0 %v177
    %262 = vmatmul.bf16.gmra.mxu0 %v78
    %v263 = vpop.f32.mrf.mxu0
    %v264 = vadd.f32 %v67, %v263
    %v265 = vpop.f32.mrf.mxu0
    %v266 = vadd.f32 %v67, %v265
    %267 = vdwg.mxu0
    %268 = vmatpush.bf16.msra.mxu0 %v206
    %269 = vmatpush.bf16.msra.mxu0 %v202
    %270 = vmatpush.bf16.msra.mxu0 %v198
    %271 = vmatpush.bf16.msra.mxu0 %v194
    %272 = vmatpush.bf16.msra.mxu0 %v190
    %273 = vmatpush.bf16.msra.mxu0 %v186
    %274 = vmatpush.bf16.msra.mxu0 %v182
    %275 = vmatpush.bf16.msra.mxu0 %v178
    %276 = vmatmul.bf16.gmra.mxu0 %v78
    %v277 = vpop.f32.mrf.mxu0
    %v278 = vadd.f32 %v68, %v277
    %v279 = vpop.f32.mrf.mxu0
    %v280 = vadd.f32 %v68, %v279
    %281 = vdwg.mxu0
    %282 = vmatpush.bf16.msra.mxu0 %v207
    %283 = vmatpush.bf16.msra.mxu0 %v203
    %284 = vmatpush.bf16.msra.mxu0 %v199
    %285 = vmatpush.bf16.msra.mxu0 %v195
    %286 = vmatpush.bf16.msra.mxu0 %v191
    %287 = vmatpush.bf16.msra.mxu0 %v187
    %288 = vmatpush.bf16.msra.mxu0 %v183
    %289 = vmatpush.bf16.msra.mxu0 %v179
    %290 = vmatmul.bf16.gmra.mxu0 %v78
    %v291 = vpop.f32.mrf.mxu0
    %v292 = vadd.f32 %v69, %v291
    %v293 = vpop.f32.mrf.mxu0
    %v294 = vadd.f32 %v69, %v293
    %295 = vdwg.mxu0
    %296 = vst [vmem:[%s3] sm:$0xff] %v250
    %297 = vst [vmem:[%s3 + $0x8] sm:$0xff] %v264
    %298 = vst [vmem:[%s3 + $0x10] sm:$0xff] %v278
    %299 = vst [vmem:[%s3 + $0x18] sm:$0xff] %v292
    %300 = vst [vmem:[%s3 + $0x20] sm:$0xff] %v252
    %301 = vst [vmem:[%s3 + $0x28] sm:$0xff] %v266
    %302 = vst [vmem:[%s3 + $0x30] sm:$0xff] %v280
    %303 = vst [vmem:[%s3 + $0x38] sm:$0xff] %v294
    // Predicated region
    $region18: #{pano_speaker_decoder_forward.6} parent=1 // pred_check
      _
    $region19: #{pano_speaker_decoder_forward.6} parent=1 // pred_check_branch
      %305 = sbr.rel (0) target = $region21
    $region20: #{pano_speaker_decoder_forward.6} parent=1 // pred_region
      _
    $region21: #{pano_speaker_decoder_forward.6} parent=1 // pred_fallthru
      _
    // Predicated region
    $region22: #{pano_speaker_decoder_forward.6} parent=1 // pred_check
      _
    $region23: #{pano_speaker_decoder_forward.6} parent=1 // pred_check_branch
      %307 = sbr.rel (0) target = $region25
    $region24: #{pano_speaker_decoder_forward.6} parent=1 // pred_region
      _
    $region25: #{pano_speaker_decoder_forward.6} parent=1 // pred_fallthru
      _
    %308 = vsyncpa [#allocation3], 1

// kernel: pano_speaker_decoder_forward.7
$region0: #{pano_speaker_decoder_forward.7}
  #allocation0 [shape = 'u32[]', space=smem, size = 0x4, offset = 0x4, fixed_abs, tag = 'smem constant byte address 0x4 - core index']
  #allocation1 [shape = 'u32[72,128]{1,0:T(1,128)}', space=vmem, size = 0x9000, scoped, tag = 'internal scratch']
  %s0 = inlined_call_operand.vmem [shape: f32[8,2,512], index: 0, kind: input, shape index: {}]
  %s1 = inlined_call_operand.hbm [shape: bf16[128,512], index: 1, kind: input, shape index: {}]
  %s2 = inlined_call_operand.vmem [shape: f32[2,128], index: 2, kind: input, shape index: {}]
  %s3 = inlined_call_operand.vmem [shape: f32[2,128], index: 3, kind: input, shape index: {}]
  %s4 = inlined_call_operand.vmem [shape: f32[8,2,128], index: 4, kind: output, shape index: {0}]
  %s5 = inlined_call_operand.vmem [shape: f32[2,128], index: 5, kind: output, shape index: {1}]
  %s6 = inlined_call_operand.vmem [shape: f32[2,128], index: 6, kind: output, shape index: {2}]
  %7 = xla_tuple %s4, %s5, %s6
  %s8 = sld [smem:[#allocation0]]
  $region46: #{pano_speaker_decoder_forward.7} parent=0
    _
  %s10 = ssub.s32 1, %s8
  %s11 = scalar_select 0, %s10, %s8
  $region1: #{pano_speaker_decoder_forward.7} parent=0
    #allocation2 [shape = 'u8[131072]{0}', space=vmem, size = 0x20000, scoped, tag = 'input window, operand 1, single buffered']
    #allocation3 [shape = 's32[1]{0}', space=sflag, size = 0x4, scoped, tag = 'scoped memory for pano_speaker_decoder_forward.7']
    %12 = vsyncpa [#allocation3], 0
    // Predicated region
    $region2: #{pano_speaker_decoder_forward.7} parent=1 // pred_check
      _
    $region3: #{pano_speaker_decoder_forward.7} parent=1 // pred_check_branch
      %14 = sbr.rel (0) target = $region5
    $region4: #{pano_speaker_decoder_forward.7} parent=1 // pred_region
      _
    $region5: #{pano_speaker_decoder_forward.7} parent=1 // pred_fallthru
      _
    // Predicated region
    $region6: #{pano_speaker_decoder_forward.7} parent=1 // pred_check
      _
    $region7: #{pano_speaker_decoder_forward.7} parent=1 // pred_check_branch
      %16 = sbr.rel (0) target = $region9
    $region8: #{pano_speaker_decoder_forward.7} parent=1 // pred_region
      %18 = vsyncadd [#allocation3], 0
      %s19 = sshll.u32 %s1, 4
      %s20 = int_to_ptr.hbm [resolvable:$true] %s19
      %s21 = sshll.u32 [#allocation2], 4
      %s22 = int_to_ptr.vmem [resolvable:$true] %s21
      %27 = dma.hbm_to_vmem [thread:$0]  %s20, 4096, %s22, [#allocation3], 256, 256, 16
    $region9: #{pano_speaker_decoder_forward.7} parent=1 // pred_fallthru
      _
    // Predicated region
    $region10: #{pano_speaker_decoder_forward.7} parent=1 // pred_check
      _
    $region11: #{pano_speaker_decoder_forward.7} parent=1 // pred_check_branch
      %29 = sbr.rel (0) target = $region13
    $region12: #{pano_speaker_decoder_forward.7} parent=1 // pred_region
      _
    $region13: #{pano_speaker_decoder_forward.7} parent=1 // pred_fallthru
      _
    // Predicated region
    $region14: #{pano_speaker_decoder_forward.7} parent=1 // pred_check
      _
    $region15: #{pano_speaker_decoder_forward.7} parent=1 // pred_check_branch
      %31 = sbr.rel (0) target = $region17
    $region16: #{pano_speaker_decoder_forward.7} parent=1 // pred_region
      _
    $region17: #{pano_speaker_decoder_forward.7} parent=1 // pred_fallthru
      _
    // Predicated region
    $region18: #{pano_speaker_decoder_forward.7} parent=1 // pred_check
      _
    $region19: #{pano_speaker_decoder_forward.7} parent=1 // pred_check_branch
      %33 = sbr.rel (0) target = $region21
    $region20: #{pano_speaker_decoder_forward.7} parent=1 // pred_region
      %35 = dma.done [#allocation3], 4096
    $region21: #{pano_speaker_decoder_forward.7} parent=1 // pred_fallthru
      _
    %v36 = vld [vmem:[#allocation2] sm:$0xff]
    %v37 = vld [vmem:[#allocation2 + $0x8] sm:$0xff]
    %v38 = vld [vmem:[#allocation2 + $0x10] sm:$0xff]
    %v39 = vld [vmem:[#allocation2 + $0x18] sm:$0xff]
    %v40 = vld [vmem:[#allocation2 + $0x20] sm:$0xff]
    %v41 = vld [vmem:[#allocation2 + $0x28] sm:$0xff]
    %v42 = vld [vmem:[#allocation2 + $0x30] sm:$0xff]
    %v43 = vld [vmem:[#allocation2 + $0x38] sm:$0xff]
    %v44 = vld [vmem:[#allocation2 + $0x40] sm:$0xff]
    %v45 = vld [vmem:[#allocation2 + $0x48] sm:$0xff]
    %v46 = vld [vmem:[#allocation2 + $0x50] sm:$0xff]
    %v47 = vld [vmem:[#allocation2 + $0x58] sm:$0xff]
    %v48 = vld [vmem:[#allocation2 + $0x60] sm:$0xff]
    %v49 = vld [vmem:[#allocation2 + $0x68] sm:$0xff]
    %v50 = vld [vmem:[#allocation2 + $0x70] sm:$0xff]
    %v51 = vld [vmem:[#allocation2 + $0x78] sm:$0xff]
    %v52 = vld [vmem:[#allocation2 + $0x80] sm:$0xff]
    %v53 = vld [vmem:[#allocation2 + $0x88] sm:$0xff]
    %v54 = vld [vmem:[#allocation2 + $0x90] sm:$0xff]
    %v55 = vld [vmem:[#allocation2 + $0x98] sm:$0xff]
    %v56 = vld [vmem:[#allocation2 + $0xa0] sm:$0xff]
    %v57 = vld [vmem:[#allocation2 + $0xa8] sm:$0xff]
    %v58 = vld [vmem:[#allocation2 + $0xb0] sm:$0xff]
    %v59 = vld [vmem:[#allocation2 + $0xb8] sm:$0xff]
    %v60 = vld [vmem:[#allocation2 + $0xc0] sm:$0xff]
    %v61 = vld [vmem:[#allocation2 + $0xc8] sm:$0xff]
    %v62 = vld [vmem:[#allocation2 + $0xd0] sm:$0xff]
    %v63 = vld [vmem:[#allocation2 + $0xd8] sm:$0xff]
    %v64 = vld [vmem:[#allocation2 + $0xe0] sm:$0xff]
    %v65 = vld [vmem:[#allocation2 + $0xe8] sm:$0xff]
    %v66 = vld [vmem:[#allocation2 + $0xf0] sm:$0xff]
    %v67 = vld [vmem:[#allocation2 + $0xf8] sm:$0xff]
    %v68 = vld [vmem:[%s2] sm:$0x3]
    %v69 = vld [vmem:[%s3] sm:$0x3]
    %v70 = vld [vmem:[%s0] sm:$0xff]
    %v71 = vpack.c.bf16 %v68, %v68
    %v104 = vunpack.c.l.b16 %v36
    %v105 = vunpack.c.h.b16 %v36
    %v106 = vunpack.c.l.b16 %v37
    %v107 = vunpack.c.h.b16 %v37
    %v108 = vunpack.c.l.b16 %v38
    %v109 = vunpack.c.h.b16 %v38
    %v110 = vunpack.c.l.b16 %v39
    %v111 = vunpack.c.h.b16 %v39
    %v112 = vunpack.c.l.b16 %v40
    %v113 = vunpack.c.h.b16 %v40
    %v114 = vunpack.c.l.b16 %v41
    %v115 = vunpack.c.h.b16 %v41
    %v116 = vunpack.c.l.b16 %v42
    %v117 = vunpack.c.h.b16 %v42
    %v118 = vunpack.c.l.b16 %v43
    %v119 = vunpack.c.h.b16 %v43
    %v120 = vunpack.c.l.b16 %v44
    %v121 = vunpack.c.h.b16 %v44
    %v122 = vunpack.c.l.b16 %v45
    %v123 = vunpack.c.h.b16 %v45
    %v124 = vunpack.c.l.b16 %v46
    %v125 = vunpack.c.h.b16 %v46
    %v126 = vunpack.c.l.b16 %v47
    %v127 = vunpack.c.h.b16 %v47
    %v128 = vunpack.c.l.b16 %v48
    %v129 = vunpack.c.h.b16 %v48
    %v130 = vunpack.c.l.b16 %v49
    %v131 = vunpack.c.h.b16 %v49
    %v132 = vunpack.c.l.b16 %v50
    %v133 = vunpack.c.h.b16 %v50
    %v134 = vunpack.c.l.b16 %v51
    %v135 = vunpack.c.h.b16 %v51
    %v136 = vunpack.c.l.b16 %v52
    %v137 = vunpack.c.h.b16 %v52
    %v138 = vunpack.c.l.b16 %v53
    %v139 = vunpack.c.h.b16 %v53
    %v140 = vunpack.c.l.b16 %v54
    %v141 = vunpack.c.h.b16 %v54
    %v142 = vunpack.c.l.b16 %v55
    %v143 = vunpack.c.h.b16 %v55
    %v144 = vunpack.c.l.b16 %v56
    %v145 = vunpack.c.h.b16 %v56
    %v146 = vunpack.c.l.b16 %v57
    %v147 = vunpack.c.h.b16 %v57
    %v148 = vunpack.c.l.b16 %v58
    %v149 = vunpack.c.h.b16 %v58
    %v150 = vunpack.c.l.b16 %v59
    %v151 = vunpack.c.h.b16 %v59
    %v152 = vunpack.c.l.b16 %v60
    %v153 = vunpack.c.h.b16 %v60
    %v154 = vunpack.c.l.b16 %v61
    %v155 = vunpack.c.h.b16 %v61
    %v156 = vunpack.c.l.b16 %v62
    %v157 = vunpack.c.h.b16 %v62
    %v158 = vunpack.c.l.b16 %v63
    %v159 = vunpack.c.h.b16 %v63
    %v160 = vunpack.c.l.b16 %v64
    %v161 = vunpack.c.h.b16 %v64
    %v162 = vunpack.c.l.b16 %v65
    %v163 = vunpack.c.h.b16 %v65
    %v164 = vunpack.c.l.b16 %v66
    %v165 = vunpack.c.h.b16 %v66
    %v166 = vunpack.c.l.b16 %v67
    %v167 = vunpack.c.h.b16 %v67
    %v168 = vpack.c.b16 %v108, %v104
    %v169 = vpack.c.b16 %v109, %v105
    %v170 = vpack.c.b16 %v110, %v106
    %v171 = vpack.c.b16 %v111, %v107
    %v172 = vpack.c.b16 %v116, %v112
    %v173 = vpack.c.b16 %v117, %v113
    %v174 = vpack.c.b16 %v118, %v114
    %v175 = vpack.c.b16 %v119, %v115
    %v176 = vpack.c.b16 %v124, %v120
    %v177 = vpack.c.b16 %v125, %v121
    %v178 = vpack.c.b16 %v126, %v122
    %v179 = vpack.c.b16 %v127, %v123
    %v180 = vpack.c.b16 %v132, %v128
    %v181 = vpack.c.b16 %v133, %v129
    %v182 = vpack.c.b16 %v134, %v130
    %v183 = vpack.c.b16 %v135, %v131
    %v184 = vpack.c.b16 %v140, %v136
    %v185 = vpack.c.b16 %v141, %v137
    %v186 = vpack.c.b16 %v142, %v138
    %v187 = vpack.c.b16 %v143, %v139
    %v188 = vpack.c.b16 %v148, %v144
    %v189 = vpack.c.b16 %v149, %v145
    %v190 = vpack.c.b16 %v150, %v146
    %v191 = vpack.c.b16 %v151, %v147
    %v192 = vpack.c.b16 %v156, %v152
    %v193 = vpack.c.b16 %v157, %v153
    %v194 = vpack.c.b16 %v158, %v154
    %v195 = vpack.c.b16 %v159, %v155
    %v196 = vpack.c.b16 %v164, %v160
    %v197 = vpack.c.b16 %v165, %v161
    %v198 = vpack.c.b16 %v166, %v162
    %v199 = vpack.c.b16 %v167, %v163
    %232 = vmatpush.bf16.msra.mxu0 %v196
    %233 = vmatpush.bf16.msra.mxu0 %v192
    %234 = vmatpush.bf16.msra.mxu0 %v188
    %235 = vmatpush.bf16.msra.mxu0 %v184
    %236 = vmatpush.bf16.msra.mxu0 %v180
    %237 = vmatpush.bf16.msra.mxu0 %v176
    %238 = vmatpush.bf16.msra.mxu0 %v172
    %239 = vmatpush.bf16.msra.mxu0 %v168
    %240 = vmatmul.bf16.gmra.mxu0 %v71
    %v241 = vpop.f32.mrf.mxu0
    %v242 = vadd.f32 0.0, %v241
    %v243 = vpop.f32.mrf.mxu0
    %244 = vdwg.mxu0
    %245 = vmatpush.bf16.msra.mxu0 %v197
    %246 = vmatpush.bf16.msra.mxu0 %v193
    %247 = vmatpush.bf16.msra.mxu0 %v189
    %248 = vmatpush.bf16.msra.mxu0 %v185
    %249 = vmatpush.bf16.msra.mxu0 %v181
    %250 = vmatpush.bf16.msra.mxu0 %v177
    %251 = vmatpush.bf16.msra.mxu0 %v173
    %252 = vmatpush.bf16.msra.mxu0 %v169
    %253 = vmatmul.bf16.gmra.mxu0 %v71
    %v254 = vpop.f32.mrf.mxu0
    %v255 = vadd.f32 0.0, %v254
    %v256 = vpop.f32.mrf.mxu0
    %257 = vdwg.mxu0
    %258 = vmatpush.bf16.msra.mxu0 %v198
    %259 = vmatpush.bf16.msra.mxu0 %v194
    %260 = vmatpush.bf16.msra.mxu0 %v190
    %261 = vmatpush.bf16.msra.mxu0 %v186
    %262 = vmatpush.bf16.msra.mxu0 %v182
    %263 = vmatpush.bf16.msra.mxu0 %v178
    %264 = vmatpush.bf16.msra.mxu0 %v174
    %265 = vmatpush.bf16.msra.mxu0 %v170
    %266 = vmatmul.bf16.gmra.mxu0 %v71
    %v267 = vpop.f32.mrf.mxu0
    %v268 = vadd.f32 0.0, %v267
    %v269 = vpop.f32.mrf.mxu0
    %270 = vdwg.mxu0
    %271 = vmatpush.bf16.msra.mxu0 %v199
    %272 = vmatpush.bf16.msra.mxu0 %v195
    %273 = vmatpush.bf16.msra.mxu0 %v191
    %274 = vmatpush.bf16.msra.mxu0 %v187
    %275 = vmatpush.bf16.msra.mxu0 %v183
    %276 = vmatpush.bf16.msra.mxu0 %v179
    %277 = vmatpush.bf16.msra.mxu0 %v175
    %278 = vmatpush.bf16.msra.mxu0 %v171
    %279 = vmatmul.bf16.gmra.mxu0 %v71
    %v280 = vpop.f32.mrf.mxu0
    %v281 = vadd.f32 0.0, %v280
    %v282 = vpop.f32.mrf.mxu0
    %283 = vdwg.mxu0
    %v288 = vrot.slane %v255, 6
    %v289 = vrot.slane %v268, 4
    %v290 = vrot.slane %v281, 2
    %vm291 = vcmask 1041408
    %v292 = vsel %vm291, %v242, %v288
    %vm293 = vcmask 1045508
    %v294 = vsel %vm293, %v289, %v290
    %vm295 = vcmask 1043456
    %v296 = vsel %vm295, %v292, %v294
    %v298 = vadd.f32 %v70, %v296
    %v299 = vxor.u32 %v298, 2147483648
    %v300 = vmul.f32 %v299, 1.442695
    %v301 = vpow.pop %v300
    %v302 = vadd.f32 %v301, 1.0
    %v303 = vrcp.pop %v302
    %v304 = vmul.f32 %v302, %v303
    %v305 = vsub.f32 1.0, %v304
    %v306 = vmul.f32 %v303, %v305
    %v307 = vadd.f32 %v303, %v306
    %vm308 = vweird.f32 %v302
    %vm309 = vweird.f32 %v303
    %vm310 = vmor %vm308, %vm309
    %v311 = vsel %vm310, %v303, %v307
    %v312 = vand.u32 2147483647, %v302
    %vm313 = vcmp.eq.f32.partialorder %v312, 8.507059e+37
    %v314 = vand.u32 %v302, 2147483648
    %v315 = vor.u32 1.1754944e-38, %v314
    %v316 = vsel %vm313, %v315, %v311
    %v317 = vmul.f32 1.0, %v316
    %v319 = vrot.slane %v298, 2
    %v321 = vxor.u32 %v319, 2147483648
    %v322 = vmul.f32 %v321, 1.442695
    %v323 = vpow.pop %v322
    %v324 = vadd.f32 %v323, 1.0
    %v325 = vrcp.pop %v324
    %v326 = vmul.f32 %v324, %v325
    %v327 = vsub.f32 1.0, %v326
    %v328 = vmul.f32 %v325, %v327
    %v329 = vadd.f32 %v325, %v328
    %vm330 = vweird.f32 %v324
    %vm331 = vweird.f32 %v325
    %vm332 = vmor %vm330, %vm331
    %v333 = vsel %vm332, %v325, %v329
    %v334 = vand.u32 2147483647, %v324
    %vm335 = vcmp.eq.f32.partialorder %v334, 8.507059e+37
    %v336 = vand.u32 %v324, 2147483648
    %v337 = vor.u32 1.1754944e-38, %v336
    %v338 = vsel %vm335, %v337, %v333
    %v339 = vmul.f32 1.0, %v338
    %v340 = vrot.slane %v298, 4
    %v342 = vtanh.pop %v340
    %v343 = vrot.slane %v298, 6
    %v345 = vxor.u32 %v343, 2147483648
    %v346 = vmul.f32 %v345, 1.442695
    %v347 = vpow.pop %v346
    %v348 = vadd.f32 %v347, 1.0
    %v349 = vrcp.pop %v348
    %v350 = vmul.f32 %v348, %v349
    %v351 = vsub.f32 1.0, %v350
    %v352 = vmul.f32 %v349, %v351
    %v353 = vadd.f32 %v349, %v352
    %vm354 = vweird.f32 %v348
    %vm355 = vweird.f32 %v349
    %vm356 = vmor %vm354, %vm355
    %v357 = vsel %vm356, %v349, %v353
    %v358 = vand.u32 2147483647, %v348
    %vm359 = vcmp.eq.f32.partialorder %v358, 8.507059e+37
    %v360 = vand.u32 %v348, 2147483648
    %v361 = vor.u32 1.1754944e-38, %v360
    %v362 = vsel %vm359, %v361, %v357
    %v363 = vmul.f32 1.0, %v362
    %v364 = vmul.f32 %v339, %v69
    %v365 = vmul.f32 %v317, %v342
    %v366 = vadd.f32 %v364, %v365
    %v367 = vtanh.pop %v366
    %v368 = vmul.f32 %v363, %v367
    %369 = vst [vmem:[%s4] sm:$0x3] %v368
    %s370 = scalar_lea.vmem %s0, 8
    %v371 = vld [vmem:[%s370] sm:$0xff]
    %v372 = vpack.c.bf16 %v368, %v368
    %373 = vmatpush.bf16.msra.mxu0 %v196
    %374 = vmatpush.bf16.msra.mxu0 %v192
    %375 = vmatpush.bf16.msra.mxu0 %v188
    %376 = vmatpush.bf16.msra.mxu0 %v184
    %377 = vmatpush.bf16.msra.mxu0 %v180
    %378 = vmatpush.bf16.msra.mxu0 %v176
    %379 = vmatpush.bf16.msra.mxu0 %v172
    %380 = vmatpush.bf16.msra.mxu0 %v168
    %381 = vmatmul.bf16.gmra.mxu0 %v372
    %v382 = vpop.f32.mrf.mxu0
    %v383 = vadd.f32 0.0, %v382
    %v384 = vpop.f32.mrf.mxu0
    %385 = vdwg.mxu0
    %386 = vmatpush.bf16.msra.mxu0 %v197
    %387 = vmatpush.bf16.msra.mxu0 %v193
    %388 = vmatpush.bf16.msra.mxu0 %v189
    %389 = vmatpush.bf16.msra.mxu0 %v185
    %390 = vmatpush.bf16.msra.mxu0 %v181
    %391 = vmatpush.bf16.msra.mxu0 %v177
    %392 = vmatpush.bf16.msra.mxu0 %v173
    %393 = vmatpush.bf16.msra.mxu0 %v169
    %394 = vmatmul.bf16.gmra.mxu0 %v372
    %v395 = vpop.f32.mrf.mxu0
    %v396 = vadd.f32 0.0, %v395
    %v397 = vpop.f32.mrf.mxu0
    %398 = vdwg.mxu0
    %399 = vmatpush.bf16.msra.mxu0 %v198
    %400 = vmatpush.bf16.msra.mxu0 %v194
    %401 = vmatpush.bf16.msra.mxu0 %v190
    %402 = vmatpush.bf16.msra.mxu0 %v186
    %403 = vmatpush.bf16.msra.mxu0 %v182
    %404 = vmatpush.bf16.msra.mxu0 %v178
    %405 = vmatpush.bf16.msra.mxu0 %v174
    %406 = vmatpush.bf16.msra.mxu0 %v170
    %407 = vmatmul.bf16.gmra.mxu0 %v372
    %v408 = vpop.f32.mrf.mxu0
    %v409 = vadd.f32 0.0, %v408
    %v410 = vpop.f32.mrf.mxu0
    %411 = vdwg.mxu0
    %412 = vmatpush.bf16.msra.mxu0 %v199
    %413 = vmatpush.bf16.msra.mxu0 %v195
    %414 = vmatpush.bf16.msra.mxu0 %v191
    %415 = vmatpush.bf16.msra.mxu0 %v187
    %416 = vmatpush.bf16.msra.mxu0 %v183
    %417 = vmatpush.bf16.msra.mxu0 %v179
    %418 = vmatpush.bf16.msra.mxu0 %v175
    %419 = vmatpush.bf16.msra.mxu0 %v171
    %420 = vmatmul.bf16.gmra.mxu0 %v372
    %v421 = vpop.f32.mrf.mxu0
    %v422 = vadd.f32 0.0, %v421
    %v423 = vpop.f32.mrf.mxu0
    %424 = vdwg.mxu0
    %v429 = vrot.slane %v396, 6
    %v430 = vrot.slane %v409, 4
    %v431 = vrot.slane %v422, 2
    %v432 = vsel %vm291, %v383, %v429
    %v433 = vsel %vm293, %v430, %v431
    %v434 = vsel %vm295, %v432, %v433
    %v436 = vadd.f32 %v371, %v434
    %v437 = vxor.u32 %v436, 2147483648
    %v438 = vmul.f32 %v437, 1.442695
    %v439 = vpow.pop %v438
    %v440 = vadd.f32 %v439, 1.0
    %v441 = vrcp.pop %v440
    %v442 = vmul.f32 %v440, %v441
    %v443 = vsub.f32 1.0, %v442
    %v444 = vmul.f32 %v441, %v443
    %v445 = vadd.f32 %v441, %v444
    %vm446 = vweird.f32 %v440
    %vm447 = vweird.f32 %v441
    %vm448 = vmor %vm446, %vm447
    %v449 = vsel %vm448, %v441, %v445
    %v450 = vand.u32 2147483647, %v440
    %vm451 = vcmp.eq.f32.partialorder %v450, 8.507059e+37
    %v452 = vand.u32 %v440, 2147483648
    %v453 = vor.u32 1.1754944e-38, %v452
    %v454 = vsel %vm451, %v453, %v449
    %v455 = vmul.f32 1.0, %v454
    %v457 = vrot.slane %v436, 2
    %v459 = vxor.u32 %v457, 2147483648
    %v460 = vmul.f32 %v459, 1.442695
    %v461 = vpow.pop %v460
    %v462 = vadd.f32 %v461, 1.0
    %v463 = vrcp.pop %v462
    %v464 = vmul.f32 %v462, %v463
    %v465 = vsub.f32 1.0, %v464
    %v466 = vmul.f32 %v463, %v465
    %v467 = vadd.f32 %v463, %v466
    %vm468 = vweird.f32 %v462
    %vm469 = vweird.f32 %v463
    %vm470 = vmor %vm468, %vm469
    %v471 = vsel %vm470, %v463, %v467
    %v472 = vand.u32 2147483647, %v462
    %vm473 = vcmp.eq.f32.partialorder %v472, 8.507059e+37
    %v474 = vand.u32 %v462, 2147483648
    %v475 = vor.u32 1.1754944e-38, %v474
    %v476 = vsel %vm473, %v475, %v471
    %v477 = vmul.f32 1.0, %v476
    %v478 = vrot.slane %v436, 4
    %v480 = vtanh.pop %v478
    %v481 = vrot.slane %v436, 6
    %v483 = vxor.u32 %v481, 2147483648
    %v484 = vmul.f32 %v483, 1.442695
    %v485 = vpow.pop %v484
    %v486 = vadd.f32 %v485, 1.0
    %v487 = vrcp.pop %v486
    %v488 = vmul.f32 %v486, %v487
    %v489 = vsub.f32 1.0, %v488
    %v490 = vmul.f32 %v487, %v489
    %v491 = vadd.f32 %v487, %v490
    %vm492 = vweird.f32 %v486
    %vm493 = vweird.f32 %v487
    %vm494 = vmor %vm492, %vm493
    %v495 = vsel %vm494, %v487, %v491
    %v496 = vand.u32 2147483647, %v486
    %vm497 = vcmp.eq.f32.partialorder %v496, 8.507059e+37
    %v498 = vand.u32 %v486, 2147483648
    %v499 = vor.u32 1.1754944e-38, %v498
    %v500 = vsel %vm497, %v499, %v495
    %v501 = vmul.f32 1.0, %v500
    %v502 = vmul.f32 %v477, %v366
    %v503 = vmul.f32 %v455, %v480
    %v504 = vadd.f32 %v502, %v503
    %v505 = vtanh.pop %v504
    %v506 = vmul.f32 %v501, %v505
    %s507 = scalar_lea.vmem %s4, 2
    %508 = vst [vmem:[%s507] sm:$0x3] %v506
    %s509 = scalar_lea.vmem %s0, 16
    %v510 = vld [vmem:[%s509] sm:$0xff]
    %v511 = vpack.c.bf16 %v506, %v506
    %512 = vmatpush.bf16.msra.mxu0 %v196
    %513 = vmatpush.bf16.msra.mxu0 %v192
    %514 = vmatpush.bf16.msra.mxu0 %v188
    %515 = vmatpush.bf16.msra.mxu0 %v184
    %516 = vmatpush.bf16.msra.mxu0 %v180
    %517 = vmatpush.bf16.msra.mxu0 %v176
    %518 = vmatpush.bf16.msra.mxu0 %v172
    %519 = vmatpush.bf16.msra.mxu0 %v168
    %520 = vmatmul.bf16.gmra.mxu0 %v511
    %v521 = vpop.f32.mrf.mxu0
    %v522 = vadd.f32 0.0, %v521
    %v523 = vpop.f32.mrf.mxu0
    %524 = vdwg.mxu0
    %525 = vmatpush.bf16.msra.mxu0 %v197
    %526 = vmatpush.bf16.msra.mxu0 %v193
    %527 = vmatpush.bf16.msra.mxu0 %v189
    %528 = vmatpush.bf16.msra.mxu0 %v185
    %529 = vmatpush.bf16.msra.mxu0 %v181
    %530 = vmatpush.bf16.msra.mxu0 %v177
    %531 = vmatpush.bf16.msra.mxu0 %v173
    %532 = vmatpush.bf16.msra.mxu0 %v169
    %533 = vmatmul.bf16.gmra.mxu0 %v511
    %v534 = vpop.f32.mrf.mxu0
    %v535 = vadd.f32 0.0, %v534
    %v536 = vpop.f32.mrf.mxu0
    %537 = vdwg.mxu0
    %538 = vmatpush.bf16.msra.mxu0 %v198
    %539 = vmatpush.bf16.msra.mxu0 %v194
    %540 = vmatpush.bf16.msra.mxu0 %v190
    %541 = vmatpush.bf16.msra.mxu0 %v186
    %542 = vmatpush.bf16.msra.mxu0 %v182
    %543 = vmatpush.bf16.msra.mxu0 %v178
    %544 = vmatpush.bf16.msra.mxu0 %v174
    %545 = vmatpush.bf16.msra.mxu0 %v170
    %546 = vmatmul.bf16.gmra.mxu0 %v511
    %v547 = vpop.f32.mrf.mxu0
    %v548 = vadd.f32 0.0, %v547
    %v549 = vpop.f32.mrf.mxu0
    %550 = vdwg.mxu0
    %551 = vmatpush.bf16.msra.mxu0 %v199
    %552 = vmatpush.bf16.msra.mxu0 %v195
    %553 = vmatpush.bf16.msra.mxu0 %v191
    %554 = vmatpush.bf16.msra.mxu0 %v187
    %555 = vmatpush.bf16.msra.mxu0 %v183
    %556 = vmatpush.bf16.msra.mxu0 %v179
    %557 = vmatpush.bf16.msra.mxu0 %v175
    %558 = vmatpush.bf16.msra.mxu0 %v171
    %559 = vmatmul.bf16.gmra.mxu0 %v511
    %v560 = vpop.f32.mrf.mxu0
    %v561 = vadd.f32 0.0, %v560
    %v562 = vpop.f32.mrf.mxu0
    %563 = vdwg.mxu0
    %v568 = vrot.slane %v535, 6
    %v569 = vrot.slane %v548, 4
    %v570 = vrot.slane %v561, 2
    %v571 = vsel %vm291, %v522, %v568
    %v572 = vsel %vm293, %v569, %v570
    %v573 = vsel %vm295, %v571, %v572
    %v575 = vadd.f32 %v510, %v573
    %v576 = vxor.u32 %v575, 2147483648
    %v577 = vmul.f32 %v576, 1.442695
    %v578 = vpow.pop %v577
    %v579 = vadd.f32 %v578, 1.0
    %v580 = vrcp.pop %v579
    %v581 = vmul.f32 %v579, %v580
    %v582 = vsub.f32 1.0, %v581
    %v583 = vmul.f32 %v580, %v582
    %v584 = vadd.f32 %v580, %v583
    %vm585 = vweird.f32 %v579
    %vm586 = vweird.f32 %v580
    %vm587 = vmor %vm585, %vm586
    %v588 = vsel %vm587, %v580, %v584
    %v589 = vand.u32 2147483647, %v579
    %vm590 = vcmp.eq.f32.partialorder %v589, 8.507059e+37
    %v591 = vand.u32 %v579, 2147483648
    %v592 = vor.u32 1.1754944e-38, %v591
    %v593 = vsel %vm590, %v592, %v588
    %v594 = vmul.f32 1.0, %v593
    %v596 = vrot.slane %v575, 2
    %v598 = vxor.u32 %v596, 2147483648
    %v599 = vmul.f32 %v598, 1.442695
    %v600 = vpow.pop %v599
    %v601 = vadd.f32 %v600, 1.0
    %v602 = vrcp.pop %v601
    %v603 = vmul.f32 %v601, %v602
    %v604 = vsub.f32 1.0, %v603
    %v605 = vmul.f32 %v602, %v604
    %v606 = vadd.f32 %v602, %v605
    %vm607 = vweird.f32 %v601
    %vm608 = vweird.f32 %v602
    %vm609 = vmor %vm607, %vm608
    %v610 = vsel %vm609, %v602, %v606
    %v611 = vand.u32 2147483647, %v601
    %vm612 = vcmp.eq.f32.partialorder %v611, 8.507059e+37
    %v613 = vand.u32 %v601, 2147483648
    %v614 = vor.u32 1.1754944e-38, %v613
    %v615 = vsel %vm612, %v614, %v610
    %v616 = vmul.f32 1.0, %v615
    %v617 = vrot.slane %v575, 4
    %v619 = vtanh.pop %v617
    %v620 = vrot.slane %v575, 6
    %v622 = vxor.u32 %v620, 2147483648
    %v623 = vmul.f32 %v622, 1.442695
    %v624 = vpow.pop %v623
    %v625 = vadd.f32 %v624, 1.0
    %v626 = vrcp.pop %v625
    %v627 = vmul.f32 %v625, %v626
    %v628 = vsub.f32 1.0, %v627
    %v629 = vmul.f32 %v626, %v628
    %v630 = vadd.f32 %v626, %v629
    %vm631 = vweird.f32 %v625
    %vm632 = vweird.f32 %v626
    %vm633 = vmor %vm631, %vm632
    %v634 = vsel %vm633, %v626, %v630
    %v635 = vand.u32 2147483647, %v625
    %vm636 = vcmp.eq.f32.partialorder %v635, 8.507059e+37
    %v637 = vand.u32 %v625, 2147483648
    %v638 = vor.u32 1.1754944e-38, %v637
    %v639 = vsel %vm636, %v638, %v634
    %v640 = vmul.f32 1.0, %v639
    %v641 = vmul.f32 %v616, %v504
    %v642 = vmul.f32 %v594, %v619
    %v643 = vadd.f32 %v641, %v642
    %v644 = vtanh.pop %v643
    %v645 = vmul.f32 %v640, %v644
    %s646 = scalar_lea.vmem %s4, 4
    %647 = vst [vmem:[%s646] sm:$0x3] %v645
    %s648 = scalar_lea.vmem %s0, 24
    %v649 = vld [vmem:[%s648] sm:$0xff]
    %v650 = vpack.c.bf16 %v645, %v645
    %651 = vmatpush.bf16.msra.mxu0 %v196
    %652 = vmatpush.bf16.msra.mxu0 %v192
    %653 = vmatpush.bf16.msra.mxu0 %v188
    %654 = vmatpush.bf16.msra.mxu0 %v184
    %655 = vmatpush.bf16.msra.mxu0 %v180
    %656 = vmatpush.bf16.msra.mxu0 %v176
    %657 = vmatpush.bf16.msra.mxu0 %v172
    %658 = vmatpush.bf16.msra.mxu0 %v168
    %659 = vmatmul.bf16.gmra.mxu0 %v650
    %v660 = vpop.f32.mrf.mxu0
    %v661 = vadd.f32 0.0, %v660
    %v662 = vpop.f32.mrf.mxu0
    %663 = vdwg.mxu0
    %664 = vmatpush.bf16.msra.mxu0 %v197
    %665 = vmatpush.bf16.msra.mxu0 %v193
    %666 = vmatpush.bf16.msra.mxu0 %v189
    %667 = vmatpush.bf16.msra.mxu0 %v185
    %668 = vmatpush.bf16.msra.mxu0 %v181
    %669 = vmatpush.bf16.msra.mxu0 %v177
    %670 = vmatpush.bf16.msra.mxu0 %v173
    %671 = vmatpush.bf16.msra.mxu0 %v169
    %672 = vmatmul.bf16.gmra.mxu0 %v650
    %v673 = vpop.f32.mrf.mxu0
    %v674 = vadd.f32 0.0, %v673
    %v675 = vpop.f32.mrf.mxu0
    %676 = vdwg.mxu0
    %677 = vmatpush.bf16.msra.mxu0 %v198
    %678 = vmatpush.bf16.msra.mxu0 %v194
    %679 = vmatpush.bf16.msra.mxu0 %v190
    %680 = vmatpush.bf16.msra.mxu0 %v186
    %681 = vmatpush.bf16.msra.mxu0 %v182
    %682 = vmatpush.bf16.msra.mxu0 %v178
    %683 = vmatpush.bf16.msra.mxu0 %v174
    %684 = vmatpush.bf16.msra.mxu0 %v170
    %685 = vmatmul.bf16.gmra.mxu0 %v650
    %v686 = vpop.f32.mrf.mxu0
    %v687 = vadd.f32 0.0, %v686
    %v688 = vpop.f32.mrf.mxu0
    %689 = vdwg.mxu0
    %690 = vmatpush.bf16.msra.mxu0 %v199
    %691 = vmatpush.bf16.msra.mxu0 %v195
    %692 = vmatpush.bf16.msra.mxu0 %v191
    %693 = vmatpush.bf16.msra.mxu0 %v187
    %694 = vmatpush.bf16.msra.mxu0 %v183
    %695 = vmatpush.bf16.msra.mxu0 %v179
    %696 = vmatpush.bf16.msra.mxu0 %v175
    %697 = vmatpush.bf16.msra.mxu0 %v171
    %698 = vmatmul.bf16.gmra.mxu0 %v650
    %v699 = vpop.f32.mrf.mxu0
    %v700 = vadd.f32 0.0, %v699
    %v701 = vpop.f32.mrf.mxu0
    %702 = vdwg.mxu0
    %v707 = vrot.slane %v674, 6
    %v708 = vrot.slane %v687, 4
    %v709 = vrot.slane %v700, 2
    %v710 = vsel %vm291, %v661, %v707
    %v711 = vsel %vm293, %v708, %v709
    %v712 = vsel %vm295, %v710, %v711
    %v714 = vadd.f32 %v649, %v712
    %v715 = vxor.u32 %v714, 2147483648
    %v716 = vmul.f32 %v715, 1.442695
    %v717 = vpow.pop %v716
    %v718 = vadd.f32 %v717, 1.0
    %v719 = vrcp.pop %v718
    %v720 = vmul.f32 %v718, %v719
    %v721 = vsub.f32 1.0, %v720
    %v722 = vmul.f32 %v719, %v721
    %v723 = vadd.f32 %v719, %v722
    %vm724 = vweird.f32 %v718
    %vm725 = vweird.f32 %v719
    %vm726 = vmor %vm724, %vm725
    %v727 = vsel %vm726, %v719, %v723
    %v728 = vand.u32 2147483647, %v718
    %vm729 = vcmp.eq.f32.partialorder %v728, 8.507059e+37
    %v730 = vand.u32 %v718, 2147483648
    %v731 = vor.u32 1.1754944e-38, %v730
    %v732 = vsel %vm729, %v731, %v727
    %v733 = vmul.f32 1.0, %v732
    %v735 = vrot.slane %v714, 2
    %v737 = vxor.u32 %v735, 2147483648
    %v738 = vmul.f32 %v737, 1.442695
    %v739 = vpow.pop %v738
    %v740 = vadd.f32 %v739, 1.0
    %v741 = vrcp.pop %v740
    %v742 = vmul.f32 %v740, %v741
    %v743 = vsub.f32 1.0, %v742
    %v744 = vmul.f32 %v741, %v743
    %v745 = vadd.f32 %v741, %v744
    %vm746 = vweird.f32 %v740
    %vm747 = vweird.f32 %v741
    %vm748 = vmor %vm746, %vm747
    %v749 = vsel %vm748, %v741, %v745
    %v750 = vand.u32 2147483647, %v740
    %vm751 = vcmp.eq.f32.partialorder %v750, 8.507059e+37
    %v752 = vand.u32 %v740, 2147483648
    %v753 = vor.u32 1.1754944e-38, %v752
    %v754 = vsel %vm751, %v753, %v749
    %v755 = vmul.f32 1.0, %v754
    %v756 = vrot.slane %v714, 4
    %v758 = vtanh.pop %v756
    %v759 = vrot.slane %v714, 6
    %v761 = vxor.u32 %v759, 2147483648
    %v762 = vmul.f32 %v761, 1.442695
    %v763 = vpow.pop %v762
    %v764 = vadd.f32 %v763, 1.0
    %v765 = vrcp.pop %v764
    %v766 = vmul.f32 %v764, %v765
    %v767 = vsub.f32 1.0, %v766
    %v768 = vmul.f32 %v765, %v767
    %v769 = vadd.f32 %v765, %v768
    %vm770 = vweird.f32 %v764
    %vm771 = vweird.f32 %v765
    %vm772 = vmor %vm770, %vm771
    %v773 = vsel %vm772, %v765, %v769
    %v774 = vand.u32 2147483647, %v764
    %vm775 = vcmp.eq.f32.partialorder %v774, 8.507059e+37
    %v776 = vand.u32 %v764, 2147483648
    %v777 = vor.u32 1.1754944e-38, %v776
    %v778 = vsel %vm775, %v777, %v773
    %v779 = vmul.f32 1.0, %v778
    %v780 = vmul.f32 %v755, %v643
    %v781 = vmul.f32 %v733, %v758
    %v782 = vadd.f32 %v780, %v781
    %v783 = vtanh.pop %v782
    %v784 = vmul.f32 %v779, %v783
    %s785 = scalar_lea.vmem %s4, 6
    %786 = vst [vmem:[%s785] sm:$0x3] %v784
    %s787 = scalar_lea.vmem %s0, 32
    %v788 = vld [vmem:[%s787] sm:$0xff]
    %v789 = vpack.c.bf16 %v784, %v784
    %790 = vmatpush.bf16.msra.mxu0 %v196
    %791 = vmatpush.bf16.msra.mxu0 %v192
    %792 = vmatpush.bf16.msra.mxu0 %v188
    %793 = vmatpush.bf16.msra.mxu0 %v184
    %794 = vmatpush.bf16.msra.mxu0 %v180
    %795 = vmatpush.bf16.msra.mxu0 %v176
    %796 = vmatpush.bf16.msra.mxu0 %v172
    %797 = vmatpush.bf16.msra.mxu0 %v168
    %798 = vmatmul.bf16.gmra.mxu0 %v789
    %v799 = vpop.f32.mrf.mxu0
    %v800 = vadd.f32 0.0, %v799
    %v801 = vpop.f32.mrf.mxu0
    %802 = vdwg.mxu0
    %803 = vmatpush.bf16.msra.mxu0 %v197
    %804 = vmatpush.bf16.msra.mxu0 %v193
    %805 = vmatpush.bf16.msra.mxu0 %v189
    %806 = vmatpush.bf16.msra.mxu0 %v185
    %807 = vmatpush.bf16.msra.mxu0 %v181
    %808 = vmatpush.bf16.msra.mxu0 %v177
    %809 = vmatpush.bf16.msra.mxu0 %v173
    %810 = vmatpush.bf16.msra.mxu0 %v169
    %811 = vmatmul.bf16.gmra.mxu0 %v789
    %v812 = vpop.f32.mrf.mxu0
    %v813 = vadd.f32 0.0, %v812
    %v814 = vpop.f32.mrf.mxu0
    %815 = vdwg.mxu0
    %816 = vmatpush.bf16.msra.mxu0 %v198
    %817 = vmatpush.bf16.msra.mxu0 %v194
    %818 = vmatpush.bf16.msra.mxu0 %v190
    %819 = vmatpush.bf16.msra.mxu0 %v186
    %820 = vmatpush.bf16.msra.mxu0 %v182
    %821 = vmatpush.bf16.msra.mxu0 %v178
    %822 = vmatpush.bf16.msra.mxu0 %v174
    %823 = vmatpush.bf16.msra.mxu0 %v170
    %824 = vmatmul.bf16.gmra.mxu0 %v789
    %v825 = vpop.f32.mrf.mxu0
    %v826 = vadd.f32 0.0, %v825
    %v827 = vpop.f32.mrf.mxu0
    %828 = vdwg.mxu0
    %829 = vmatpush.bf16.msra.mxu0 %v199
    %830 = vmatpush.bf16.msra.mxu0 %v195
    %831 = vmatpush.bf16.msra.mxu0 %v191
    %832 = vmatpush.bf16.msra.mxu0 %v187
    %833 = vmatpush.bf16.msra.mxu0 %v183
    %834 = vmatpush.bf16.msra.mxu0 %v179
    %835 = vmatpush.bf16.msra.mxu0 %v175
    %836 = vmatpush.bf16.msra.mxu0 %v171
    %837 = vmatmul.bf16.gmra.mxu0 %v789
    %v838 = vpop.f32.mrf.mxu0
    %v839 = vadd.f32 0.0, %v838
    %v840 = vpop.f32.mrf.mxu0
    %841 = vdwg.mxu0
    %v846 = vrot.slane %v813, 6
    %v847 = vrot.slane %v826, 4
    %v848 = vrot.slane %v839, 2
    %v849 = vsel %vm291, %v800, %v846
    %v850 = vsel %vm293, %v847, %v848
    %v851 = vsel %vm295, %v849, %v850
    %v853 = vadd.f32 %v788, %v851
    %v854 = vxor.u32 %v853, 2147483648
    %v855 = vmul.f32 %v854, 1.442695
    %v856 = vpow.pop %v855
    %v857 = vadd.f32 %v856, 1.0
    %v858 = vrcp.pop %v857
    %v859 = vmul.f32 %v857, %v858
    %v860 = vsub.f32 1.0, %v859
    %v861 = vmul.f32 %v858, %v860
    %v862 = vadd.f32 %v858, %v861
    %vm863 = vweird.f32 %v857
    %vm864 = vweird.f32 %v858
    %vm865 = vmor %vm863, %vm864
    %v866 = vsel %vm865, %v858, %v862
    %v867 = vand.u32 2147483647, %v857
    %vm868 = vcmp.eq.f32.partialorder %v867, 8.507059e+37
    %v869 = vand.u32 %v857, 2147483648
    %v870 = vor.u32 1.1754944e-38, %v869
    %v871 = vsel %vm868, %v870, %v866
    %v872 = vmul.f32 1.0, %v871
    %v874 = vrot.slane %v853, 2
    %v876 = vxor.u32 %v874, 2147483648
    %v877 = vmul.f32 %v876, 1.442695
    %v878 = vpow.pop %v877
    %v879 = vadd.f32 %v878, 1.0
    %v880 = vrcp.pop %v879
    %v881 = vmul.f32 %v879, %v880
    %v882 = vsub.f32 1.0, %v881
    %v883 = vmul.f32 %v880, %v882
    %v884 = vadd.f32 %v880, %v883
    %vm885 = vweird.f32 %v879
    %vm886 = vweird.f32 %v880
    %vm887 = vmor %vm885, %vm886
    %v888 = vsel %vm887, %v880, %v884
    %v889 = vand.u32 2147483647, %v879
    %vm890 = vcmp.eq.f32.partialorder %v889, 8.507059e+37
    %v891 = vand.u32 %v879, 2147483648
    %v892 = vor.u32 1.1754944e-38, %v891
    %v893 = vsel %vm890, %v892, %v888
    %v894 = vmul.f32 1.0, %v893
    %v895 = vrot.slane %v853, 4
    %v897 = vtanh.pop %v895
    %v898 = vrot.slane %v853, 6
    %v900 = vxor.u32 %v898, 2147483648
    %v901 = vmul.f32 %v900, 1.442695
    %v902 = vpow.pop %v901
    %v903 = vadd.f32 %v902, 1.0
    %v904 = vrcp.pop %v903
    %v905 = vmul.f32 %v903, %v904
    %v906 = vsub.f32 1.0, %v905
    %v907 = vmul.f32 %v904, %v906
    %v908 = vadd.f32 %v904, %v907
    %vm909 = vweird.f32 %v903
    %vm910 = vweird.f32 %v904
    %vm911 = vmor %vm909, %vm910
    %v912 = vsel %vm911, %v904, %v908
    %v913 = vand.u32 2147483647, %v903
    %vm914 = vcmp.eq.f32.partialorder %v913, 8.507059e+37
    %v915 = vand.u32 %v903, 2147483648
    %v916 = vor.u32 1.1754944e-38, %v915
    %v917 = vsel %vm914, %v916, %v912
    %v918 = vmul.f32 1.0, %v917
    %v919 = vmul.f32 %v894, %v782
    %v920 = vmul.f32 %v872, %v897
    %v921 = vadd.f32 %v919, %v920
    %v922 = vtanh.pop %v921
    %v923 = vmul.f32 %v918, %v922
    %s924 = scalar_lea.vmem %s4, 8
    %925 = vst [vmem:[%s924] sm:$0x3] %v923
    %s926 = scalar_lea.vmem %s0, 40
    %v927 = vld [vmem:[%s926] sm:$0xff]
    %v928 = vpack.c.bf16 %v923, %v923
    %929 = vmatpush.bf16.msra.mxu0 %v196
    %930 = vmatpush.bf16.msra.mxu0 %v192
    %931 = vmatpush.bf16.msra.mxu0 %v188
    %932 = vmatpush.bf16.msra.mxu0 %v184
    %933 = vmatpush.bf16.msra.mxu0 %v180
    %934 = vmatpush.bf16.msra.mxu0 %v176
    %935 = vmatpush.bf16.msra.mxu0 %v172
    %936 = vmatpush.bf16.msra.mxu0 %v168
    %937 = vmatmul.bf16.gmra.mxu0 %v928
    %v938 = vpop.f32.mrf.mxu0
    %v939 = vadd.f32 0.0, %v938
    %v940 = vpop.f32.mrf.mxu0
    %941 = vdwg.mxu0
    %942 = vmatpush.bf16.msra.mxu0 %v197
    %943 = vmatpush.bf16.msra.mxu0 %v193
    %944 = vmatpush.bf16.msra.mxu0 %v189
    %945 = vmatpush.bf16.msra.mxu0 %v185
    %946 = vmatpush.bf16.msra.mxu0 %v181
    %947 = vmatpush.bf16.msra.mxu0 %v177
    %948 = vmatpush.bf16.msra.mxu0 %v173
    %949 = vmatpush.bf16.msra.mxu0 %v169
    %950 = vmatmul.bf16.gmra.mxu0 %v928
    %v951 = vpop.f32.mrf.mxu0
    %v952 = vadd.f32 0.0, %v951
    %v953 = vpop.f32.mrf.mxu0
    %954 = vdwg.mxu0
    %955 = vmatpush.bf16.msra.mxu0 %v198
    %956 = vmatpush.bf16.msra.mxu0 %v194
    %957 = vmatpush.bf16.msra.mxu0 %v190
    %958 = vmatpush.bf16.msra.mxu0 %v186
    %959 = vmatpush.bf16.msra.mxu0 %v182
    %960 = vmatpush.bf16.msra.mxu0 %v178
    %961 = vmatpush.bf16.msra.mxu0 %v174
    %962 = vmatpush.bf16.msra.mxu0 %v170
    %963 = vmatmul.bf16.gmra.mxu0 %v928
    %v964 = vpop.f32.mrf.mxu0
    %v965 = vadd.f32 0.0, %v964
    %v966 = vpop.f32.mrf.mxu0
    %967 = vdwg.mxu0
    %968 = vmatpush.bf16.msra.mxu0 %v199
    %969 = vmatpush.bf16.msra.mxu0 %v195
    %970 = vmatpush.bf16.msra.mxu0 %v191
    %971 = vmatpush.bf16.msra.mxu0 %v187
    %972 = vmatpush.bf16.msra.mxu0 %v183
    %973 = vmatpush.bf16.msra.mxu0 %v179
    %974 = vmatpush.bf16.msra.mxu0 %v175
    %975 = vmatpush.bf16.msra.mxu0 %v171
    %976 = vmatmul.bf16.gmra.mxu0 %v928
    %v977 = vpop.f32.mrf.mxu0
    %v978 = vadd.f32 0.0, %v977
    %v979 = vpop.f32.mrf.mxu0
    %980 = vdwg.mxu0
    %v985 = vrot.slane %v952, 6
    %v986 = vrot.slane %v965, 4
    %v987 = vrot.slane %v978, 2
    %v988 = vsel %vm291, %v939, %v985
    %v989 = vsel %vm293, %v986, %v987
    %v990 = vsel %vm295, %v988, %v989
    %v992 = vadd.f32 %v927, %v990
    %v993 = vxor.u32 %v992, 2147483648
    %v994 = vmul.f32 %v993, 1.442695
    %v995 = vpow.pop %v994
    %v996 = vadd.f32 %v995, 1.0
    %v997 = vrcp.pop %v996
    %v998 = vmul.f32 %v996, %v997
    %v999 = vsub.f32 1.0, %v998
    %v1000 = vmul.f32 %v997, %v999
    %v1001 = vadd.f32 %v997, %v1000
    %vm1002 = vweird.f32 %v996
    %vm1003 = vweird.f32 %v997
    %vm1004 = vmor %vm1002, %vm1003
    %v1005 = vsel %vm1004, %v997, %v1001
    %v1006 = vand.u32 2147483647, %v996
    %vm1007 = vcmp.eq.f32.partialorder %v1006, 8.507059e+37
    %v1008 = vand.u32 %v996, 2147483648
    %v1009 = vor.u32 1.1754944e-38, %v1008
    %v1010 = vsel %vm1007, %v1009, %v1005
    %v1011 = vmul.f32 1.0, %v1010
    %v1013 = vrot.slane %v992, 2
    %v1015 = vxor.u32 %v1013, 2147483648
    %v1016 = vmul.f32 %v1015, 1.442695
    %v1017 = vpow.pop %v1016
    %v1018 = vadd.f32 %v1017, 1.0
    %v1019 = vrcp.pop %v1018
    %v1020 = vmul.f32 %v1018, %v1019
    %v1021 = vsub.f32 1.0, %v1020
    %v1022 = vmul.f32 %v1019, %v1021
    %v1023 = vadd.f32 %v1019, %v1022
    %vm1024 = vweird.f32 %v1018
    %vm1025 = vweird.f32 %v1019
    %vm1026 = vmor %vm1024, %vm1025
    %v1027 = vsel %vm1026, %v1019, %v1023
    %v1028 = vand.u32 2147483647, %v1018
    %vm1029 = vcmp.eq.f32.partialorder %v1028, 8.507059e+37
    %v1030 = vand.u32 %v1018, 2147483648
    %v1031 = vor.u32 1.1754944e-38, %v1030
    %v1032 = vsel %vm1029, %v1031, %v1027
    %v1033 = vmul.f32 1.0, %v1032
    %v1034 = vrot.slane %v992, 4
    %v1036 = vtanh.pop %v1034
    %v1037 = vrot.slane %v992, 6
    %v1039 = vxor.u32 %v1037, 2147483648
    %v1040 = vmul.f32 %v1039, 1.442695
    %v1041 = vpow.pop %v1040
    %v1042 = vadd.f32 %v1041, 1.0
    %v1043 = vrcp.pop %v1042
    %v1044 = vmul.f32 %v1042, %v1043
    %v1045 = vsub.f32 1.0, %v1044
    %v1046 = vmul.f32 %v1043, %v1045
    %v1047 = vadd.f32 %v1043, %v1046
    %vm1048 = vweird.f32 %v1042
    %vm1049 = vweird.f32 %v1043
    %vm1050 = vmor %vm1048, %vm1049
    %v1051 = vsel %vm1050, %v1043, %v1047
    %v1052 = vand.u32 2147483647, %v1042
    %vm1053 = vcmp.eq.f32.partialorder %v1052, 8.507059e+37
    %v1054 = vand.u32 %v1042, 2147483648
    %v1055 = vor.u32 1.1754944e-38, %v1054
    %v1056 = vsel %vm1053, %v1055, %v1051
    %v1057 = vmul.f32 1.0, %v1056
    %v1058 = vmul.f32 %v1033, %v921
    %v1059 = vmul.f32 %v1011, %v1036
    %v1060 = vadd.f32 %v1058, %v1059
    %v1061 = vtanh.pop %v1060
    %v1062 = vmul.f32 %v1057, %v1061
    %s1063 = scalar_lea.vmem %s4, 10
    %1064 = vst [vmem:[%s1063] sm:$0x3] %v1062
    %s1065 = scalar_lea.vmem %s0, 48
    %v1066 = vld [vmem:[%s1065] sm:$0xff]
    %v1067 = vpack.c.bf16 %v1062, %v1062
    %1068 = vmatpush.bf16.msra.mxu0 %v196
    %1069 = vmatpush.bf16.msra.mxu0 %v192
    %1070 = vmatpush.bf16.msra.mxu0 %v188
    %1071 = vmatpush.bf16.msra.mxu0 %v184
    %1072 = vmatpush.bf16.msra.mxu0 %v180
    %1073 = vmatpush.bf16.msra.mxu0 %v176
    %1074 = vmatpush.bf16.msra.mxu0 %v172
    %1075 = vmatpush.bf16.msra.mxu0 %v168
    %1076 = vmatmul.bf16.gmra.mxu0 %v1067
    %v1077 = vpop.f32.mrf.mxu0
    %v1078 = vadd.f32 0.0, %v1077
    %v1079 = vpop.f32.mrf.mxu0
    %1080 = vdwg.mxu0
    %1081 = vmatpush.bf16.msra.mxu0 %v197
    %1082 = vmatpush.bf16.msra.mxu0 %v193
    %1083 = vmatpush.bf16.msra.mxu0 %v189
    %1084 = vmatpush.bf16.msra.mxu0 %v185
    %1085 = vmatpush.bf16.msra.mxu0 %v181
    %1086 = vmatpush.bf16.msra.mxu0 %v177
    %1087 = vmatpush.bf16.msra.mxu0 %v173
    %1088 = vmatpush.bf16.msra.mxu0 %v169
    %1089 = vmatmul.bf16.gmra.mxu0 %v1067
    %v1090 = vpop.f32.mrf.mxu0
    %v1091 = vadd.f32 0.0, %v1090
    %v1092 = vpop.f32.mrf.mxu0
    %1093 = vdwg.mxu0
    %1094 = vmatpush.bf16.msra.mxu0 %v198
    %1095 = vmatpush.bf16.msra.mxu0 %v194
    %1096 = vmatpush.bf16.msra.mxu0 %v190
    %1097 = vmatpush.bf16.msra.mxu0 %v186
    %1098 = vmatpush.bf16.msra.mxu0 %v182
    %1099 = vmatpush.bf16.msra.mxu0 %v178
    %1100 = vmatpush.bf16.msra.mxu0 %v174
    %1101 = vmatpush.bf16.msra.mxu0 %v170
    %1102 = vmatmul.bf16.gmra.mxu0 %v1067
    %v1103 = vpop.f32.mrf.mxu0
    %v1104 = vadd.f32 0.0, %v1103
    %v1105 = vpop.f32.mrf.mxu0
    %1106 = vdwg.mxu0
    %1107 = vmatpush.bf16.msra.mxu0 %v199
    %1108 = vmatpush.bf16.msra.mxu0 %v195
    %1109 = vmatpush.bf16.msra.mxu0 %v191
    %1110 = vmatpush.bf16.msra.mxu0 %v187
    %1111 = vmatpush.bf16.msra.mxu0 %v183
    %1112 = vmatpush.bf16.msra.mxu0 %v179
    %1113 = vmatpush.bf16.msra.mxu0 %v175
    %1114 = vmatpush.bf16.msra.mxu0 %v171
    %1115 = vmatmul.bf16.gmra.mxu0 %v1067
    %v1116 = vpop.f32.mrf.mxu0
    %v1117 = vadd.f32 0.0, %v1116
    %v1118 = vpop.f32.mrf.mxu0
    %1119 = vdwg.mxu0
    %v1124 = vrot.slane %v1091, 6
    %v1125 = vrot.slane %v1104, 4
    %v1126 = vrot.slane %v1117, 2
    %v1127 = vsel %vm291, %v1078, %v1124
    %v1128 = vsel %vm293, %v1125, %v1126
    %v1129 = vsel %vm295, %v1127, %v1128
    %v1131 = vadd.f32 %v1066, %v1129
    %v1132 = vxor.u32 %v1131, 2147483648
    %v1133 = vmul.f32 %v1132, 1.442695
    %v1134 = vpow.pop %v1133
    %v1135 = vadd.f32 %v1134, 1.0
    %v1136 = vrcp.pop %v1135
    %v1137 = vmul.f32 %v1135, %v1136
    %v1138 = vsub.f32 1.0, %v1137
    %v1139 = vmul.f32 %v1136, %v1138
    %v1140 = vadd.f32 %v1136, %v1139
    %vm1141 = vweird.f32 %v1135
    %vm1142 = vweird.f32 %v1136
    %vm1143 = vmor %vm1141, %vm1142
    %v1144 = vsel %vm1143, %v1136, %v1140
    %v1145 = vand.u32 2147483647, %v1135
    %vm1146 = vcmp.eq.f32.partialorder %v1145, 8.507059e+37
    %v1147 = vand.u32 %v1135, 2147483648
    %v1148 = vor.u32 1.1754944e-38, %v1147
    %v1149 = vsel %vm1146, %v1148, %v1144
    %v1150 = vmul.f32 1.0, %v1149
    %v1152 = vrot.slane %v1131, 2
    %v1154 = vxor.u32 %v1152, 2147483648
    %v1155 = vmul.f32 %v1154, 1.442695
    %v1156 = vpow.pop %v1155
    %v1157 = vadd.f32 %v1156, 1.0
    %v1158 = vrcp.pop %v1157
    %v1159 = vmul.f32 %v1157, %v1158
    %v1160 = vsub.f32 1.0, %v1159
    %v1161 = vmul.f32 %v1158, %v1160
    %v1162 = vadd.f32 %v1158, %v1161
    %vm1163 = vweird.f32 %v1157
    %vm1164 = vweird.f32 %v1158
    %vm1165 = vmor %vm1163, %vm1164
    %v1166 = vsel %vm1165, %v1158, %v1162
    %v1167 = vand.u32 2147483647, %v1157
    %vm1168 = vcmp.eq.f32.partialorder %v1167, 8.507059e+37
    %v1169 = vand.u32 %v1157, 2147483648
    %v1170 = vor.u32 1.1754944e-38, %v1169
    %v1171 = vsel %vm1168, %v1170, %v1166
    %v1172 = vmul.f32 1.0, %v1171
    %v1173 = vrot.slane %v1131, 4
    %v1175 = vtanh.pop %v1173
    %v1176 = vrot.slane %v1131, 6
    %v1178 = vxor.u32 %v1176, 2147483648
    %v1179 = vmul.f32 %v1178, 1.442695
    %v1180 = vpow.pop %v1179
    %v1181 = vadd.f32 %v1180, 1.0
    %v1182 = vrcp.pop %v1181
    %v1183 = vmul.f32 %v1181, %v1182
    %v1184 = vsub.f32 1.0, %v1183
    %v1185 = vmul.f32 %v1182, %v1184
    %v1186 = vadd.f32 %v1182, %v1185
    %vm1187 = vweird.f32 %v1181
    %vm1188 = vweird.f32 %v1182
    %vm1189 = vmor %vm1187, %vm1188
    %v1190 = vsel %vm1189, %v1182, %v1186
    %v1191 = vand.u32 2147483647, %v1181
    %vm1192 = vcmp.eq.f32.partialorder %v1191, 8.507059e+37
    %v1193 = vand.u32 %v1181, 2147483648
    %v1194 = vor.u32 1.1754944e-38, %v1193
    %v1195 = vsel %vm1192, %v1194, %v1190
    %v1196 = vmul.f32 1.0, %v1195
    %v1197 = vmul.f32 %v1172, %v1060
    %v1198 = vmul.f32 %v1150, %v1175
    %v1199 = vadd.f32 %v1197, %v1198
    %v1200 = vtanh.pop %v1199
    %v1201 = vmul.f32 %v1196, %v1200
    %s1202 = scalar_lea.vmem %s4, 12
    %1203 = vst [vmem:[%s1202] sm:$0x3] %v1201
    %s1204 = scalar_lea.vmem %s0, 56
    %v1205 = vld [vmem:[%s1204] sm:$0xff]
    %v1206 = vpack.c.bf16 %v1201, %v1201
    %1207 = vmatpush.bf16.msra.mxu0 %v196
    %1208 = vmatpush.bf16.msra.mxu0 %v192
    %1209 = vmatpush.bf16.msra.mxu0 %v188
    %1210 = vmatpush.bf16.msra.mxu0 %v184
    %1211 = vmatpush.bf16.msra.mxu0 %v180
    %1212 = vmatpush.bf16.msra.mxu0 %v176
    %1213 = vmatpush.bf16.msra.mxu0 %v172
    %1214 = vmatpush.bf16.msra.mxu0 %v168
    %1215 = vmatmul.bf16.gmra.mxu0 %v1206
    %v1216 = vpop.f32.mrf.mxu0
    %v1217 = vadd.f32 0.0, %v1216
    %v1218 = vpop.f32.mrf.mxu0
    %1219 = vdwg.mxu0
    %1220 = vmatpush.bf16.msra.mxu0 %v197
    %1221 = vmatpush.bf16.msra.mxu0 %v193
    %1222 = vmatpush.bf16.msra.mxu0 %v189
    %1223 = vmatpush.bf16.msra.mxu0 %v185
    %1224 = vmatpush.bf16.msra.mxu0 %v181
    %1225 = vmatpush.bf16.msra.mxu0 %v177
    %1226 = vmatpush.bf16.msra.mxu0 %v173
    %1227 = vmatpush.bf16.msra.mxu0 %v169
    %1228 = vmatmul.bf16.gmra.mxu0 %v1206
    %v1229 = vpop.f32.mrf.mxu0
    %v1230 = vadd.f32 0.0, %v1229
    %v1231 = vpop.f32.mrf.mxu0
    %1232 = vdwg.mxu0
    %1233 = vmatpush.bf16.msra.mxu0 %v198
    %1234 = vmatpush.bf16.msra.mxu0 %v194
    %1235 = vmatpush.bf16.msra.mxu0 %v190
    %1236 = vmatpush.bf16.msra.mxu0 %v186
    %1237 = vmatpush.bf16.msra.mxu0 %v182
    %1238 = vmatpush.bf16.msra.mxu0 %v178
    %1239 = vmatpush.bf16.msra.mxu0 %v174
    %1240 = vmatpush.bf16.msra.mxu0 %v170
    %1241 = vmatmul.bf16.gmra.mxu0 %v1206
    %v1242 = vpop.f32.mrf.mxu0
    %v1243 = vadd.f32 0.0, %v1242
    %v1244 = vpop.f32.mrf.mxu0
    %1245 = vdwg.mxu0
    %1246 = vmatpush.bf16.msra.mxu0 %v199
    %1247 = vmatpush.bf16.msra.mxu0 %v195
    %1248 = vmatpush.bf16.msra.mxu0 %v191
    %1249 = vmatpush.bf16.msra.mxu0 %v187
    %1250 = vmatpush.bf16.msra.mxu0 %v183
    %1251 = vmatpush.bf16.msra.mxu0 %v179
    %1252 = vmatpush.bf16.msra.mxu0 %v175
    %1253 = vmatpush.bf16.msra.mxu0 %v171
    %1254 = vmatmul.bf16.gmra.mxu0 %v1206
    %v1255 = vpop.f32.mrf.mxu0
    %v1256 = vadd.f32 0.0, %v1255
    %v1257 = vpop.f32.mrf.mxu0
    %1258 = vdwg.mxu0
    %v1263 = vrot.slane %v1230, 6
    %v1264 = vrot.slane %v1243, 4
    %v1265 = vrot.slane %v1256, 2
    %v1266 = vsel %vm291, %v1217, %v1263
    %v1267 = vsel %vm293, %v1264, %v1265
    %v1268 = vsel %vm295, %v1266, %v1267
    %v1270 = vadd.f32 %v1205, %v1268
    %v1271 = vxor.u32 %v1270, 2147483648
    %v1272 = vmul.f32 %v1271, 1.442695
    %v1273 = vpow.pop %v1272
    %v1274 = vadd.f32 %v1273, 1.0
    %v1275 = vrcp.pop %v1274
    %v1276 = vmul.f32 %v1274, %v1275
    %v1277 = vsub.f32 1.0, %v1276
    %v1278 = vmul.f32 %v1275, %v1277
    %v1279 = vadd.f32 %v1275, %v1278
    %vm1280 = vweird.f32 %v1274
    %vm1281 = vweird.f32 %v1275
    %vm1282 = vmor %vm1280, %vm1281
    %v1283 = vsel %vm1282, %v1275, %v1279
    %v1284 = vand.u32 2147483647, %v1274
    %vm1285 = vcmp.eq.f32.partialorder %v1284, 8.507059e+37
    %v1286 = vand.u32 %v1274, 2147483648
    %v1287 = vor.u32 1.1754944e-38, %v1286
    %v1288 = vsel %vm1285, %v1287, %v1283
    %v1289 = vmul.f32 1.0, %v1288
    %v1291 = vrot.slane %v1270, 2
    %v1293 = vxor.u32 %v1291, 2147483648
    %v1294 = vmul.f32 %v1293, 1.442695
    %v1295 = vpow.pop %v1294
    %v1296 = vadd.f32 %v1295, 1.0
    %v1297 = vrcp.pop %v1296
    %v1298 = vmul.f32 %v1296, %v1297
    %v1299 = vsub.f32 1.0, %v1298
    %v1300 = vmul.f32 %v1297, %v1299
    %v1301 = vadd.f32 %v1297, %v1300
    %vm1302 = vweird.f32 %v1296
    %vm1303 = vweird.f32 %v1297
    %vm1304 = vmor %vm1302, %vm1303
    %v1305 = vsel %vm1304, %v1297, %v1301
    %v1306 = vand.u32 2147483647, %v1296
    %vm1307 = vcmp.eq.f32.partialorder %v1306, 8.507059e+37
    %v1308 = vand.u32 %v1296, 2147483648
    %v1309 = vor.u32 1.1754944e-38, %v1308
    %v1310 = vsel %vm1307, %v1309, %v1305
    %v1311 = vmul.f32 1.0, %v1310
    %v1312 = vrot.slane %v1270, 4
    %v1314 = vtanh.pop %v1312
    %v1315 = vrot.slane %v1270, 6
    %v1317 = vxor.u32 %v1315, 2147483648
    %v1318 = vmul.f32 %v1317, 1.442695
    %v1319 = vpow.pop %v1318
    %v1320 = vadd.f32 %v1319, 1.0
    %v1321 = vrcp.pop %v1320
    %v1322 = vmul.f32 %v1320, %v1321
    %v1323 = vsub.f32 1.0, %v1322
    %v1324 = vmul.f32 %v1321, %v1323
    %v1325 = vadd.f32 %v1321, %v1324
    %vm1326 = vweird.f32 %v1320
    %vm1327 = vweird.f32 %v1321
    %vm1328 = vmor %vm1326, %vm1327
    %v1329 = vsel %vm1328, %v1321, %v1325
    %v1330 = vand.u32 2147483647, %v1320
    %vm1331 = vcmp.eq.f32.partialorder %v1330, 8.507059e+37
    %v1332 = vand.u32 %v1320, 2147483648
    %v1333 = vor.u32 1.1754944e-38, %v1332
    %v1334 = vsel %vm1331, %v1333, %v1329
    %v1335 = vmul.f32 1.0, %v1334
    %v1336 = vmul.f32 %v1311, %v1199
    %v1337 = vmul.f32 %v1289, %v1314
    %v1338 = vadd.f32 %v1336, %v1337
    %v1339 = vtanh.pop %v1338
    %v1340 = vmul.f32 %v1335, %v1339
    %s1341 = scalar_lea.vmem %s4, 14
    %1342 = vst [vmem:[%s1341] sm:$0x3] %v1340
    %1343 = vst [vmem:[%s5] sm:$0x3] %v1340
    %1344 = vst [vmem:[%s6] sm:$0x3] %v1338
    // Predicated region
    $region22: #{pano_speaker_decoder_forward.7} parent=1 // pred_check
      _
    $region23: #{pano_speaker_decoder_forward.7} parent=1 // pred_check_branch
      %1346 = sbr.rel (0) target = $region25
    $region24: #{pano_speaker_decoder_forward.7} parent=1 // pred_region
      _
    $region25: #{pano_speaker_decoder_forward.7} parent=1 // pred_fallthru
      _
    // Predicated region
    $region26: #{pano_speaker_decoder_forward.7} parent=1 // pred_check
      _
    $region27: #{pano_speaker_decoder_forward.7} parent=1 // pred_check_branch
      %1348 = sbr.rel (0) target = $region29
    $region28: #{pano_speaker_decoder_forward.7} parent=1 // pred_region
      _
    $region29: #{pano_speaker_decoder_forward.7} parent=1 // pred_fallthru
      _
    // Predicated region
    $region30: #{pano_speaker_decoder_forward.7} parent=1 // pred_check
      _
    $region31: #{pano_speaker_decoder_forward.7} parent=1 // pred_check_branch
      %1350 = sbr.rel (0) target = $region33
    $region32: #{pano_speaker_decoder_forward.7} parent=1 // pred_region
      _
    $region33: #{pano_speaker_decoder_forward.7} parent=1 // pred_fallthru
      _
    // Predicated region
    $region34: #{pano_speaker_decoder_forward.7} parent=1 // pred_check
      _
    $region35: #{pano_speaker_decoder_forward.7} parent=1 // pred_check_branch
      %1352 = sbr.rel (0) target = $region37
    $region36: #{pano_speaker_decoder_forward.7} parent=1 // pred_region
      _
    $region37: #{pano_speaker_decoder_forward.7} parent=1 // pred_fallthru
      _
    // Predicated region
    $region38: #{pano_speaker_decoder_forward.7} parent=1 // pred_check
      _
    $region39: #{pano_speaker_decoder_forward.7} parent=1 // pred_check_branch
      %1354 = sbr.rel (0) target = $region41
    $region40: #{pano_speaker_decoder_forward.7} parent=1 // pred_region
      _
    $region41: #{pano_speaker_decoder_forward.7} parent=1 // pred_fallthru
      _
    // Predicated region
    $region42: #{pano_speaker_decoder_forward.7} parent=1 // pred_check
      _
    $region43: #{pano_speaker_decoder_forward.7} parent=1 // pred_check_branch
      %1356 = sbr.rel (0) target = $region45
    $region44: #{pano_speaker_decoder_forward.7} parent=1 // pred_region
      _
    $region45: #{pano_speaker_decoder_forward.7} parent=1 // pred_fallthru
      _
    %1357 = vsyncpa [#allocation3], 1

// kernel: pano_speaker_decoder_forward.9
$region0: #{pano_speaker_decoder_forward.9}
  #allocation0 [shape = 'u32[]', space=smem, size = 0x4, offset = 0x4, fixed_abs, tag = 'smem constant byte address 0x4 - core index']
  #allocation1 [shape = 'u32[72,128]{1,0:T(1,128)}', space=vmem, size = 0x9000, scoped, tag = 'internal scratch']
  %s0 = inlined_call_operand.vmem [shape: bf16[2,8,128], index: 0, kind: input, shape index: {}]
  %s1 = inlined_call_operand.vmem [shape: bf16[2,144,128], index: 1, kind: input, shape index: {}]
  %s2 = inlined_call_operand.vmem [shape: f32[2,1,144], index: 2, kind: input, shape index: {}]
  %s3 = inlined_call_operand.vmem [shape: f32[2,8,128], index: 3, kind: output, shape index: {}]
  %s4 = sld [smem:[#allocation0]]
  $region45: #{pano_speaker_decoder_forward.9} parent=0
    _
  %s6 = ssub.s32 1, %s4
  %s7 = scalar_select 0, %s6, %s4
  loop: start=0, step=1, limit=4
  $region2: #{pano_speaker_decoder_forward.9} parent=0 // loop_pre_header
    _
  $region3: #{pano_speaker_decoder_forward.9} parent=0 // loop_header
    %s9 = sphi 0, %s13
    %p10 = scmp.ge.s32.totalorder %s9, 4
    %s19 = sphi 0, %s21
    %s22 = sphi 0, %s19
    %s23 = sphi 0, %s22
    %s39 = sphi 0, %s23
    %s45 = sphi 0, %s47
    %s48 = sphi 0, %s45
    %s49 = sphi 0, %s48
    %s65 = sphi 0, %s49
    %s71 = sphi 0, %s73
    %s74 = sphi 0, %s71
    %s75 = sphi 0, %s74
    %s91 = sphi 0, %s75
    %s97 = sphi 0, %s99
    %s100 = sphi 0, %s97
    %s101 = sphi 0, %s100
    %s117 = sphi 0, %s101
  $region4: #{pano_speaker_decoder_forward.9} parent=0 // loop_header_branch
    %12 = sbr.rel (%p10) target = $region8
  $region5: #{pano_speaker_decoder_forward.9} parent=0 // loop_body
    %s14 = ssub.s32 %s9, 1
    %s15 = ssub.s32 %s9, 2
    %s16 = sadd.s32 %s9, 1
    %s17 = ssub.s32 %s9, %s16
    %p18 = scmp.eq.s32.totalorder %s17, 0
    %s20 = sadd.s32 %s19, 1
    %s21 = scalar_select %p18, %s19, %s20
    %p24 = pneg %p18
    %p25 = scmp.eq.s32.totalorder %s9, 1
    %p26 = por %p24, %p25
    %p27 = scmp.ne.s32.totalorder %s19, %s22
    %p28 = scmp.eq.s32.totalorder %s9, 0
    %p29 = por %p27, %p28
    %p30 = scmp.ne.s32.totalorder %s19, %s22
    %p31 = scmp.eq.s32.totalorder %s14, 1
    %p32 = por %p30, %p31
    %p33 = scmp.ne.s32.totalorder %s22, %s23
    %p34 = scmp.eq.s32.totalorder %s14, 0
    %p35 = por %p33, %p34
    %p36 = scmp.ne.s32.totalorder %s22, %s23
    %p37 = scmp.eq.s32.totalorder %s15, 1
    %p38 = por %p36, %p37
    %p40 = scmp.ne.s32.totalorder %s23, %s39
    %p41 = scmp.eq.s32.totalorder %s15, 0
    %p42 = por %p40, %p41
    %s43 = ssub.s32 %s9, %s16
    %p44 = scmp.eq.s32.totalorder %s43, 0
    %s46 = sadd.s32 %s45, 1
    %s47 = scalar_select %p44, %s45, %s46
    %p50 = pneg %p44
    %p51 = scmp.eq.s32.totalorder %s9, 1
    %p52 = por %p50, %p51
    %p53 = scmp.ne.s32.totalorder %s45, %s48
    %p54 = scmp.eq.s32.totalorder %s9, 0
    %p55 = por %p53, %p54
    %p56 = scmp.ne.s32.totalorder %s45, %s48
    %p57 = scmp.eq.s32.totalorder %s14, 1
    %p58 = por %p56, %p57
    %p59 = scmp.ne.s32.totalorder %s48, %s49
    %p60 = scmp.eq.s32.totalorder %s14, 0
    %p61 = por %p59, %p60
    %p62 = scmp.ne.s32.totalorder %s48, %s49
    %p63 = scmp.eq.s32.totalorder %s15, 1
    %p64 = por %p62, %p63
    %p66 = scmp.ne.s32.totalorder %s49, %s65
    %p67 = scmp.eq.s32.totalorder %s15, 0
    %p68 = por %p66, %p67
    %s69 = ssub.s32 %s9, %s16
    %p70 = scmp.eq.s32.totalorder %s69, 0
    %s72 = sadd.s32 %s71, 1
    %s73 = scalar_select %p70, %s71, %s72
    %p76 = pneg %p70
    %p77 = scmp.eq.s32.totalorder %s9, 1
    %p78 = por %p76, %p77
    %p79 = scmp.ne.s32.totalorder %s71, %s74
    %p80 = scmp.eq.s32.totalorder %s9, 0
    %p81 = por %p79, %p80
    %p82 = scmp.ne.s32.totalorder %s71, %s74
    %p83 = scmp.eq.s32.totalorder %s14, 1
    %p84 = por %p82, %p83
    %p85 = scmp.ne.s32.totalorder %s74, %s75
    %p86 = scmp.eq.s32.totalorder %s14, 0
    %p87 = por %p85, %p86
    %p88 = scmp.ne.s32.totalorder %s74, %s75
    %p89 = scmp.eq.s32.totalorder %s15, 1
    %p90 = por %p88, %p89
    %p92 = scmp.ne.s32.totalorder %s75, %s91
    %p93 = scmp.eq.s32.totalorder %s15, 0
    %p94 = por %p92, %p93
    %s95 = ssub.s32 %s9, %s16
    %p96 = scmp.eq.s32.totalorder %s95, 0
    %s98 = sadd.s32 %s97, 1
    %s99 = scalar_select %p96, %s97, %s98
    %p102 = pneg %p96
    %p103 = scmp.eq.s32.totalorder %s9, 1
    %p104 = por %p102, %p103
    %p105 = scmp.ne.s32.totalorder %s97, %s100
    %p106 = scmp.eq.s32.totalorder %s9, 0
    %p107 = por %p105, %p106
    %p108 = scmp.ne.s32.totalorder %s97, %s100
    %p109 = scmp.eq.s32.totalorder %s14, 1
    %p110 = por %p108, %p109
    %p111 = scmp.ne.s32.totalorder %s100, %s101
    %p112 = scmp.eq.s32.totalorder %s14, 0
    %p113 = por %p111, %p112
    %p114 = scmp.ne.s32.totalorder %s100, %s101
    %p115 = scmp.eq.s32.totalorder %s15, 1
    %p116 = por %p114, %p115
    %p118 = scmp.ne.s32.totalorder %s101, %s117
    %p119 = scmp.eq.s32.totalorder %s15, 0
    %p120 = por %p118, %p119
    %p121 = scmp.le.s32.totalorder 1, %s9
    %p122 = scmp.lt.s32.totalorder %s9, 3
    %p123 = pnand %p121, %p122
    %p124 = pneg %p123
    // Predicated region
    $region9: #{pano_speaker_decoder_forward.9} parent=5 // pred_check
      _
    $region10: #{pano_speaker_decoder_forward.9} parent=5 // pred_check_branch
      %126 = sbr.rel (%p123) target = $region12
    $region11: #{pano_speaker_decoder_forward.9} parent=5 // pred_region
      %s127 = ssub.s32 %s9, 1
    $region12: #{pano_speaker_decoder_forward.9} parent=5 // pred_fallthru
      _
    %p128 = scmp.lt.s32.totalorder %s9, 2
    // Predicated region
    $region13: #{pano_speaker_decoder_forward.9} parent=5 // pred_check
      %p129 = pneg %p128
    $region14: #{pano_speaker_decoder_forward.9} parent=5 // pred_check_branch
      %131 = sbr.rel (%p129) target = $region16
    $region15: #{pano_speaker_decoder_forward.9} parent=5 // pred_region
      // Predicated region
      $region17: #{pano_speaker_decoder_forward.9} parent=15 // pred_check
        %p132 = pneg %p29
      $region18: #{pano_speaker_decoder_forward.9} parent=15 // pred_check_branch
        %134 = sbr.rel (%p132) target = $region20
      $region19: #{pano_speaker_decoder_forward.9} parent=15 // pred_region
        %p135 = scmp.lt.s32.totalorder %s9, 1
        %s136 = scalar_select %p135, %s9, 1
        %s137 = smul.addr %s136, 4
        %s138 = scalar_lea.vmem %s0, %s137
      $region20: #{pano_speaker_decoder_forward.9} parent=15 // pred_fallthru
        _
      // Predicated region
      $region21: #{pano_speaker_decoder_forward.9} parent=15 // pred_check
        %p139 = pneg %p55
      $region22: #{pano_speaker_decoder_forward.9} parent=15 // pred_check_branch
        %141 = sbr.rel (%p139) target = $region24
      $region23: #{pano_speaker_decoder_forward.9} parent=15 // pred_region
        %p142 = scmp.lt.s32.totalorder %s9, 1
        %s143 = scalar_select %p142, %s9, 1
        %s144 = smul.addr %s143, 18
        %s145 = smul.addr %s144, 4
        %s146 = scalar_lea.vmem %s1, %s145
      $region24: #{pano_speaker_decoder_forward.9} parent=15 // pred_fallthru
        _
      // Predicated region
      $region25: #{pano_speaker_decoder_forward.9} parent=15 // pred_check
        %p147 = pneg %p81
      $region26: #{pano_speaker_decoder_forward.9} parent=15 // pred_check_branch
        %149 = sbr.rel (%p147) target = $region28
      $region27: #{pano_speaker_decoder_forward.9} parent=15 // pred_region
        %p150 = scmp.lt.s32.totalorder %s9, 1
        %s151 = scalar_select %p150, %s9, 1
        %s152 = smul.addr %s151, 2
        %s153 = scalar_lea.vmem %s2, %s152
      $region28: #{pano_speaker_decoder_forward.9} parent=15 // pred_fallthru
        _
    $region16: #{pano_speaker_decoder_forward.9} parent=5 // pred_fallthru
      _
    %p154 = scmp.le.s32.totalorder 1, %s9
    %p155 = scmp.lt.s32.totalorder %s9, 3
    %p156 = pnand %p154, %p155
    %p157 = pneg %p156
    // Predicated region
    $region29: #{pano_speaker_decoder_forward.9} parent=5 // pred_check
      _
    $region30: #{pano_speaker_decoder_forward.9} parent=5 // pred_check_branch
      %159 = sbr.rel (%p156) target = $region32
    $region31: #{pano_speaker_decoder_forward.9} parent=5 // pred_region
      %s160 = ssub.s32 %s9, 1
      %p161 = scmp.lt.s32.totalorder %s14, 1
      %s162 = scalar_select %p161, %s14, 1
      %s163 = smul.addr %s162, 4
      %s164 = scalar_lea.vmem %s0, %s163
      %p165 = pneg %p35
      %p166 = pneg %p32
      %p167 = scmp.lt.s32.totalorder %s14, 1
      %s168 = scalar_select %p167, %s14, 1
      %s169 = smul.addr %s168, 18
      %s170 = smul.addr %s169, 4
      %s171 = scalar_lea.vmem %s1, %s170
      %p172 = pneg %p61
      %p173 = pneg %p58
      %p174 = scmp.lt.s32.totalorder %s14, 1
      %s175 = scalar_select %p174, %s14, 1
      %s176 = smul.addr %s175, 2
      %s177 = scalar_lea.vmem %s2, %s176
      %p178 = pneg %p87
      %p179 = pneg %p84
      %p180 = pneg %p113
      %p181 = pneg %p110
      %p182 = scmp.lt.s32.totalorder %s14, 1
      %s183 = scalar_select %p182, %s14, 1
      %s184 = smul.addr %s183, 8
      %s185 = scalar_lea.vmem %s3, %s184
      %p186 = scmp.lt.s32.totalorder %s14, 1
      %s187 = scalar_select %p186, %s14, 1
      %s188 = smul.addr %s187, 4
      %s189 = scalar_lea.vmem %s0, %s188
      %p190 = scmp.lt.s32.totalorder %s14, 1
      %s191 = scalar_select %p190, %s14, 1
      %s192 = smul.addr %s191, 18
      %s193 = smul.addr %s192, 4
      %s194 = scalar_lea.vmem %s1, %s193
      %p195 = scmp.lt.s32.totalorder %s14, 1
      %s196 = scalar_select %p195, %s14, 1
      %s197 = smul.addr %s196, 2
      %s198 = scalar_lea.vmem %s2, %s197
      %p199 = scmp.lt.s32.totalorder %s14, 1
      %s200 = scalar_select %p199, %s14, 1
      %s201 = smul.addr %s200, 8
      %s202 = scalar_lea.vmem %s3, %s201
      %v204 = vld [vmem:[%s189] sm:$0xf]
      %v205 = vld [vmem:[%s194] sm:$0xf]
      %v206 = vld [vmem:[%s194 + $0x4] sm:$0xf]
      %v207 = vld [vmem:[%s194 + $0x8] sm:$0xf]
      %v208 = vld [vmem:[%s194 + $0xc] sm:$0xf]
      %v209 = vld [vmem:[%s194 + $0x10] sm:$0xf]
      %v210 = vld [vmem:[%s194 + $0x14] sm:$0xf]
      %v211 = vld [vmem:[%s194 + $0x18] sm:$0xf]
      %v212 = vld [vmem:[%s194 + $0x1c] sm:$0xf]
      %v213 = vld [vmem:[%s194 + $0x20] sm:$0xf]
      %v214 = vld [vmem:[%s194 + $0x24] sm:$0xf]
      %v215 = vld [vmem:[%s194 + $0x28] sm:$0xf]
      %v216 = vld [vmem:[%s194 + $0x2c] sm:$0xf]
      %v217 = vld [vmem:[%s194 + $0x30] sm:$0xf]
      %v218 = vld [vmem:[%s194 + $0x34] sm:$0xf]
      %v219 = vld [vmem:[%s194 + $0x38] sm:$0xf]
      %v220 = vld [vmem:[%s194 + $0x3c] sm:$0xf]
      %v221 = vld [vmem:[%s194 + $0x40] sm:$0xf]
      %v222 = vld [vmem:[%s194 + $0x44] sm:$0xf]
      %v223 = vld [vmem:[%s198] sm:$0x3]
      %v225 = vperm.slane %v223, 0
      %v226 = vperm.slane %v223, 1
      %v247 = vunpack.c.l.b16 %v205
      %v248 = vunpack.c.l.b16 %v206
      %v249 = vunpack.c.l.b16 %v207
      %v250 = vunpack.c.l.b16 %v208
      %v251 = vunpack.c.l.b16 %v209
      %v252 = vunpack.c.l.b16 %v210
      %v253 = vunpack.c.l.b16 %v211
      %v254 = vunpack.c.l.b16 %v212
      %v255 = vunpack.c.l.b16 %v213
      %v256 = vunpack.c.l.b16 %v214
      %v257 = vunpack.c.l.b16 %v215
      %v258 = vunpack.c.l.b16 %v216
      %v259 = vunpack.c.l.b16 %v217
      %v260 = vunpack.c.l.b16 %v218
      %v261 = vunpack.c.l.b16 %v219
      %v262 = vunpack.c.l.b16 %v220
      %v263 = vunpack.c.l.b16 %v221
      %v264 = vunpack.c.l.b16 %v222
      %v265 = vpack.c.b16 %v248, %v247
      %v266 = vpack.c.b16 %v250, %v249
      %v267 = vpack.c.b16 %v252, %v251
      %v268 = vpack.c.b16 %v254, %v253
      %v269 = vpack.c.b16 %v256, %v255
      %v270 = vpack.c.b16 %v258, %v257
      %v271 = vpack.c.b16 %v260, %v259
      %v272 = vpack.c.b16 %v262, %v261
      %v273 = vpack.c.b16 %v264, %v263
      %283 = vmatpush.bf16.xpose.msra.mxu0 %v272
      %284 = vmatpush.bf16.xpose.msra.mxu0 %v271
      %285 = vmatpush.bf16.xpose.msra.mxu0 %v270
      %286 = vmatpush.bf16.xpose.msra.mxu0 %v269
      %287 = vmatpush.bf16.xpose.msra.mxu0 %v268
      %288 = vmatpush.bf16.xpose.msra.mxu0 %v267
      %289 = vmatpush.bf16.xpose.msra.mxu0 %v266
      %290 = vmatpush.bf16.xpose.msra.mxu0 %v265
      %291 = vmatmul.bf16.gmra.mxu0 %v204
      %v292 = vpop.f32.mrf.mxu0
      %v293 = vadd.f32 %v225, %v292
      %v294 = vpop.f32.mrf.mxu0
      %295 = vdwg.mxu0
      %296 = vmatpush.bf16.xpose.msra.mxu0 0
      %297 = vmatpush.bf16.xpose.msra.mxu0 0
      %298 = vmatpush.bf16.xpose.msra.mxu0 0
      %299 = vmatpush.bf16.xpose.msra.mxu0 0
      %300 = vmatpush.bf16.xpose.msra.mxu0 0
      %301 = vmatpush.bf16.xpose.msra.mxu0 0
      %302 = vmatpush.bf16.xpose.msra.mxu0 0
      %303 = vmatpush.bf16.xpose.msra.mxu0 %v273
      %304 = vmatmul.bf16.gmra.mxu0 %v204
      %v305 = vpop.f32.mrf.mxu0
      %v306 = vadd.f32 %v226, %v305
      %v307 = vpop.f32.mrf.mxu0
      %308 = vdwg.mxu0
      %vm309 = vcmask 130048
      %v310 = vsel %vm309, %v306, -inf
      %v311 = vmax.f32 %v293, %v310
      %312 = vmax.xlane.f32.xlu0 %v311
      %v313 = vpop.xlane.xlu0 %312
      %v314 = vsub.f32 %v293, %v313
      %v315 = vsub.f32 %v306, %v313
      %v316 = vmul.f32 %v314, 1.442695
      %v317 = vpow.pop %v316
      %v318 = vmul.f32 %v315, 1.442695
      %v319 = vpow.pop %v318
      %v320 = vsel %vm309, %v319, 0.0
      %v321 = vadd.f32 %v317, %v320
      %322 = vadd.xlane.f32.xlu0 %v321
      %v323 = vpop.xlane.xlu0 %322
      %v324 = vrcp.pop %v323
      %v325 = vmul.f32 %v317, %v324
      %v326 = vmul.f32 %v319, %v324
      %v327 = vpack.c.bf16 %v325, %v325
      %v328 = vpack.c.bf16 %v326, %v326
      %v330 = vsel %vm309, %v328, 0
      %332 = vmatpush.bf16.msra.mxu0 %v272
      %333 = vmatpush.bf16.msra.mxu0 %v271
      %334 = vmatpush.bf16.msra.mxu0 %v270
      %335 = vmatpush.bf16.msra.mxu0 %v269
      %336 = vmatpush.bf16.msra.mxu0 %v268
      %337 = vmatpush.bf16.msra.mxu0 %v267
      %338 = vmatpush.bf16.msra.mxu0 %v266
      %339 = vmatpush.bf16.msra.mxu0 %v265
      %340 = vmatmul.bf16.gmra.mxu0 %v327
      %v341 = vpop.f32.mrf.mxu0
      %v342 = vadd.f32 0.0, %v341
      %v343 = vpop.f32.mrf.mxu0
      %344 = vdwg.mxu0
      %345 = vmatpush.bf16.msra.mxu0 0
      %346 = vmatpush.bf16.msra.mxu0 0
      %347 = vmatpush.bf16.msra.mxu0 0
      %348 = vmatpush.bf16.msra.mxu0 0
      %349 = vmatpush.bf16.msra.mxu0 0
      %350 = vmatpush.bf16.msra.mxu0 0
      %351 = vmatpush.bf16.msra.mxu0 0
      %352 = vmatpush.bf16.msra.mxu0 %v273
      %353 = vmatmul.bf16.gmra.mxu0 %v330
      %v354 = vpop.f32.mrf.mxu0
      %v355 = vadd.f32 %v342, %v354
      %v356 = vpop.f32.mrf.mxu0
      %357 = vdwg.mxu0
      %358 = vst [vmem:[%s202] sm:$0xff] %v355
      %p359 = scmp.lt.s32.totalorder %s14, 1
      %s360 = scalar_select %p359, %s14, 1
      %s361 = smul.addr %s360, 8
      %s362 = scalar_lea.vmem %s3, %s361
      // Predicated region
      $region33: #{pano_speaker_decoder_forward.9} parent=31 // pred_check
        %p363 = pneg %p110
      $region34: #{pano_speaker_decoder_forward.9} parent=31 // pred_check_branch
        %365 = sbr.rel (%p363) target = $region36
      $region35: #{pano_speaker_decoder_forward.9} parent=31 // pred_region
        _
      $region36: #{pano_speaker_decoder_forward.9} parent=31 // pred_fallthru
        _
    $region32: #{pano_speaker_decoder_forward.9} parent=5 // pred_fallthru
      _
    %p366 = scmp.le.s32.totalorder 2, %s9
    // Predicated region
    $region37: #{pano_speaker_decoder_forward.9} parent=5 // pred_check
      %p367 = pneg %p366
    $region38: #{pano_speaker_decoder_forward.9} parent=5 // pred_check_branch
      %369 = sbr.rel (%p367) target = $region40
    $region39: #{pano_speaker_decoder_forward.9} parent=5 // pred_region
      %s370 = ssub.s32 %s9, 2
      // Predicated region
      $region41: #{pano_speaker_decoder_forward.9} parent=39 // pred_check
        %p371 = pneg %p116
      $region42: #{pano_speaker_decoder_forward.9} parent=39 // pred_check_branch
        %373 = sbr.rel (%p371) target = $region44
      $region43: #{pano_speaker_decoder_forward.9} parent=39 // pred_region
        %p374 = scmp.lt.s32.totalorder %s15, 1
        %s375 = scalar_select %p374, %s15, 1
        %s376 = smul.addr %s375, 8
        %s377 = scalar_lea.vmem %s3, %s376
      $region44: #{pano_speaker_decoder_forward.9} parent=39 // pred_fallthru
        _
    $region40: #{pano_speaker_decoder_forward.9} parent=5 // pred_fallthru
      _
  $region6: #{pano_speaker_decoder_forward.9} parent=0 // loop_footer
    %s13 = sadd.s32 1, %s9
  $region7: #{pano_speaker_decoder_forward.9} parent=0 // loop_footer_branch
    %8 = sbr.rel target = $region3
  $region8: #{pano_speaker_decoder_forward.9} parent=0 // loop_exit
    _

// kernel: pano_speaker_decoder_forward.11
$region0: #{pano_speaker_decoder_forward.11}
  #allocation0 [shape = 'u32[]', space=smem, size = 0x4, offset = 0x4, fixed_abs, tag = 'smem constant byte address 0x4 - core index']
  #allocation1 [shape = 'u32[72,128]{1,0:T(1,128)}', space=vmem, size = 0x9000, scoped, tag = 'internal scratch']
  %s0 = inlined_call_operand.vmem [shape: bf16[16,128], index: 0, kind: input, shape index: {}]
  %s1 = inlined_call_operand.vmem [shape: bf16[128,128], index: 1, kind: input, shape index: {}]
  %s2 = inlined_call_operand.vmem [shape: f32[1,128], index: 2, kind: input, shape index: {}]
  %s3 = inlined_call_operand.hbm [shape: f32[16,128], index: 3, kind: output, shape index: {}]
  %s4 = sld [smem:[#allocation0]]
  $region22: #{pano_speaker_decoder_forward.11} parent=0
    _
  %s6 = ssub.s32 1, %s4
  %s7 = scalar_select 0, %s6, %s4
  $region1: #{pano_speaker_decoder_forward.11} parent=0
    #allocation2 [shape = 'u8[8192]{0}', space=vmem, size = 0x2000, scoped, tag = 'output window, operand 0, single buffered']
    #allocation3 [shape = 's32[1]{0}', space=sflag, size = 0x4, scoped, tag = 'scoped memory for pano_speaker_decoder_forward.11']
    %8 = vsyncpa [#allocation3], 0
    // Predicated region
    $region2: #{pano_speaker_decoder_forward.11} parent=1 // pred_check
      _
    $region3: #{pano_speaker_decoder_forward.11} parent=1 // pred_check_branch
      %10 = sbr.rel (0) target = $region5
    $region4: #{pano_speaker_decoder_forward.11} parent=1 // pred_region
      _
    $region5: #{pano_speaker_decoder_forward.11} parent=1 // pred_fallthru
      _
    // Predicated region
    $region6: #{pano_speaker_decoder_forward.11} parent=1 // pred_check
      _
    $region7: #{pano_speaker_decoder_forward.11} parent=1 // pred_check_branch
      %12 = sbr.rel (0) target = $region9
    $region8: #{pano_speaker_decoder_forward.11} parent=1 // pred_region
      _
    $region9: #{pano_speaker_decoder_forward.11} parent=1 // pred_fallthru
      _
    // Predicated region
    $region10: #{pano_speaker_decoder_forward.11} parent=1 // pred_check
      _
    $region11: #{pano_speaker_decoder_forward.11} parent=1 // pred_check_branch
      %14 = sbr.rel (0) target = $region13
    $region12: #{pano_speaker_decoder_forward.11} parent=1 // pred_region
      _
    $region13: #{pano_speaker_decoder_forward.11} parent=1 // pred_fallthru
      _
    %v15 = vld [vmem:[%s0] sm:$0xf]
    %v16 = vld [vmem:[%s0 + $0x4] sm:$0xf]
    %v17 = vld [vmem:[%s1] sm:$0xf]
    %v18 = vld [vmem:[%s1 + $0x4] sm:$0xf]
    %v19 = vld [vmem:[%s1 + $0x8] sm:$0xf]
    %v20 = vld [vmem:[%s1 + $0xc] sm:$0xf]
    %v21 = vld [vmem:[%s1 + $0x10] sm:$0xf]
    %v22 = vld [vmem:[%s1 + $0x14] sm:$0xf]
    %v23 = vld [vmem:[%s1 + $0x18] sm:$0xf]
    %v24 = vld [vmem:[%s1 + $0x1c] sm:$0xf]
    %v25 = vld [vmem:[%s1 + $0x20] sm:$0xf]
    %v26 = vld [vmem:[%s1 + $0x24] sm:$0xf]
    %v27 = vld [vmem:[%s1 + $0x28] sm:$0xf]
    %v28 = vld [vmem:[%s1 + $0x2c] sm:$0xf]
    %v29 = vld [vmem:[%s1 + $0x30] sm:$0xf]
    %v30 = vld [vmem:[%s1 + $0x34] sm:$0xf]
    %v31 = vld [vmem:[%s1 + $0x38] sm:$0xf]
    %v32 = vld [vmem:[%s1 + $0x3c] sm:$0xf]
    %v33 = vld [vmem:[%s2] sm:$0x1]
    %v35 = vperm.slane %v33, 0
    %v39 = vunpack.c.l.b16 %v15
    %v40 = vunpack.c.l.b16 %v16
    %v41 = vpack.c.b16 %v40, %v39
    %v59 = vunpack.c.l.b16 %v17
    %v60 = vunpack.c.l.b16 %v18
    %v61 = vunpack.c.l.b16 %v19
    %v62 = vunpack.c.l.b16 %v20
    %v63 = vunpack.c.l.b16 %v21
    %v64 = vunpack.c.l.b16 %v22
    %v65 = vunpack.c.l.b16 %v23
    %v66 = vunpack.c.l.b16 %v24
    %v67 = vunpack.c.l.b16 %v25
    %v68 = vunpack.c.l.b16 %v26
    %v69 = vunpack.c.l.b16 %v27
    %v70 = vunpack.c.l.b16 %v28
    %v71 = vunpack.c.l.b16 %v29
    %v72 = vunpack.c.l.b16 %v30
    %v73 = vunpack.c.l.b16 %v31
    %v74 = vunpack.c.l.b16 %v32
    %v75 = vpack.c.b16 %v60, %v59
    %v76 = vpack.c.b16 %v62, %v61
    %v77 = vpack.c.b16 %v64, %v63
    %v78 = vpack.c.b16 %v66, %v65
    %v79 = vpack.c.b16 %v68, %v67
    %v80 = vpack.c.b16 %v70, %v69
    %v81 = vpack.c.b16 %v72, %v71
    %v82 = vpack.c.b16 %v74, %v73
    %91 = vmatpush.bf16.msra.mxu0 %v82
    %92 = vmatpush.bf16.msra.mxu0 %v81
    %93 = vmatpush.bf16.msra.mxu0 %v80
    %94 = vmatpush.bf16.msra.mxu0 %v79
    %95 = vmatpush.bf16.msra.mxu0 %v78
    %96 = vmatpush.bf16.msra.mxu0 %v77
    %97 = vmatpush.bf16.msra.mxu0 %v76
    %98 = vmatpush.bf16.msra.mxu0 %v75
    %99 = vmatmul.bf16.gmra.mxu0 %v41
    %v100 = vpop.f32.mrf.mxu0
    %v101 = vadd.f32 %v35, %v100
    %v102 = vpop.f32.mrf.mxu0
    %v103 = vadd.f32 %v35, %v102
    %104 = vdwg.mxu0
    %105 = vst [vmem:[#allocation2] sm:$0xff] %v101
    %106 = vst [vmem:[#allocation2 + $0x8] sm:$0xff] %v103
    // Predicated region
    $region14: #{pano_speaker_decoder_forward.11} parent=1 // pred_check
      _
    $region15: #{pano_speaker_decoder_forward.11} parent=1 // pred_check_branch
      %108 = sbr.rel (0) target = $region17
    $region16: #{pano_speaker_decoder_forward.11} parent=1 // pred_region
      %110 = vsyncadd [#allocation3], 0
      %s111 = sshll.u32 [#allocation2], 4
      %s112 = int_to_ptr.vmem [resolvable:$true] %s111
      %s113 = sshll.u32 %s3, 4
      %s114 = int_to_ptr.hbm [resolvable:$true] %s113
      %119 = dma.vmem_to_hbm [thread:$0]  %s112, 256, %s114, [#allocation3], 128, 128, 8
    $region17: #{pano_speaker_decoder_forward.11} parent=1 // pred_fallthru
      _
    // Predicated region
    $region18: #{pano_speaker_decoder_forward.11} parent=1 // pred_check
      _
    $region19: #{pano_speaker_decoder_forward.11} parent=1 // pred_check_branch
      %121 = sbr.rel (0) target = $region21
    $region20: #{pano_speaker_decoder_forward.11} parent=1 // pred_region
      %123 = dma.done [#allocation3], 256
    $region21: #{pano_speaker_decoder_forward.11} parent=1 // pred_fallthru
      _
    %124 = vsyncpa [#allocation3], 1

// kernel: pano_speaker_decoder_forward.10
$region0: #{pano_speaker_decoder_forward.10}
  #allocation0 [shape = 'u32[]', space=smem, size = 0x4, offset = 0x4, fixed_abs, tag = 'smem constant byte address 0x4 - core index']
  #allocation1 [shape = 'u32[72,128]{1,0:T(1,128)}', space=vmem, size = 0x9000, scoped, tag = 'internal scratch']
  %s0 = inlined_call_operand.vmem [shape: bf16[16,256], index: 0, kind: input, shape index: {}]
  %s1 = inlined_call_operand.vmem [shape: bf16[256,128], index: 1, kind: input, shape index: {}]
  %s2 = inlined_call_operand.vmem [shape: f32[1,128], index: 2, kind: input, shape index: {}]
  %s3 = inlined_call_operand.vmem [shape: f32[16,128], index: 3, kind: output, shape index: {}]
  %s4 = sld [smem:[#allocation0]]
  $region22: #{pano_speaker_decoder_forward.10} parent=0
    _
  %s6 = ssub.s32 1, %s4
  %s7 = scalar_select 0, %s6, %s4
  // Predicated region
  $region2: #{pano_speaker_decoder_forward.10} parent=0 // pred_check
    _
  $region3: #{pano_speaker_decoder_forward.10} parent=0 // pred_check_branch
    %9 = sbr.rel (0) target = $region5
  $region4: #{pano_speaker_decoder_forward.10} parent=0 // pred_region
    _
  $region5: #{pano_speaker_decoder_forward.10} parent=0 // pred_fallthru
    _
  // Predicated region
  $region6: #{pano_speaker_decoder_forward.10} parent=0 // pred_check
    _
  $region7: #{pano_speaker_decoder_forward.10} parent=0 // pred_check_branch
    %11 = sbr.rel (0) target = $region9
  $region8: #{pano_speaker_decoder_forward.10} parent=0 // pred_region
    _
  $region9: #{pano_speaker_decoder_forward.10} parent=0 // pred_fallthru
    _
  // Predicated region
  $region10: #{pano_speaker_decoder_forward.10} parent=0 // pred_check
    _
  $region11: #{pano_speaker_decoder_forward.10} parent=0 // pred_check_branch
    %13 = sbr.rel (0) target = $region13
  $region12: #{pano_speaker_decoder_forward.10} parent=0 // pred_region
    _
  $region13: #{pano_speaker_decoder_forward.10} parent=0 // pred_fallthru
    _
  %v14 = vld [vmem:[%s0] sm:$0xff]
  %v15 = vld [vmem:[%s0 + $0x8] sm:$0xff]
  %v16 = vld [vmem:[%s1] sm:$0xf]
  %v17 = vld [vmem:[%s1 + $0x4] sm:$0xf]
  %v18 = vld [vmem:[%s1 + $0x8] sm:$0xf]
  %v19 = vld [vmem:[%s1 + $0xc] sm:$0xf]
  %v20 = vld [vmem:[%s1 + $0x10] sm:$0xf]
  %v21 = vld [vmem:[%s1 + $0x14] sm:$0xf]
  %v22 = vld [vmem:[%s1 + $0x18] sm:$0xf]
  %v23 = vld [vmem:[%s1 + $0x1c] sm:$0xf]
  %v24 = vld [vmem:[%s1 + $0x20] sm:$0xf]
  %v25 = vld [vmem:[%s1 + $0x24] sm:$0xf]
  %v26 = vld [vmem:[%s1 + $0x28] sm:$0xf]
  %v27 = vld [vmem:[%s1 + $0x2c] sm:$0xf]
  %v28 = vld [vmem:[%s1 + $0x30] sm:$0xf]
  %v29 = vld [vmem:[%s1 + $0x34] sm:$0xf]
  %v30 = vld [vmem:[%s1 + $0x38] sm:$0xf]
  %v31 = vld [vmem:[%s1 + $0x3c] sm:$0xf]
  %v32 = vld [vmem:[%s1 + $0x40] sm:$0xf]
  %v33 = vld [vmem:[%s1 + $0x44] sm:$0xf]
  %v34 = vld [vmem:[%s1 + $0x48] sm:$0xf]
  %v35 = vld [vmem:[%s1 + $0x4c] sm:$0xf]
  %v36 = vld [vmem:[%s1 + $0x50] sm:$0xf]
  %v37 = vld [vmem:[%s1 + $0x54] sm:$0xf]
  %v38 = vld [vmem:[%s1 + $0x58] sm:$0xf]
  %v39 = vld [vmem:[%s1 + $0x5c] sm:$0xf]
  %v40 = vld [vmem:[%s1 + $0x60] sm:$0xf]
  %v41 = vld [vmem:[%s1 + $0x64] sm:$0xf]
  %v42 = vld [vmem:[%s1 + $0x68] sm:$0xf]
  %v43 = vld [vmem:[%s1 + $0x6c] sm:$0xf]
  %v44 = vld [vmem:[%s1 + $0x70] sm:$0xf]
  %v45 = vld [vmem:[%s1 + $0x74] sm:$0xf]
  %v46 = vld [vmem:[%s1 + $0x78] sm:$0xf]
  %v47 = vld [vmem:[%s1 + $0x7c] sm:$0xf]
  %v48 = vld [vmem:[%s2] sm:$0x1]
  %v50 = vperm.slane %v48, 0
  %v54 = vunpack.c.l.b16 %v14
  %v55 = vunpack.c.h.b16 %v14
  %v56 = vunpack.c.l.b16 %v15
  %v57 = vunpack.c.h.b16 %v15
  %v58 = vpack.c.b16 %v56, %v54
  %v59 = vpack.c.b16 %v57, %v55
  %v94 = vunpack.c.l.b16 %v16
  %v95 = vunpack.c.l.b16 %v17
  %v96 = vunpack.c.l.b16 %v18
  %v97 = vunpack.c.l.b16 %v19
  %v98 = vunpack.c.l.b16 %v20
  %v99 = vunpack.c.l.b16 %v21
  %v100 = vunpack.c.l.b16 %v22
  %v101 = vunpack.c.l.b16 %v23
  %v102 = vunpack.c.l.b16 %v24
  %v103 = vunpack.c.l.b16 %v25
  %v104 = vunpack.c.l.b16 %v26
  %v105 = vunpack.c.l.b16 %v27
  %v106 = vunpack.c.l.b16 %v28
  %v107 = vunpack.c.l.b16 %v29
  %v108 = vunpack.c.l.b16 %v30
  %v109 = vunpack.c.l.b16 %v31
  %v110 = vunpack.c.l.b16 %v32
  %v111 = vunpack.c.l.b16 %v33
  %v112 = vunpack.c.l.b16 %v34
  %v113 = vunpack.c.l.b16 %v35
  %v114 = vunpack.c.l.b16 %v36
  %v115 = vunpack.c.l.b16 %v37
  %v116 = vunpack.c.l.b16 %v38
  %v117 = vunpack.c.l.b16 %v39
  %v118 = vunpack.c.l.b16 %v40
  %v119 = vunpack.c.l.b16 %v41
  %v120 = vunpack.c.l.b16 %v42
  %v121 = vunpack.c.l.b16 %v43
  %v122 = vunpack.c.l.b16 %v44
  %v123 = vunpack.c.l.b16 %v45
  %v124 = vunpack.c.l.b16 %v46
  %v125 = vunpack.c.l.b16 %v47
  %v126 = vpack.c.b16 %v95, %v94
  %v127 = vpack.c.b16 %v97, %v96
  %v128 = vpack.c.b16 %v99, %v98
  %v129 = vpack.c.b16 %v101, %v100
  %v130 = vpack.c.b16 %v103, %v102
  %v131 = vpack.c.b16 %v105, %v104
  %v132 = vpack.c.b16 %v107, %v106
  %v133 = vpack.c.b16 %v109, %v108
  %v134 = vpack.c.b16 %v111, %v110
  %v135 = vpack.c.b16 %v113, %v112
  %v136 = vpack.c.b16 %v115, %v114
  %v137 = vpack.c.b16 %v117, %v116
  %v138 = vpack.c.b16 %v119, %v118
  %v139 = vpack.c.b16 %v121, %v120
  %v140 = vpack.c.b16 %v123, %v122
  %v141 = vpack.c.b16 %v125, %v124
  %158 = vmatpush.bf16.msra.mxu0 %v133
  %159 = vmatpush.bf16.msra.mxu0 %v132
  %160 = vmatpush.bf16.msra.mxu0 %v131
  %161 = vmatpush.bf16.msra.mxu0 %v130
  %162 = vmatpush.bf16.msra.mxu0 %v129
  %163 = vmatpush.bf16.msra.mxu0 %v128
  %164 = vmatpush.bf16.msra.mxu0 %v127
  %165 = vmatpush.bf16.msra.mxu0 %v126
  %166 = vmatmul.bf16.gmra.mxu0 %v58
  %v167 = vpop.f32.mrf.mxu0
  %v168 = vadd.f32 %v50, %v167
  %v169 = vpop.f32.mrf.mxu0
  %v170 = vadd.f32 %v50, %v169
  %171 = vdwg.mxu0
  %172 = vmatpush.bf16.msra.mxu0 %v141
  %173 = vmatpush.bf16.msra.mxu0 %v140
  %174 = vmatpush.bf16.msra.mxu0 %v139
  %175 = vmatpush.bf16.msra.mxu0 %v138
  %176 = vmatpush.bf16.msra.mxu0 %v137
  %177 = vmatpush.bf16.msra.mxu0 %v136
  %178 = vmatpush.bf16.msra.mxu0 %v135
  %179 = vmatpush.bf16.msra.mxu0 %v134
  %180 = vmatmul.bf16.gmra.mxu0 %v59
  %v181 = vpop.f32.mrf.mxu0
  %v182 = vadd.f32 %v168, %v181
  %v183 = vpop.f32.mrf.mxu0
  %v184 = vadd.f32 %v170, %v183
  %185 = vdwg.mxu0
  %v186 = vtanh.pop %v182
  %v187 = vtanh.pop %v184
  %188 = vst [vmem:[%s3] sm:$0xff] %v186
  %189 = vst [vmem:[%s3 + $0x8] sm:$0xff] %v187
  // Predicated region
  $region14: #{pano_speaker_decoder_forward.10} parent=0 // pred_check
    _
  $region15: #{pano_speaker_decoder_forward.10} parent=0 // pred_check_branch
    %191 = sbr.rel (0) target = $region17
  $region16: #{pano_speaker_decoder_forward.10} parent=0 // pred_region
    _
  $region17: #{pano_speaker_decoder_forward.10} parent=0 // pred_fallthru
    _
  // Predicated region
  $region18: #{pano_speaker_decoder_forward.10} parent=0 // pred_check
    _
  $region19: #{pano_speaker_decoder_forward.10} parent=0 // pred_check_branch
    %193 = sbr.rel (0) target = $region21
  $region20: #{pano_speaker_decoder_forward.10} parent=0 // pred_region
    _
  $region21: #{pano_speaker_decoder_forward.10} parent=0 // pred_fallthru
    _

</llo_original>
